<compile_context>
chip_gen: v6e
topology: v6e:2x2x1
jax: 0.10.0
libtpu: 0.0.40
codegen_flags: <defaults>
</compile_context>

<pallas_src>
import functools

import jax
import jax.numpy as jnp
from jax.experimental import pallas as pl
from jax.experimental.pallas import tpu as pltpu

_VMEM_LIMIT = 32 * 1024 * 1024   # explicit scoped-VMEM cap; < 64 MiB physical on v7x
_LN_EPS = 1e-5


# ----------------------------------------------------------------------------
# helpers
# ----------------------------------------------------------------------------

def _tile(n, target):
    """Largest divisor of n that is <= target (n itself if n <= target)."""
    if n <= target:
        return n
    for d in range(target, 0, -1):
        if n % d == 0:
            return d
    return n


def _resident(shape):
    """BlockSpec for an operand that stays fully VMEM-resident across the grid."""
    nd = len(shape)
    return pl.BlockSpec(shape, lambda i: (0,) * nd)


# ----------------------------------------------------------------------------
# Fused Pallas kernels
# ----------------------------------------------------------------------------

def _mha_ln_core(qk, vres,
                 wq_ref, bq_ref, wk_ref, bk_ref, wv_ref, bv_ref,
                 wo_ref, bo_ref, g_ref, beta_ref,
                 *, num_heads, dim_k, dim_v):
    """LayerNorm(vres + MultiHeadAttention(q=qk, k=qk, v=vres)) -> (TB, S, D)."""
    TB, S, D = vres.shape
    M = TB * S
    scale = 1.0 / (dim_k ** 0.5)

    # Flatten (TB, S, D) -> (TB*S, D): layout no-op, enables wide MXU matmuls.
    qk2 = qk.reshape(M, D).astype(jnp.bfloat16)
    vres2 = vres.reshape(M, D)                               # f32, also the residual
    v_bf = vres2.astype(jnp.bfloat16)

    # Fused all-head projections (bias added in f32; 1/sqrt(dk) folded into Q).
    q = (jnp.dot(qk2, wq_ref[...], preferred_element_type=jnp.float32)
         + bq_ref[...]) * scale
    k = jnp.dot(qk2, wk_ref[...], preferred_element_type=jnp.float32) + bk_ref[...]
    v = jnp.dot(v_bf, wv_ref[...], preferred_element_type=jnp.float32) + bv_ref[...]

    q3 = q.reshape(TB, S, num_heads * dim_k).astype(jnp.bfloat16)
    k3 = k.reshape(TB, S, num_heads * dim_k).astype(jnp.bfloat16)
    v3 = v.reshape(TB, S, num_heads * dim_v).astype(jnp.bfloat16)

    # Output-projection weight loaded once; sliced per head below.
    wo = wo_ref[...]                                          # (H*dv, D) bf16

    # Per-head attention, accumulating the output projection so the result
    # stays lane-dense (last dim = D) and no concat is needed.
    acc = jnp.zeros((M, D), jnp.float32)
    for h in range(num_heads):
        qh = q3[:, :, h * dim_k:(h + 1) * dim_k]
        kh = k3[:, :, h * dim_k:(h + 1) * dim_k]
        vh = v3[:, :, h * dim_v:(h + 1) * dim_v]

        s = jnp.einsum('bqd,bkd->bqk', qh, kh,
                       preferred_element_type=jnp.float32)
        m = jnp.max(s, axis=-1, keepdims=True)
        p = jnp.exp(s - m)
        p = p * pl.reciprocal(jnp.sum(p, axis=-1, keepdims=True), approx=True)

        oh = jnp.einsum('bqk,bkd->bqd', p.astype(jnp.bfloat16), vh,
                        preferred_element_type=jnp.float32)
        acc = acc + jnp.dot(oh.reshape(M, dim_v).astype(jnp.bfloat16),
                            wo[h * dim_v:(h + 1) * dim_v, :],
                            preferred_element_type=jnp.float32)

    # Residual + LayerNorm in f32 (biased variance, like nn.LayerNorm).
    hid = vres2 + acc + bo_ref[...]
    mu = jnp.mean(hid, axis=-1, keepdims=True)
    var = jnp.mean((hid - mu) ** 2, axis=-1, keepdims=True)
    y = (hid - mu) * jax.lax.rsqrt(var + _LN_EPS) * g_ref[...] + beta_ref[...]
    return y.reshape(TB, S, D)


def _mha_self_ln_kernel(x_ref,
                        wq_ref, bq_ref, wk_ref, bk_ref, wv_ref, bv_ref,
                        wo_ref, bo_ref, g_ref, beta_ref, o_ref,
                        *, num_heads, dim_k, dim_v):
    """Self-attention block: q = k = v = residual = x (one activation read)."""
    x = x_ref[...]
    o_ref[...] = _mha_ln_core(x, x,
                              wq_ref, bq_ref, wk_ref, bk_ref, wv_ref, bv_ref,
                              wo_ref, bo_ref, g_ref, beta_ref,
                              num_heads=num_heads, dim_k=dim_k, dim_v=dim_v)


def _mha_cross_ln_kernel(qk_ref, vres_ref,
                         wq_ref, bq_ref, wk_ref, bk_ref, wv_ref, bv_ref,
                         wo_ref, bo_ref, g_ref, beta_ref, o_ref,
                         *, num_heads, dim_k, dim_v):
    """Cross block: q = k = memory, v = residual = tgt (two activation reads)."""
    o_ref[...] = _mha_ln_core(qk_ref[...], vres_ref[...],
                              wq_ref, bq_ref, wk_ref, bk_ref, wv_ref, bv_ref,
                              wo_ref, bo_ref, g_ref, beta_ref,
                              num_heads=num_heads, dim_k=dim_k, dim_v=dim_v)


def _ffn_ln_kernel(x_ref, w1_ref, b1_ref, w2_ref, b2_ref, g_ref, beta_ref, o_ref):
    """LayerNorm(x + Linear(ReLU(Linear(x))))."""
    x = x_ref[...]                                            # (TM, D) f32
    h = jnp.dot(x.astype(jnp.bfloat16), w1_ref[...],
                preferred_element_type=jnp.float32) + b1_ref[...]
    h = jnp.maximum(h, 0.0)
    y = jnp.dot(h.astype(jnp.bfloat16), w2_ref[...],
                preferred_element_type=jnp.float32) + b2_ref[...]
    z = x + y
    mu = jnp.mean(z, axis=-1, keepdims=True)
    var = jnp.mean((z - mu) ** 2, axis=-1, keepdims=True)
    o_ref[...] = (z - mu) * jax.lax.rsqrt(var + _LN_EPS) * g_ref[...] + beta_ref[...]


def _linear_softmax_kernel(x_ref, w_ref, b_ref, o_ref):
    """softmax(Linear(x), dim=-1) for the decoder head."""
    z = jnp.dot(x_ref[...].astype(jnp.bfloat16), w_ref[...],
                preferred_element_type=jnp.float32) + b_ref[...]
    z = z - jnp.max(z, axis=-1, keepdims=True)
    e = jnp.exp(z)
    o_ref[...] = e * pl.reciprocal(jnp.sum(e, axis=-1, keepdims=True), approx=True)


# ----------------------------------------------------------------------------
# pallas_call wrappers
# ----------------------------------------------------------------------------

def _mha_ln_call(kernel_body, acts, p, num_heads):
    """Shared wrapper for the self / cross MHA+LayerNorm kernels."""
    B, S, D = acts[0].shape
    hdk = p['wq'].shape[1]
    hdv = p['wv'].shape[1]
    dk = hdk // num_heads
    dv = hdv // num_heads
    TB = _tile(B, 8)                 # batches per grid step (S, D stay full)
    M = B * S
    n_act = len(acts)

    act_spec = pl.BlockSpec((TB, S, D), lambda i: (i, 0, 0))

    flops = (2 * M * D * (2 * hdk + hdv)               # QKV projections
             + 2 * B * num_heads * S * S * (dk + dv)   # scores + weighted sum
             + 2 * M * hdv * D)                        # output projection
    transcendentals = B * num_heads * S * S + M
    bytes_accessed = ((n_act + 1) * 4 * M * D                          # acts in + out (f32)
                      + 2 * (D * (2 * hdk + hdv) + hdv * D)            # bf16 weights
                      + 4 * (2 * hdk + hdv + 3 * D))                   # biases + LN params

    kernel = functools.partial(kernel_body,
                               num_heads=num_heads, dim_k=dk, dim_v=dv)
    return pl.pallas_call(
        kernel,
        out_shape=jax.ShapeDtypeStruct((B, S, D), jnp.float32),
        grid=(B // TB,),
        in_specs=[act_spec] * n_act + [
            _resident(p['wq'].shape), _resident(p['bq'].shape),
            _resident(p['wk'].shape), _resident(p['bk'].shape),
            _resident(p['wv'].shape), _resident(p['bv'].shape),
            _resident(p['wo'].shape), _resident(p['bo'].shape),
            _resident(p['ln_g'].shape), _resident(p['ln_b'].shape)],
        out_specs=act_spec,
        compiler_params=pltpu.CompilerParams(
            dimension_semantics=("parallel",),
            vmem_limit_bytes=_VMEM_LIMIT),
        cost_estimate=pl.CostEstimate(flops=flops,
                                      transcendentals=transcendentals,
                                      bytes_accessed=bytes_accessed),
    )(*acts, p['wq'], p['bq'], p['wk'], p['bk'], p['wv'], p['bv'],
      p['wo'], p['bo'], p['ln_g'], p['ln_b'])


def mha_self_attention_layernorm(p, x, num_heads):
    """LayerNorm(x + MHA(x, x, x))."""
    return _mha_ln_call(_mha_self_ln_kernel, (x,), p, num_heads)


def mha_cross_attention_layernorm(p, qk, vres, num_heads):
    """LayerNorm(vres + MHA(query=qk, key=qk, value=vres))."""
    return _mha_ln_call(_mha_cross_ln_kernel, (qk, vres), p, num_heads)


def ffn_add_layernorm(p, x):
    B, S, D = x.shape
    dff = p['w1'].shape[1]
    M = B * S
    TM = _tile(M, 512)
    x2 = x.reshape(M, D)

    flops = 4 * M * D * dff
    bytes_accessed = 2 * 4 * M * D + 2 * 2 * D * dff + 4 * (dff + 3 * D)

    y = pl.pallas_call(
        _ffn_ln_kernel,
        out_shape=jax.ShapeDtypeStruct((M, D), jnp.float32),
        grid=(M // TM,),
        in_specs=[pl.BlockSpec((TM, D), lambda i: (i, 0)),
                  _resident(p['w1'].shape), _resident(p['b1'].shape),
                  _resident(p['w2'].shape), _resident(p['b2'].shape),
                  _resident(p['ln_g'].shape), _resident(p['ln_b'].shape)],
        out_specs=pl.BlockSpec((TM, D), lambda i: (i, 0)),
        compiler_params=pltpu.CompilerParams(
            dimension_semantics=("parallel",),
            vmem_limit_bytes=_VMEM_LIMIT),
        input_output_aliases={0: 0},            # reuse residual buffer for output
        cost_estimate=pl.CostEstimate(flops=flops, transcendentals=M,
                                      bytes_accessed=bytes_accessed),
    )(x2, p['w1'], p['b1'], p['w2'], p['b2'], p['ln_g'], p['ln_b'])
    return y.reshape(B, S, D)


def linear_softmax(p, x):
    B, S, D = x.shape
    dout = p['w'].shape[1]
    M = B * S
    TM = _tile(M, 512)

    flops = 2 * M * D * dout
    bytes_accessed = 4 * M * D + 2 * D * dout + 4 * dout + 4 * M * dout

    y = pl.pallas_call(
        _linear_softmax_kernel,
        out_shape=jax.ShapeDtypeStruct((M, dout), jnp.float32),
        grid=(M // TM,),
        in_specs=[pl.BlockSpec((TM, D), lambda i: (i, 0)),
                  _resident(p['w'].shape), _resident(p['b'].shape)],
        out_specs=pl.BlockSpec((TM, dout), lambda i: (i, 0)),
        compiler_params=pltpu.CompilerParams(
            dimension_semantics=("parallel",),
            vmem_limit_bytes=_VMEM_LIMIT),
        cost_estimate=pl.CostEstimate(flops=flops,
                                      transcendentals=M * dout + M,
                                      bytes_accessed=bytes_accessed),
    )(x.reshape(M, D), p['w'], p['b'])
    return y.reshape(B, S, dout)


# ----------------------------------------------------------------------------
# Model glue (plain JAX): positional encoding, layer stacking
# ----------------------------------------------------------------------------

def position_encoding(seq_len, dim_model):
    pos = jnp.arange(seq_len, dtype=jnp.float32).reshape(1, -1, 1)
    dim = jnp.arange(dim_model, dtype=jnp.float32).reshape(1, 1, -1)
    phase = pos / (10000.0 ** (dim / dim_model))
    return jnp.where(dim.astype(jnp.int32) % 2 == 0, jnp.sin(phase), jnp.cos(phase))


def encoder_layer(p, src, num_heads):
    # Residual(MHA) then Residual(FFN); dropout = identity (eval mode).
    src = mha_self_attention_layernorm(p['mha'], src, num_heads)
    return ffn_add_layernorm(p['ffn'], src)


def transformer_encoder(p, src, num_heads):
    _, S, D = src.shape
    src = src + position_encoding(S, D)
    for lp in p['layers']:
        src = encoder_layer(lp, src, num_heads)
    return src


def decoder_layer(p, tgt, memory, num_heads):
    tgt = mha_self_attention_layernorm(p['mha1'], tgt, num_heads)
    # Faithful to the PyTorch source: attention_2(memory, memory, tgt) means
    # query = key = memory, value = tgt, and the residual adds tgt (tensors[-1]).
    tgt = mha_cross_attention_layernorm(p['mha2'], memory, tgt, num_heads)
    return ffn_add_layernorm(p['ffn'], tgt)


def transformer_decoder(p, tgt, memory, num_heads):
    _, S, D = tgt.shape
    tgt = tgt + position_encoding(S, D)
    for lp in p['layers']:
        tgt = decoder_layer(lp, tgt, memory, num_heads)
    return linear_softmax(p['final'], tgt)


def transformer_forward(params, src, tgt, *, num_heads):
    memory = transformer_encoder(params['encoder'], src, num_heads)
    return transformer_decoder(params['decoder'], tgt, memory, num_heads)


# ----------------------------------------------------------------------------
# Deterministic parameter initialization (nn.Linear / nn.LayerNorm defaults)
# Matmul weights stored in bfloat16; biases / LayerNorm params in float32.
# ----------------------------------------------------------------------------

def _uniform(key, shape, bound, dtype=jnp.float32):
    return jax.random.uniform(key, shape, jnp.float32, -bound, bound).astype(dtype)


def init_mha(key, num_heads, dim_in, dim_k, dim_v):
    ks = jax.random.split(key, 8)
    bi = 1.0 / (dim_in ** 0.5)
    bo = 1.0 / ((num_heads * dim_v) ** 0.5)
    return {
        # per-head Q/K/V Linear weights stacked along the output dim so one
        # wide matmul serves all heads (lane-dense, MXU-friendly).
        'wq': _uniform(ks[0], (dim_in, num_heads * dim_k), bi, jnp.bfloat16),
        'bq': _uniform(ks[1], (1, num_heads * dim_k), bi),
        'wk': _uniform(ks[2], (dim_in, num_heads * dim_k), bi, jnp.bfloat16),
        'bk': _uniform(ks[3], (1, num_heads * dim_k), bi),
        'wv': _uniform(ks[4], (dim_in, num_heads * dim_v), bi, jnp.bfloat16),
        'bv': _uniform(ks[5], (1, num_heads * dim_v), bi),
        'wo': _uniform(ks[6], (num_heads * dim_v, dim_in), bo, jnp.bfloat16),
        'bo': _uniform(ks[7], (1, dim_in), bo),
        'ln_g': jnp.ones((1, dim_in), jnp.float32),
        'ln_b': jnp.zeros((1, dim_in), jnp.float32),
    }


def init_ffn(key, dim_model, dim_ff):
    k1, k2, k3, k4 = jax.random.split(key, 4)
    b1 = 1.0 / (dim_model ** 0.5)
    b2 = 1.0 / (dim_ff ** 0.5)
    return {
        'w1': _uniform(k1, (dim_model, dim_ff), b1, jnp.bfloat16),
        'b1': _uniform(k2, (1, dim_ff), b1),
        'w2': _uniform(k3, (dim_ff, dim_model), b2, jnp.bfloat16),
        'b2': _uniform(k4, (1, dim_model), b2),
        'ln_g': jnp.ones((1, dim_model), jnp.float32),
        'ln_b': jnp.zeros((1, dim_model), jnp.float32),
    }


def init_encoder_layer(key, dim_model, num_heads, dim_ff):
    dk = dv = dim_model // num_heads
    k1, k2 = jax.random.split(key)
    return {'mha': init_mha(k1, num_heads, dim_model, dk, dv),
            'ffn': init_ffn(k2, dim_model, dim_ff)}


def init_decoder_layer(key, dim_model, num_heads, dim_ff):
    dk = dv = dim_model // num_heads
    k1, k2, k3 = jax.random.split(key, 3)
    return {'mha1': init_mha(k1, num_heads, dim_model, dk, dv),
            'mha2': init_mha(k2, num_heads, dim_model, dk, dv),
            'ffn': init_ffn(k3, dim_model, dim_ff)}


def init_transformer(key, num_enc, num_dec, dim_model, num_heads, dim_ff):
    k_enc, k_dec, k_fin = jax.random.split(key, 3)
    enc_keys = jax.random.split(k_enc, num_enc)
    dec_keys = jax.random.split(k_dec, num_dec)
    kf1, kf2 = jax.random.split(k_fin)
    bf_ = 1.0 / (dim_model ** 0.5)
    return {
        'encoder': {'layers': [init_encoder_layer(k, dim_model, num_heads, dim_ff)
                               for k in enc_keys]},
        'decoder': {'layers': [init_decoder_layer(k, dim_model, num_heads, dim_ff)
                               for k in dec_keys],
                    'final': {'w': _uniform(kf1, (dim_model, dim_model), bf_, jnp.bfloat16),
                              'b': _uniform(kf2, (1, dim_model), bf_)}},
    }


# ----------------------------------------------------------------------------

if __name__ == "__main__":
    # Small, structure-preserving shapes (original: B=64, S=16, D=512, H=6, F=2048, L=6)
    B, S, D = 2, 8, 32
    NUM_HEADS = 4
    DIM_FF = 64
    NUM_ENC_LAYERS = 2
    NUM_DEC_LAYERS = 2

    root = jax.random.PRNGKey(0)
    k_params, k_src, k_tgt = jax.random.split(root, 3)

    params = init_transformer(k_params, NUM_ENC_LAYERS, NUM_DEC_LAYERS,
                              D, NUM_HEADS, DIM_FF)

    src = jax.random.uniform(k_src, (B, S, D), jnp.float32)   # torch.rand analogue
    tgt = jax.random.uniform(k_tgt, (B, S, D), jnp.float32)

    fwd = jax.jit(functools.partial(transformer_forward, num_heads=NUM_HEADS))
    out = fwd(params, src, tgt)
    out = jax.block_until_ready(out)

    assert out.shape == (B, S, D)
    # sanity: rows are softmax distributions over the last axis.
    # approx reciprocal (EUP) + bf16 matmuls -> rows sum to 1 within ~1e-3.
    assert bool(jnp.allclose(jnp.sum(out, axis=-1), 1.0, atol=5e-3))
    assert bool(jnp.all(jnp.isfinite(out)))

    print("KERNEL_OK")
</pallas_src>

<mosaic_0001>
module attributes {stable_mosaic.version = 11 : i64} {
  func.func @_mha_self_ln_kernel(%arg0: i32, %arg1: memref<2x8x32xf32, #tpu.memory_space<vmem>>, %arg2: memref<32x32xbf16, #tpu.memory_space<vmem>>, %arg3: memref<1x32xf32, #tpu.memory_space<vmem>>, %arg4: memref<32x32xbf16, #tpu.memory_space<vmem>>, %arg5: memref<1x32xf32, #tpu.memory_space<vmem>>, %arg6: memref<32x32xbf16, #tpu.memory_space<vmem>>, %arg7: memref<1x32xf32, #tpu.memory_space<vmem>>, %arg8: memref<32x32xbf16, #tpu.memory_space<vmem>>, %arg9: memref<1x32xf32, #tpu.memory_space<vmem>>, %arg10: memref<1x32xf32, #tpu.memory_space<vmem>>, %arg11: memref<1x32xf32, #tpu.memory_space<vmem>>, %arg12: memref<2x8x32xf32, #tpu.memory_space<vmem>>) attributes {dimension_semantics = [#tpu.dimension_semantics<parallel>], iteration_bounds = array<i64: 1>, scalar_prefetch = 0 : i64, scratch_operands = 0 : i64, tpu.core_type = #tpu.core_type<tc>, window_params = [{transform_indices = @transform_0, window_bounds = array<i64: 2, 8, 32>}, {pipeline_mode = #tpu.pipeline_mode<synchronous>, transform_indices = @transform_1, window_bounds = array<i64: 32, 32>}, {pipeline_mode = #tpu.pipeline_mode<synchronous>, transform_indices = @transform_2, window_bounds = array<i64: 1, 32>}, {pipeline_mode = #tpu.pipeline_mode<synchronous>, transform_indices = @transform_3, window_bounds = array<i64: 32, 32>}, {pipeline_mode = #tpu.pipeline_mode<synchronous>, transform_indices = @transform_4, window_bounds = array<i64: 1, 32>}, {pipeline_mode = #tpu.pipeline_mode<synchronous>, transform_indices = @transform_5, window_bounds = array<i64: 32, 32>}, {pipeline_mode = #tpu.pipeline_mode<synchronous>, transform_indices = @transform_6, window_bounds = array<i64: 1, 32>}, {pipeline_mode = #tpu.pipeline_mode<synchronous>, transform_indices = @transform_7, window_bounds = array<i64: 32, 32>}, {pipeline_mode = #tpu.pipeline_mode<synchronous>, transform_indices = @transform_8, window_bounds = array<i64: 1, 32>}, {pipeline_mode = #tpu.pipeline_mode<synchronous>, transform_indices = @transform_9, window_bounds = array<i64: 1, 32>}, {pipeline_mode = #tpu.pipeline_mode<synchronous>, transform_indices = @transform_10, window_bounds = array<i64: 1, 32>}, {transform_indices = @transform_11, window_bounds = array<i64: 2, 8, 32>}]} {
    %c0 = arith.constant 0 : index
    %c0_0 = arith.constant 0 : index
    %c0_1 = arith.constant 0 : index
    %0 = vector.load %arg1[%c0, %c0_0, %c0_1] : memref<2x8x32xf32, #tpu.memory_space<vmem>>, vector<2x8x32xf32>
    %1 = vector.shape_cast %0 : vector<2x8x32xf32> to vector<16x32xf32>
    %2 = arith.truncf %1 : vector<16x32xf32> to vector<16x32xbf16>
    %3 = vector.shape_cast %0 : vector<2x8x32xf32> to vector<16x32xf32>
    %4 = arith.truncf %3 : vector<16x32xf32> to vector<16x32xbf16>
    %c0_2 = arith.constant 0 : index
    %c0_3 = arith.constant 0 : index
    %5 = vector.load %arg2[%c0_2, %c0_3] : memref<32x32xbf16, #tpu.memory_space<vmem>>, vector<32x32xbf16>
    %cst = arith.constant dense<0.000000e+00> : vector<16x32xf32>
    %6 = tpu.matmul %2, %5, %cst {dimension_numbers = #tpu.dot_dimension_numbers<[1], [0], [0], [1], [0, 0, 1, 1], [], []>} : vector<16x32xbf16>, vector<32x32xbf16>, vector<16x32xf32> -> vector<16x32xf32>
    %c0_4 = arith.constant 0 : index
    %c0_5 = arith.constant 0 : index
    %7 = vector.load %arg3[%c0_4, %c0_5] : memref<1x32xf32, #tpu.memory_space<vmem>>, vector<1x32xf32>
    %8 = vector.broadcast %7 : vector<1x32xf32> to vector<16x32xf32>
    %9 = arith.addf %6, %8 : vector<16x32xf32>
    %cst_6 = arith.constant 0.353553385 : f32
    %10 = vector.broadcast %cst_6 : f32 to vector<16x32xf32>
    %11 = arith.mulf %9, %10 : vector<16x32xf32>
    %c0_7 = arith.constant 0 : index
    %c0_8 = arith.constant 0 : index
    %12 = vector.load %arg4[%c0_7, %c0_8] : memref<32x32xbf16, #tpu.memory_space<vmem>>, vector<32x32xbf16>
    %cst_9 = arith.constant dense<0.000000e+00> : vector<16x32xf32>
    %13 = tpu.matmul %2, %12, %cst_9 {dimension_numbers = #tpu.dot_dimension_numbers<[1], [0], [0], [1], [0, 0, 1, 1], [], []>} : vector<16x32xbf16>, vector<32x32xbf16>, vector<16x32xf32> -> vector<16x32xf32>
    %c0_10 = arith.constant 0 : index
    %c0_11 = arith.constant 0 : index
    %14 = vector.load %arg5[%c0_10, %c0_11] : memref<1x32xf32, #tpu.memory_space<vmem>>, vector<1x32xf32>
    %15 = vector.broadcast %14 : vector<1x32xf32> to vector<16x32xf32>
    %16 = arith.addf %13, %15 : vector<16x32xf32>
    %c0_12 = arith.constant 0 : index
    %c0_13 = arith.constant 0 : index
    %17 = vector.load %arg6[%c0_12, %c0_13] : memref<32x32xbf16, #tpu.memory_space<vmem>>, vector<32x32xbf16>
    %cst_14 = arith.constant dense<0.000000e+00> : vector<16x32xf32>
    %18 = tpu.matmul %4, %17, %cst_14 {dimension_numbers = #tpu.dot_dimension_numbers<[1], [0], [0], [1], [0, 0, 1, 1], [], []>} : vector<16x32xbf16>, vector<32x32xbf16>, vector<16x32xf32> -> vector<16x32xf32>
    %c0_15 = arith.constant 0 : index
    %c0_16 = arith.constant 0 : index
    %19 = vector.load %arg7[%c0_15, %c0_16] : memref<1x32xf32, #tpu.memory_space<vmem>>, vector<1x32xf32>
    %20 = vector.broadcast %19 : vector<1x32xf32> to vector<16x32xf32>
    %21 = arith.addf %18, %20 : vector<16x32xf32>
    %22 = vector.shape_cast %11 : vector<16x32xf32> to vector<2x8x32xf32>
    %23 = arith.truncf %22 : vector<2x8x32xf32> to vector<2x8x32xbf16>
    %24 = vector.shape_cast %16 : vector<16x32xf32> to vector<2x8x32xf32>
    %25 = arith.truncf %24 : vector<2x8x32xf32> to vector<2x8x32xbf16>
    %26 = vector.shape_cast %21 : vector<16x32xf32> to vector<2x8x32xf32>
    %27 = arith.truncf %26 : vector<2x8x32xf32> to vector<2x8x32xbf16>
    %c0_17 = arith.constant 0 : index
    %c0_18 = arith.constant 0 : index
    %28 = vector.load %arg8[%c0_17, %c0_18] : memref<32x32xbf16, #tpu.memory_space<vmem>>, vector<32x32xbf16>
    %cst_19 = arith.constant 0.000000e+00 : f32
    %29 = vector.broadcast %cst_19 : f32 to vector<16x32xf32>
    %30 = vector.extract_strided_slice %23 {offsets = [0, 0, 0], sizes = [2, 8, 8], strides = [1, 1, 1]} : vector<2x8x32xbf16> to vector<2x8x8xbf16>
    %31 = vector.extract_strided_slice %25 {offsets = [0, 0, 0], sizes = [2, 8, 8], strides = [1, 1, 1]} : vector<2x8x32xbf16> to vector<2x8x8xbf16>
    %32 = vector.extract_strided_slice %27 {offsets = [0, 0, 0], sizes = [2, 8, 8], strides = [1, 1, 1]} : vector<2x8x32xbf16> to vector<2x8x8xbf16>
    "tpu.trace_start"() <{level = 10 : i32, message = "bqd,bkd->bqk"}> : () -> ()
    %cst_20 = arith.constant dense<0.000000e+00> : vector<2x8x8xf32>
    %33 = tpu.matmul %30, %31, %cst_20 {dimension_numbers = #tpu.dot_dimension_numbers<[2], [2], [1], [1], [0, 0, 0, 1, 1, 1], [0], [0]>} : vector<2x8x8xbf16>, vector<2x8x8xbf16>, vector<2x8x8xf32> -> vector<2x8x8xf32>
    "tpu.trace_stop"() : () -> ()
    %cst_21 = arith.constant dense<0xFF800000> : vector<2x8xf32>
    %34 = vector.multi_reduction <maximumf>, %33, %cst_21 [2] : vector<2x8x8xf32> to vector<2x8xf32>
    %35 = vector.shape_cast %34 : vector<2x8xf32> to vector<2x8x1xf32>
    %36 = vector.broadcast %35 : vector<2x8x1xf32> to vector<2x8x8xf32>
    %37 = arith.subf %33, %36 : vector<2x8x8xf32>
    %38 = math.exp %37 : vector<2x8x8xf32>
    %cst_22 = arith.constant dense<0.000000e+00> : vector<2x8xf32>
    %39 = vector.multi_reduction <add>, %38, %cst_22 [2] : vector<2x8x8xf32> to vector<2x8xf32>
    %40 = vector.shape_cast %39 : vector<2x8xf32> to vector<2x8x1xf32>
    %41 = tpu.reciprocal %40 {approx = true} : vector<2x8x1xf32> -> vector<2x8x1xf32>
    %42 = vector.broadcast %41 : vector<2x8x1xf32> to vector<2x8x8xf32>
    %43 = arith.mulf %38, %42 : vector<2x8x8xf32>
    %44 = arith.truncf %43 : vector<2x8x8xf32> to vector<2x8x8xbf16>
    "tpu.trace_start"() <{level = 10 : i32, message = "bqk,bkd->bqd"}> : () -> ()
    %cst_23 = arith.constant dense<0.000000e+00> : vector<2x8x8xf32>
    %45 = tpu.matmul %44, %32, %cst_23 {dimension_numbers = #tpu.dot_dimension_numbers<[2], [1], [1], [2], [0, 0, 0, 1, 1, 2], [0], [0]>} : vector<2x8x8xbf16>, vector<2x8x8xbf16>, vector<2x8x8xf32> -> vector<2x8x8xf32>
    "tpu.trace_stop"() : () -> ()
    %46 = vector.shape_cast %45 : vector<2x8x8xf32> to vector<16x8xf32>
    %47 = arith.truncf %46 : vector<16x8xf32> to vector<16x8xbf16>
    %48 = vector.extract_strided_slice %28 {offsets = [0, 0], sizes = [8, 32], strides = [1, 1]} : vector<32x32xbf16> to vector<8x32xbf16>
    %cst_24 = arith.constant dense<0.000000e+00> : vector<16x32xf32>
    %49 = tpu.matmul %47, %48, %cst_24 {dimension_numbers = #tpu.dot_dimension_numbers<[1], [0], [0], [1], [0, 0, 1, 1], [], []>} : vector<16x8xbf16>, vector<8x32xbf16>, vector<16x32xf32> -> vector<16x32xf32>
    %50 = arith.addf %29, %49 : vector<16x32xf32>
    %51 = vector.extract_strided_slice %23 {offsets = [0, 0, 8], sizes = [2, 8, 8], strides = [1, 1, 1]} : vector<2x8x32xbf16> to vector<2x8x8xbf16>
    %52 = vector.extract_strided_slice %25 {offsets = [0, 0, 8], sizes = [2, 8, 8], strides = [1, 1, 1]} : vector<2x8x32xbf16> to vector<2x8x8xbf16>
    %53 = vector.extract_strided_slice %27 {offsets = [0, 0, 8], sizes = [2, 8, 8], strides = [1, 1, 1]} : vector<2x8x32xbf16> to vector<2x8x8xbf16>
    "tpu.trace_start"() <{level = 10 : i32, message = "bqd,bkd->bqk"}> : () -> ()
    %cst_25 = arith.constant dense<0.000000e+00> : vector<2x8x8xf32>
    %54 = tpu.matmul %51, %52, %cst_25 {dimension_numbers = #tpu.dot_dimension_numbers<[2], [2], [1], [1], [0, 0, 0, 1, 1, 1], [0], [0]>} : vector<2x8x8xbf16>, vector<2x8x8xbf16>, vector<2x8x8xf32> -> vector<2x8x8xf32>
    "tpu.trace_stop"() : () -> ()
    %cst_26 = arith.constant dense<0xFF800000> : vector<2x8xf32>
    %55 = vector.multi_reduction <maximumf>, %54, %cst_26 [2] : vector<2x8x8xf32> to vector<2x8xf32>
    %56 = vector.shape_cast %55 : vector<2x8xf32> to vector<2x8x1xf32>
    %57 = vector.broadcast %56 : vector<2x8x1xf32> to vector<2x8x8xf32>
    %58 = arith.subf %54, %57 : vector<2x8x8xf32>
    %59 = math.exp %58 : vector<2x8x8xf32>
    %cst_27 = arith.constant dense<0.000000e+00> : vector<2x8xf32>
    %60 = vector.multi_reduction <add>, %59, %cst_27 [2] : vector<2x8x8xf32> to vector<2x8xf32>
    %61 = vector.shape_cast %60 : vector<2x8xf32> to vector<2x8x1xf32>
    %62 = tpu.reciprocal %61 {approx = true} : vector<2x8x1xf32> -> vector<2x8x1xf32>
    %63 = vector.broadcast %62 : vector<2x8x1xf32> to vector<2x8x8xf32>
    %64 = arith.mulf %59, %63 : vector<2x8x8xf32>
    %65 = arith.truncf %64 : vector<2x8x8xf32> to vector<2x8x8xbf16>
    "tpu.trace_start"() <{level = 10 : i32, message = "bqk,bkd->bqd"}> : () -> ()
    %cst_28 = arith.constant dense<0.000000e+00> : vector<2x8x8xf32>
    %66 = tpu.matmul %65, %53, %cst_28 {dimension_numbers = #tpu.dot_dimension_numbers<[2], [1], [1], [2], [0, 0, 0, 1, 1, 2], [0], [0]>} : vector<2x8x8xbf16>, vector<2x8x8xbf16>, vector<2x8x8xf32> -> vector<2x8x8xf32>
    "tpu.trace_stop"() : () -> ()
    %67 = vector.shape_cast %66 : vector<2x8x8xf32> to vector<16x8xf32>
    %68 = arith.truncf %67 : vector<16x8xf32> to vector<16x8xbf16>
    %69 = vector.extract_strided_slice %28 {offsets = [8, 0], sizes = [8, 32], strides = [1, 1]} : vector<32x32xbf16> to vector<8x32xbf16>
    %cst_29 = arith.constant dense<0.000000e+00> : vector<16x32xf32>
    %70 = tpu.matmul %68, %69, %cst_29 {dimension_numbers = #tpu.dot_dimension_numbers<[1], [0], [0], [1], [0, 0, 1, 1], [], []>} : vector<16x8xbf16>, vector<8x32xbf16>, vector<16x32xf32> -> vector<16x32xf32>
    %71 = arith.addf %50, %70 : vector<16x32xf32>
    %72 = vector.extract_strided_slice %23 {offsets = [0, 0, 16], sizes = [2, 8, 8], strides = [1, 1, 1]} : vector<2x8x32xbf16> to vector<2x8x8xbf16>
    %73 = vector.extract_strided_slice %25 {offsets = [0, 0, 16], sizes = [2, 8, 8], strides = [1, 1, 1]} : vector<2x8x32xbf16> to vector<2x8x8xbf16>
    %74 = vector.extract_strided_slice %27 {offsets = [0, 0, 16], sizes = [2, 8, 8], strides = [1, 1, 1]} : vector<2x8x32xbf16> to vector<2x8x8xbf16>
    "tpu.trace_start"() <{level = 10 : i32, message = "bqd,bkd->bqk"}> : () -> ()
    %cst_30 = arith.constant dense<0.000000e+00> : vector<2x8x8xf32>
    %75 = tpu.matmul %72, %73, %cst_30 {dimension_numbers = #tpu.dot_dimension_numbers<[2], [2], [1], [1], [0, 0, 0, 1, 1, 1], [0], [0]>} : vector<2x8x8xbf16>, vector<2x8x8xbf16>, vector<2x8x8xf32> -> vector<2x8x8xf32>
    "tpu.trace_stop"() : () -> ()
    %cst_31 = arith.constant dense<0xFF800000> : vector<2x8xf32>
    %76 = vector.multi_reduction <maximumf>, %75, %cst_31 [2] : vector<2x8x8xf32> to vector<2x8xf32>
    %77 = vector.shape_cast %76 : vector<2x8xf32> to vector<2x8x1xf32>
    %78 = vector.broadcast %77 : vector<2x8x1xf32> to vector<2x8x8xf32>
    %79 = arith.subf %75, %78 : vector<2x8x8xf32>
    %80 = math.exp %79 : vector<2x8x8xf32>
    %cst_32 = arith.constant dense<0.000000e+00> : vector<2x8xf32>
    %81 = vector.multi_reduction <add>, %80, %cst_32 [2] : vector<2x8x8xf32> to vector<2x8xf32>
    %82 = vector.shape_cast %81 : vector<2x8xf32> to vector<2x8x1xf32>
    %83 = tpu.reciprocal %82 {approx = true} : vector<2x8x1xf32> -> vector<2x8x1xf32>
    %84 = vector.broadcast %83 : vector<2x8x1xf32> to vector<2x8x8xf32>
    %85 = arith.mulf %80, %84 : vector<2x8x8xf32>
    %86 = arith.truncf %85 : vector<2x8x8xf32> to vector<2x8x8xbf16>
    "tpu.trace_start"() <{level = 10 : i32, message = "bqk,bkd->bqd"}> : () -> ()
    %cst_33 = arith.constant dense<0.000000e+00> : vector<2x8x8xf32>
    %87 = tpu.matmul %86, %74, %cst_33 {dimension_numbers = #tpu.dot_dimension_numbers<[2], [1], [1], [2], [0, 0, 0, 1, 1, 2], [0], [0]>} : vector<2x8x8xbf16>, vector<2x8x8xbf16>, vector<2x8x8xf32> -> vector<2x8x8xf32>
    "tpu.trace_stop"() : () -> ()
    %88 = vector.shape_cast %87 : vector<2x8x8xf32> to vector<16x8xf32>
    %89 = arith.truncf %88 : vector<16x8xf32> to vector<16x8xbf16>
    %90 = vector.extract_strided_slice %28 {offsets = [16, 0], sizes = [8, 32], strides = [1, 1]} : vector<32x32xbf16> to vector<8x32xbf16>
    %cst_34 = arith.constant dense<0.000000e+00> : vector<16x32xf32>
    %91 = tpu.matmul %89, %90, %cst_34 {dimension_numbers = #tpu.dot_dimension_numbers<[1], [0], [0], [1], [0, 0, 1, 1], [], []>} : vector<16x8xbf16>, vector<8x32xbf16>, vector<16x32xf32> -> vector<16x32xf32>
    %92 = arith.addf %71, %91 : vector<16x32xf32>
    %93 = vector.extract_strided_slice %23 {offsets = [0, 0, 24], sizes = [2, 8, 8], strides = [1, 1, 1]} : vector<2x8x32xbf16> to vector<2x8x8xbf16>
    %94 = vector.extract_strided_slice %25 {offsets = [0, 0, 24], sizes = [2, 8, 8], strides = [1, 1, 1]} : vector<2x8x32xbf16> to vector<2x8x8xbf16>
    %95 = vector.extract_strided_slice %27 {offsets = [0, 0, 24], sizes = [2, 8, 8], strides = [1, 1, 1]} : vector<2x8x32xbf16> to vector<2x8x8xbf16>
    "tpu.trace_start"() <{level = 10 : i32, message = "bqd,bkd->bqk"}> : () -> ()
    %cst_35 = arith.constant dense<0.000000e+00> : vector<2x8x8xf32>
    %96 = tpu.matmul %93, %94, %cst_35 {dimension_numbers = #tpu.dot_dimension_numbers<[2], [2], [1], [1], [0, 0, 0, 1, 1, 1], [0], [0]>} : vector<2x8x8xbf16>, vector<2x8x8xbf16>, vector<2x8x8xf32> -> vector<2x8x8xf32>
    "tpu.trace_stop"() : () -> ()
    %cst_36 = arith.constant dense<0xFF800000> : vector<2x8xf32>
    %97 = vector.multi_reduction <maximumf>, %96, %cst_36 [2] : vector<2x8x8xf32> to vector<2x8xf32>
    %98 = vector.shape_cast %97 : vector<2x8xf32> to vector<2x8x1xf32>
    %99 = vector.broadcast %98 : vector<2x8x1xf32> to vector<2x8x8xf32>
    %100 = arith.subf %96, %99 : vector<2x8x8xf32>
    %101 = math.exp %100 : vector<2x8x8xf32>
    %cst_37 = arith.constant dense<0.000000e+00> : vector<2x8xf32>
    %102 = vector.multi_reduction <add>, %101, %cst_37 [2] : vector<2x8x8xf32> to vector<2x8xf32>
    %103 = vector.shape_cast %102 : vector<2x8xf32> to vector<2x8x1xf32>
    %104 = tpu.reciprocal %103 {approx = true} : vector<2x8x1xf32> -> vector<2x8x1xf32>
    %105 = vector.broadcast %104 : vector<2x8x1xf32> to vector<2x8x8xf32>
    %106 = arith.mulf %101, %105 : vector<2x8x8xf32>
    %107 = arith.truncf %106 : vector<2x8x8xf32> to vector<2x8x8xbf16>
    "tpu.trace_start"() <{level = 10 : i32, message = "bqk,bkd->bqd"}> : () -> ()
    %cst_38 = arith.constant dense<0.000000e+00> : vector<2x8x8xf32>
    %108 = tpu.matmul %107, %95, %cst_38 {dimension_numbers = #tpu.dot_dimension_numbers<[2], [1], [1], [2], [0, 0, 0, 1, 1, 2], [0], [0]>} : vector<2x8x8xbf16>, vector<2x8x8xbf16>, vector<2x8x8xf32> -> vector<2x8x8xf32>
    "tpu.trace_stop"() : () -> ()
    %109 = vector.shape_cast %108 : vector<2x8x8xf32> to vector<16x8xf32>
    %110 = arith.truncf %109 : vector<16x8xf32> to vector<16x8xbf16>
    %111 = vector.extract_strided_slice %28 {offsets = [24, 0], sizes = [8, 32], strides = [1, 1]} : vector<32x32xbf16> to vector<8x32xbf16>
    %cst_39 = arith.constant dense<0.000000e+00> : vector<16x32xf32>
    %112 = tpu.matmul %110, %111, %cst_39 {dimension_numbers = #tpu.dot_dimension_numbers<[1], [0], [0], [1], [0, 0, 1, 1], [], []>} : vector<16x8xbf16>, vector<8x32xbf16>, vector<16x32xf32> -> vector<16x32xf32>
    %113 = arith.addf %92, %112 : vector<16x32xf32>
    %114 = arith.addf %3, %113 : vector<16x32xf32>
    %c0_40 = arith.constant 0 : index
    %c0_41 = arith.constant 0 : index
    %115 = vector.load %arg9[%c0_40, %c0_41] : memref<1x32xf32, #tpu.memory_space<vmem>>, vector<1x32xf32>
    %116 = vector.broadcast %115 : vector<1x32xf32> to vector<16x32xf32>
    %117 = arith.addf %114, %116 : vector<16x32xf32>
    %cst_42 = arith.constant dense<0.000000e+00> : vector<16xf32>
    %118 = vector.multi_reduction <add>, %117, %cst_42 [1] : vector<16x32xf32> to vector<16xf32>
    %119 = vector.shape_cast %118 : vector<16xf32> to vector<16x1xf32>
    %cst_43 = arith.constant 3.200000e+01 : f32
    %120 = vector.broadcast %cst_43 : f32 to vector<16x1xf32>
    %121 = arith.divf %119, %120 : vector<16x1xf32>
    %122 = vector.broadcast %121 : vector<16x1xf32> to vector<16x32xf32>
    %123 = arith.subf %117, %122 : vector<16x32xf32>
    %124 = arith.mulf %123, %123 : vector<16x32xf32>
    %cst_44 = arith.constant dense<0.000000e+00> : vector<16xf32>
    %125 = vector.multi_reduction <add>, %124, %cst_44 [1] : vector<16x32xf32> to vector<16xf32>
    %126 = vector.shape_cast %125 : vector<16xf32> to vector<16x1xf32>
    %cst_45 = arith.constant 3.200000e+01 : f32
    %127 = vector.broadcast %cst_45 : f32 to vector<16x1xf32>
    %128 = arith.divf %126, %127 : vector<16x1xf32>
    %129 = vector.broadcast %121 : vector<16x1xf32> to vector<16x32xf32>
    %130 = arith.subf %117, %129 : vector<16x32xf32>
    %cst_46 = arith.constant 9.99999974E-6 : f32
    %131 = vector.broadcast %cst_46 : f32 to vector<16x1xf32>
    %132 = arith.addf %128, %131 : vector<16x1xf32>
    %133 = math.rsqrt %132 : vector<16x1xf32>
    %134 = vector.broadcast %133 : vector<16x1xf32> to vector<16x32xf32>
    %135 = arith.mulf %130, %134 : vector<16x32xf32>
    %c0_47 = arith.constant 0 : index
    %c0_48 = arith.constant 0 : index
    %136 = vector.load %arg10[%c0_47, %c0_48] : memref<1x32xf32, #tpu.memory_space<vmem>>, vector<1x32xf32>
    %137 = vector.broadcast %136 : vector<1x32xf32> to vector<16x32xf32>
    %138 = arith.mulf %135, %137 : vector<16x32xf32>
    %c0_49 = arith.constant 0 : index
    %c0_50 = arith.constant 0 : index
    %139 = vector.load %arg11[%c0_49, %c0_50] : memref<1x32xf32, #tpu.memory_space<vmem>>, vector<1x32xf32>
    %140 = vector.broadcast %139 : vector<1x32xf32> to vector<16x32xf32>
    %141 = arith.addf %138, %140 : vector<16x32xf32>
    %142 = vector.shape_cast %141 : vector<16x32xf32> to vector<2x8x32xf32>
    %c0_51 = arith.constant 0 : index
    %c0_52 = arith.constant 0 : index
    %c0_53 = arith.constant 0 : index
    %143 = vector.load %arg12[%c0_51, %c0_52, %c0_53] : memref<2x8x32xf32, #tpu.memory_space<vmem>>, vector<2x8x32xf32>
    tpu.vector_store %arg12[%c0_51, %c0_52, %c0_53], %142 {strides = array<i32>} : memref<2x8x32xf32, #tpu.memory_space<vmem>>, vector<2x8x32xf32>,
    return
  }
  func.func @transform_0(%arg0: i32) -> (i32, i32, i32) {
    %c0_i32 = arith.constant 0 : i32
    %c0_i32_0 = arith.constant 0 : i32
    %c0_i32_1 = arith.constant 0 : i32
    return %arg0, %c0_i32, %c0_i32_0 : i32, i32, i32
  }
  func.func @transform_1(%arg0: i32) -> (i32, i32) {
    %c0_i32 = arith.constant 0 : i32
    %c0_i32_0 = arith.constant 0 : i32
    %c0_i32_1 = arith.constant 0 : i32
    return %c0_i32, %c0_i32_0 : i32, i32
  }
  func.func @transform_2(%arg0: i32) -> (i32, i32) {
    %c0_i32 = arith.constant 0 : i32
    %c0_i32_0 = arith.constant 0 : i32
    %c0_i32_1 = arith.constant 0 : i32
    return %c0_i32, %c0_i32_0 : i32, i32
  }
  func.func @transform_3(%arg0: i32) -> (i32, i32) {
    %c0_i32 = arith.constant 0 : i32
    %c0_i32_0 = arith.constant 0 : i32
    %c0_i32_1 = arith.constant 0 : i32
    return %c0_i32, %c0_i32_0 : i32, i32
  }
  func.func @transform_4(%arg0: i32) -> (i32, i32) {
    %c0_i32 = arith.constant 0 : i32
    %c0_i32_0 = arith.constant 0 : i32
    %c0_i32_1 = arith.constant 0 : i32
    return %c0_i32, %c0_i32_0 : i32, i32
  }
  func.func @transform_5(%arg0: i32) -> (i32, i32) {
    %c0_i32 = arith.constant 0 : i32
    %c0_i32_0 = arith.constant 0 : i32
    %c0_i32_1 = arith.constant 0 : i32
    return %c0_i32, %c0_i32_0 : i32, i32
  }
  func.func @transform_6(%arg0: i32) -> (i32, i32) {
    %c0_i32 = arith.constant 0 : i32
    %c0_i32_0 = arith.constant 0 : i32
    %c0_i32_1 = arith.constant 0 : i32
    return %c0_i32, %c0_i32_0 : i32, i32
  }
  func.func @transform_7(%arg0: i32) -> (i32, i32) {
    %c0_i32 = arith.constant 0 : i32
    %c0_i32_0 = arith.constant 0 : i32
    %c0_i32_1 = arith.constant 0 : i32
    return %c0_i32, %c0_i32_0 : i32, i32
  }
  func.func @transform_8(%arg0: i32) -> (i32, i32) {
    %c0_i32 = arith.constant 0 : i32
    %c0_i32_0 = arith.constant 0 : i32
    %c0_i32_1 = arith.constant 0 : i32
    return %c0_i32, %c0_i32_0 : i32, i32
  }
  func.func @transform_9(%arg0: i32) -> (i32, i32) {
    %c0_i32 = arith.constant 0 : i32
    %c0_i32_0 = arith.constant 0 : i32
    %c0_i32_1 = arith.constant 0 : i32
    return %c0_i32, %c0_i32_0 : i32, i32
  }
  func.func @transform_10(%arg0: i32) -> (i32, i32) {
    %c0_i32 = arith.constant 0 : i32
    %c0_i32_0 = arith.constant 0 : i32
    %c0_i32_1 = arith.constant 0 : i32
    return %c0_i32, %c0_i32_0 : i32, i32
  }
  func.func @transform_11(%arg0: i32) -> (i32, i32, i32) {
    %c0_i32 = arith.constant 0 : i32
    %c0_i32_0 = arith.constant 0 : i32
    %c0_i32_1 = arith.constant 0 : i32
    return %arg0, %c0_i32, %c0_i32_0 : i32, i32, i32
  }
}

module attributes {stable_mosaic.version = 11 : i64} {
  func.func @_mha_cross_ln_kernel(%arg0: i32, %arg1: memref<2x8x32xf32, #tpu.memory_space<vmem>>, %arg2: memref<2x8x32xf32, #tpu.memory_space<vmem>>, %arg3: memref<32x32xbf16, #tpu.memory_space<vmem>>, %arg4: memref<1x32xf32, #tpu.memory_space<vmem>>, %arg5: memref<32x32xbf16, #tpu.memory_space<vmem>>, %arg6: memref<1x32xf32, #tpu.memory_space<vmem>>, %arg7: memref<32x32xbf16, #tpu.memory_space<vmem>>, %arg8: memref<1x32xf32, #tpu.memory_space<vmem>>, %arg9: memref<32x32xbf16, #tpu.memory_space<vmem>>, %arg10: memref<1x32xf32, #tpu.memory_space<vmem>>, %arg11: memref<1x32xf32, #tpu.memory_space<vmem>>, %arg12: memref<1x32xf32, #tpu.memory_space<vmem>>, %arg13: memref<2x8x32xf32, #tpu.memory_space<vmem>>) attributes {dimension_semantics = [#tpu.dimension_semantics<parallel>], iteration_bounds = array<i64: 1>, scalar_prefetch = 0 : i64, scratch_operands = 0 : i64, tpu.core_type = #tpu.core_type<tc>, window_params = [{transform_indices = @transform_0, window_bounds = array<i64: 2, 8, 32>}, {transform_indices = @transform_1, window_bounds = array<i64: 2, 8, 32>}, {pipeline_mode = #tpu.pipeline_mode<synchronous>, transform_indices = @transform_2, window_bounds = array<i64: 32, 32>}, {pipeline_mode = #tpu.pipeline_mode<synchronous>, transform_indices = @transform_3, window_bounds = array<i64: 1, 32>}, {pipeline_mode = #tpu.pipeline_mode<synchronous>, transform_indices = @transform_4, window_bounds = array<i64: 32, 32>}, {pipeline_mode = #tpu.pipeline_mode<synchronous>, transform_indices = @transform_5, window_bounds = array<i64: 1, 32>}, {pipeline_mode = #tpu.pipeline_mode<synchronous>, transform_indices = @transform_6, window_bounds = array<i64: 32, 32>}, {pipeline_mode = #tpu.pipeline_mode<synchronous>, transform_indices = @transform_7, window_bounds = array<i64: 1, 32>}, {pipeline_mode = #tpu.pipeline_mode<synchronous>, transform_indices = @transform_8, window_bounds = array<i64: 32, 32>}, {pipeline_mode = #tpu.pipeline_mode<synchronous>, transform_indices = @transform_9, window_bounds = array<i64: 1, 32>}, {pipeline_mode = #tpu.pipeline_mode<synchronous>, transform_indices = @transform_10, window_bounds = array<i64: 1, 32>}, {pipeline_mode = #tpu.pipeline_mode<synchronous>, transform_indices = @transform_11, window_bounds = array<i64: 1, 32>}, {transform_indices = @transform_12, window_bounds = array<i64: 2, 8, 32>}]} {
    %c0 = arith.constant 0 : index
    %c0_0 = arith.constant 0 : index
    %c0_1 = arith.constant 0 : index
    %0 = vector.load %arg1[%c0, %c0_0, %c0_1] : memref<2x8x32xf32, #tpu.memory_space<vmem>>, vector<2x8x32xf32>
    %c0_2 = arith.constant 0 : index
    %c0_3 = arith.constant 0 : index
    %c0_4 = arith.constant 0 : index
    %1 = vector.load %arg2[%c0_2, %c0_3, %c0_4] : memref<2x8x32xf32, #tpu.memory_space<vmem>>, vector<2x8x32xf32>
    %2 = vector.shape_cast %0 : vector<2x8x32xf32> to vector<16x32xf32>
    %3 = arith.truncf %2 : vector<16x32xf32> to vector<16x32xbf16>
    %4 = vector.shape_cast %1 : vector<2x8x32xf32> to vector<16x32xf32>
    %5 = arith.truncf %4 : vector<16x32xf32> to vector<16x32xbf16>
    %c0_5 = arith.constant 0 : index
    %c0_6 = arith.constant 0 : index
    %6 = vector.load %arg3[%c0_5, %c0_6] : memref<32x32xbf16, #tpu.memory_space<vmem>>, vector<32x32xbf16>
    %cst = arith.constant dense<0.000000e+00> : vector<16x32xf32>
    %7 = tpu.matmul %3, %6, %cst {dimension_numbers = #tpu.dot_dimension_numbers<[1], [0], [0], [1], [0, 0, 1, 1], [], []>} : vector<16x32xbf16>, vector<32x32xbf16>, vector<16x32xf32> -> vector<16x32xf32>
    %c0_7 = arith.constant 0 : index
    %c0_8 = arith.constant 0 : index
    %8 = vector.load %arg4[%c0_7, %c0_8] : memref<1x32xf32, #tpu.memory_space<vmem>>, vector<1x32xf32>
    %9 = vector.broadcast %8 : vector<1x32xf32> to vector<16x32xf32>
    %10 = arith.addf %7, %9 : vector<16x32xf32>
    %cst_9 = arith.constant 0.353553385 : f32
    %11 = vector.broadcast %cst_9 : f32 to vector<16x32xf32>
    %12 = arith.mulf %10, %11 : vector<16x32xf32>
    %c0_10 = arith.constant 0 : index
    %c0_11 = arith.constant 0 : index
    %13 = vector.load %arg5[%c0_10, %c0_11] : memref<32x32xbf16, #tpu.memory_space<vmem>>, vector<32x32xbf16>
    %cst_12 = arith.constant dense<0.000000e+00> : vector<16x32xf32>
    %14 = tpu.matmul %3, %13, %cst_12 {dimension_numbers = #tpu.dot_dimension_numbers<[1], [0], [0], [1], [0, 0, 1, 1], [], []>} : vector<16x32xbf16>, vector<32x32xbf16>, vector<16x32xf32> -> vector<16x32xf32>
    %c0_13 = arith.constant 0 : index
    %c0_14 = arith.constant 0 : index
    %15 = vector.load %arg6[%c0_13, %c0_14] : memref<1x32xf32, #tpu.memory_space<vmem>>, vector<1x32xf32>
    %16 = vector.broadcast %15 : vector<1x32xf32> to vector<16x32xf32>
    %17 = arith.addf %14, %16 : vector<16x32xf32>
    %c0_15 = arith.constant 0 : index
    %c0_16 = arith.constant 0 : index
    %18 = vector.load %arg7[%c0_15, %c0_16] : memref<32x32xbf16, #tpu.memory_space<vmem>>, vector<32x32xbf16>
    %cst_17 = arith.constant dense<0.000000e+00> : vector<16x32xf32>
    %19 = tpu.matmul %5, %18, %cst_17 {dimension_numbers = #tpu.dot_dimension_numbers<[1], [0], [0], [1], [0, 0, 1, 1], [], []>} : vector<16x32xbf16>, vector<32x32xbf16>, vector<16x32xf32> -> vector<16x32xf32>
    %c0_18 = arith.constant 0 : index
    %c0_19 = arith.constant 0 : index
    %20 = vector.load %arg8[%c0_18, %c0_19] : memref<1x32xf32, #tpu.memory_space<vmem>>, vector<1x32xf32>
    %21 = vector.broadcast %20 : vector<1x32xf32> to vector<16x32xf32>
    %22 = arith.addf %19, %21 : vector<16x32xf32>
    %23 = vector.shape_cast %12 : vector<16x32xf32> to vector<2x8x32xf32>
    %24 = arith.truncf %23 : vector<2x8x32xf32> to vector<2x8x32xbf16>
    %25 = vector.shape_cast %17 : vector<16x32xf32> to vector<2x8x32xf32>
    %26 = arith.truncf %25 : vector<2x8x32xf32> to vector<2x8x32xbf16>
    %27 = vector.shape_cast %22 : vector<16x32xf32> to vector<2x8x32xf32>
    %28 = arith.truncf %27 : vector<2x8x32xf32> to vector<2x8x32xbf16>
    %c0_20 = arith.constant 0 : index
    %c0_21 = arith.constant 0 : index
    %29 = vector.load %arg9[%c0_20, %c0_21] : memref<32x32xbf16, #tpu.memory_space<vmem>>, vector<32x32xbf16>
    %cst_22 = arith.constant 0.000000e+00 : f32
    %30 = vector.broadcast %cst_22 : f32 to vector<16x32xf32>
    %31 = vector.extract_strided_slice %24 {offsets = [0, 0, 0], sizes = [2, 8, 8], strides = [1, 1, 1]} : vector<2x8x32xbf16> to vector<2x8x8xbf16>
    %32 = vector.extract_strided_slice %26 {offsets = [0, 0, 0], sizes = [2, 8, 8], strides = [1, 1, 1]} : vector<2x8x32xbf16> to vector<2x8x8xbf16>
    %33 = vector.extract_strided_slice %28 {offsets = [0, 0, 0], sizes = [2, 8, 8], strides = [1, 1, 1]} : vector<2x8x32xbf16> to vector<2x8x8xbf16>
    "tpu.trace_start"() <{level = 10 : i32, message = "bqd,bkd->bqk"}> : () -> ()
    %cst_23 = arith.constant dense<0.000000e+00> : vector<2x8x8xf32>
    %34 = tpu.matmul %31, %32, %cst_23 {dimension_numbers = #tpu.dot_dimension_numbers<[2], [2], [1], [1], [0, 0, 0, 1, 1, 1], [0], [0]>} : vector<2x8x8xbf16>, vector<2x8x8xbf16>, vector<2x8x8xf32> -> vector<2x8x8xf32>
    "tpu.trace_stop"() : () -> ()
    %cst_24 = arith.constant dense<0xFF800000> : vector<2x8xf32>
    %35 = vector.multi_reduction <maximumf>, %34, %cst_24 [2] : vector<2x8x8xf32> to vector<2x8xf32>
    %36 = vector.shape_cast %35 : vector<2x8xf32> to vector<2x8x1xf32>
    %37 = vector.broadcast %36 : vector<2x8x1xf32> to vector<2x8x8xf32>
    %38 = arith.subf %34, %37 : vector<2x8x8xf32>
    %39 = math.exp %38 : vector<2x8x8xf32>
    %cst_25 = arith.constant dense<0.000000e+00> : vector<2x8xf32>
    %40 = vector.multi_reduction <add>, %39, %cst_25 [2] : vector<2x8x8xf32> to vector<2x8xf32>
    %41 = vector.shape_cast %40 : vector<2x8xf32> to vector<2x8x1xf32>
    %42 = tpu.reciprocal %41 {approx = true} : vector<2x8x1xf32> -> vector<2x8x1xf32>
    %43 = vector.broadcast %42 : vector<2x8x1xf32> to vector<2x8x8xf32>
    %44 = arith.mulf %39, %43 : vector<2x8x8xf32>
    %45 = arith.truncf %44 : vector<2x8x8xf32> to vector<2x8x8xbf16>
    "tpu.trace_start"() <{level = 10 : i32, message = "bqk,bkd->bqd"}> : () -> ()
    %cst_26 = arith.constant dense<0.000000e+00> : vector<2x8x8xf32>
    %46 = tpu.matmul %45, %33, %cst_26 {dimension_numbers = #tpu.dot_dimension_numbers<[2], [1], [1], [2], [0, 0, 0, 1, 1, 2], [0], [0]>} : vector<2x8x8xbf16>, vector<2x8x8xbf16>, vector<2x8x8xf32> -> vector<2x8x8xf32>
    "tpu.trace_stop"() : () -> ()
    %47 = vector.shape_cast %46 : vector<2x8x8xf32> to vector<16x8xf32>
    %48 = arith.truncf %47 : vector<16x8xf32> to vector<16x8xbf16>
    %49 = vector.extract_strided_slice %29 {offsets = [0, 0], sizes = [8, 32], strides = [1, 1]} : vector<32x32xbf16> to vector<8x32xbf16>
    %cst_27 = arith.constant dense<0.000000e+00> : vector<16x32xf32>
    %50 = tpu.matmul %48, %49, %cst_27 {dimension_numbers = #tpu.dot_dimension_numbers<[1], [0], [0], [1], [0, 0, 1, 1], [], []>} : vector<16x8xbf16>, vector<8x32xbf16>, vector<16x32xf32> -> vector<16x32xf32>
    %51 = arith.addf %30, %50 : vector<16x32xf32>
    %52 = vector.extract_strided_slice %24 {offsets = [0, 0, 8], sizes = [2, 8, 8], strides = [1, 1, 1]} : vector<2x8x32xbf16> to vector<2x8x8xbf16>
    %53 = vector.extract_strided_slice %26 {offsets = [0, 0, 8], sizes = [2, 8, 8], strides = [1, 1, 1]} : vector<2x8x32xbf16> to vector<2x8x8xbf16>
    %54 = vector.extract_strided_slice %28 {offsets = [0, 0, 8], sizes = [2, 8, 8], strides = [1, 1, 1]} : vector<2x8x32xbf16> to vector<2x8x8xbf16>
    "tpu.trace_start"() <{level = 10 : i32, message = "bqd,bkd->bqk"}> : () -> ()
    %cst_28 = arith.constant dense<0.000000e+00> : vector<2x8x8xf32>
    %55 = tpu.matmul %52, %53, %cst_28 {dimension_numbers = #tpu.dot_dimension_numbers<[2], [2], [1], [1], [0, 0, 0, 1, 1, 1], [0], [0]>} : vector<2x8x8xbf16>, vector<2x8x8xbf16>, vector<2x8x8xf32> -> vector<2x8x8xf32>
    "tpu.trace_stop"() : () -> ()
    %cst_29 = arith.constant dense<0xFF800000> : vector<2x8xf32>
    %56 = vector.multi_reduction <maximumf>, %55, %cst_29 [2] : vector<2x8x8xf32> to vector<2x8xf32>
    %57 = vector.shape_cast %56 : vector<2x8xf32> to vector<2x8x1xf32>
    %58 = vector.broadcast %57 : vector<2x8x1xf32> to vector<2x8x8xf32>
    %59 = arith.subf %55, %58 : vector<2x8x8xf32>
    %60 = math.exp %59 : vector<2x8x8xf32>
    %cst_30 = arith.constant dense<0.000000e+00> : vector<2x8xf32>
    %61 = vector.multi_reduction <add>, %60, %cst_30 [2] : vector<2x8x8xf32> to vector<2x8xf32>
    %62 = vector.shape_cast %61 : vector<2x8xf32> to vector<2x8x1xf32>
    %63 = tpu.reciprocal %62 {approx = true} : vector<2x8x1xf32> -> vector<2x8x1xf32>
    %64 = vector.broadcast %63 : vector<2x8x1xf32> to vector<2x8x8xf32>
    %65 = arith.mulf %60, %64 : vector<2x8x8xf32>
    %66 = arith.truncf %65 : vector<2x8x8xf32> to vector<2x8x8xbf16>
    "tpu.trace_start"() <{level = 10 : i32, message = "bqk,bkd->bqd"}> : () -> ()
    %cst_31 = arith.constant dense<0.000000e+00> : vector<2x8x8xf32>
    %67 = tpu.matmul %66, %54, %cst_31 {dimension_numbers = #tpu.dot_dimension_numbers<[2], [1], [1], [2], [0, 0, 0, 1, 1, 2], [0], [0]>} : vector<2x8x8xbf16>, vector<2x8x8xbf16>, vector<2x8x8xf32> -> vector<2x8x8xf32>
    "tpu.trace_stop"() : () -> ()
    %68 = vector.shape_cast %67 : vector<2x8x8xf32> to vector<16x8xf32>
    %69 = arith.truncf %68 : vector<16x8xf32> to vector<16x8xbf16>
    %70 = vector.extract_strided_slice %29 {offsets = [8, 0], sizes = [8, 32], strides = [1, 1]} : vector<32x32xbf16> to vector<8x32xbf16>
    %cst_32 = arith.constant dense<0.000000e+00> : vector<16x32xf32>
    %71 = tpu.matmul %69, %70, %cst_32 {dimension_numbers = #tpu.dot_dimension_numbers<[1], [0], [0], [1], [0, 0, 1, 1], [], []>} : vector<16x8xbf16>, vector<8x32xbf16>, vector<16x32xf32> -> vector<16x32xf32>
    %72 = arith.addf %51, %71 : vector<16x32xf32>
    %73 = vector.extract_strided_slice %24 {offsets = [0, 0, 16], sizes = [2, 8, 8], strides = [1, 1, 1]} : vector<2x8x32xbf16> to vector<2x8x8xbf16>
    %74 = vector.extract_strided_slice %26 {offsets = [0, 0, 16], sizes = [2, 8, 8], strides = [1, 1, 1]} : vector<2x8x32xbf16> to vector<2x8x8xbf16>
    %75 = vector.extract_strided_slice %28 {offsets = [0, 0, 16], sizes = [2, 8, 8], strides = [1, 1, 1]} : vector<2x8x32xbf16> to vector<2x8x8xbf16>
    "tpu.trace_start"() <{level = 10 : i32, message = "bqd,bkd->bqk"}> : () -> ()
    %cst_33 = arith.constant dense<0.000000e+00> : vector<2x8x8xf32>
    %76 = tpu.matmul %73, %74, %cst_33 {dimension_numbers = #tpu.dot_dimension_numbers<[2], [2], [1], [1], [0, 0, 0, 1, 1, 1], [0], [0]>} : vector<2x8x8xbf16>, vector<2x8x8xbf16>, vector<2x8x8xf32> -> vector<2x8x8xf32>
    "tpu.trace_stop"() : () -> ()
    %cst_34 = arith.constant dense<0xFF800000> : vector<2x8xf32>
    %77 = vector.multi_reduction <maximumf>, %76, %cst_34 [2] : vector<2x8x8xf32> to vector<2x8xf32>
    %78 = vector.shape_cast %77 : vector<2x8xf32> to vector<2x8x1xf32>
    %79 = vector.broadcast %78 : vector<2x8x1xf32> to vector<2x8x8xf32>
    %80 = arith.subf %76, %79 : vector<2x8x8xf32>
    %81 = math.exp %80 : vector<2x8x8xf32>
    %cst_35 = arith.constant dense<0.000000e+00> : vector<2x8xf32>
    %82 = vector.multi_reduction <add>, %81, %cst_35 [2] : vector<2x8x8xf32> to vector<2x8xf32>
    %83 = vector.shape_cast %82 : vector<2x8xf32> to vector<2x8x1xf32>
    %84 = tpu.reciprocal %83 {approx = true} : vector<2x8x1xf32> -> vector<2x8x1xf32>
    %85 = vector.broadcast %84 : vector<2x8x1xf32> to vector<2x8x8xf32>
    %86 = arith.mulf %81, %85 : vector<2x8x8xf32>
    %87 = arith.truncf %86 : vector<2x8x8xf32> to vector<2x8x8xbf16>
    "tpu.trace_start"() <{level = 10 : i32, message = "bqk,bkd->bqd"}> : () -> ()
    %cst_36 = arith.constant dense<0.000000e+00> : vector<2x8x8xf32>
    %88 = tpu.matmul %87, %75, %cst_36 {dimension_numbers = #tpu.dot_dimension_numbers<[2], [1], [1], [2], [0, 0, 0, 1, 1, 2], [0], [0]>} : vector<2x8x8xbf16>, vector<2x8x8xbf16>, vector<2x8x8xf32> -> vector<2x8x8xf32>
    "tpu.trace_stop"() : () -> ()
    %89 = vector.shape_cast %88 : vector<2x8x8xf32> to vector<16x8xf32>
    %90 = arith.truncf %89 : vector<16x8xf32> to vector<16x8xbf16>
    %91 = vector.extract_strided_slice %29 {offsets = [16, 0], sizes = [8, 32], strides = [1, 1]} : vector<32x32xbf16> to vector<8x32xbf16>
    %cst_37 = arith.constant dense<0.000000e+00> : vector<16x32xf32>
    %92 = tpu.matmul %90, %91, %cst_37 {dimension_numbers = #tpu.dot_dimension_numbers<[1], [0], [0], [1], [0, 0, 1, 1], [], []>} : vector<16x8xbf16>, vector<8x32xbf16>, vector<16x32xf32> -> vector<16x32xf32>
    %93 = arith.addf %72, %92 : vector<16x32xf32>
    %94 = vector.extract_strided_slice %24 {offsets = [0, 0, 24], sizes = [2, 8, 8], strides = [1, 1, 1]} : vector<2x8x32xbf16> to vector<2x8x8xbf16>
    %95 = vector.extract_strided_slice %26 {offsets = [0, 0, 24], sizes = [2, 8, 8], strides = [1, 1, 1]} : vector<2x8x32xbf16> to vector<2x8x8xbf16>
    %96 = vector.extract_strided_slice %28 {offsets = [0, 0, 24], sizes = [2, 8, 8], strides = [1, 1, 1]} : vector<2x8x32xbf16> to vector<2x8x8xbf16>
    "tpu.trace_start"() <{level = 10 : i32, message = "bqd,bkd->bqk"}> : () -> ()
    %cst_38 = arith.constant dense<0.000000e+00> : vector<2x8x8xf32>
    %97 = tpu.matmul %94, %95, %cst_38 {dimension_numbers = #tpu.dot_dimension_numbers<[2], [2], [1], [1], [0, 0, 0, 1, 1, 1], [0], [0]>} : vector<2x8x8xbf16>, vector<2x8x8xbf16>, vector<2x8x8xf32> -> vector<2x8x8xf32>
    "tpu.trace_stop"() : () -> ()
    %cst_39 = arith.constant dense<0xFF800000> : vector<2x8xf32>
    %98 = vector.multi_reduction <maximumf>, %97, %cst_39 [2] : vector<2x8x8xf32> to vector<2x8xf32>
    %99 = vector.shape_cast %98 : vector<2x8xf32> to vector<2x8x1xf32>
    %100 = vector.broadcast %99 : vector<2x8x1xf32> to vector<2x8x8xf32>
    %101 = arith.subf %97, %100 : vector<2x8x8xf32>
    %102 = math.exp %101 : vector<2x8x8xf32>
    %cst_40 = arith.constant dense<0.000000e+00> : vector<2x8xf32>
    %103 = vector.multi_reduction <add>, %102, %cst_40 [2] : vector<2x8x8xf32> to vector<2x8xf32>
    %104 = vector.shape_cast %103 : vector<2x8xf32> to vector<2x8x1xf32>
    %105 = tpu.reciprocal %104 {approx = true} : vector<2x8x1xf32> -> vector<2x8x1xf32>
    %106 = vector.broadcast %105 : vector<2x8x1xf32> to vector<2x8x8xf32>
    %107 = arith.mulf %102, %106 : vector<2x8x8xf32>
    %108 = arith.truncf %107 : vector<2x8x8xf32> to vector<2x8x8xbf16>
    "tpu.trace_start"() <{level = 10 : i32, message = "bqk,bkd->bqd"}> : () -> ()
    %cst_41 = arith.constant dense<0.000000e+00> : vector<2x8x8xf32>
    %109 = tpu.matmul %108, %96, %cst_41 {dimension_numbers = #tpu.dot_dimension_numbers<[2], [1], [1], [2], [0, 0, 0, 1, 1, 2], [0], [0]>} : vector<2x8x8xbf16>, vector<2x8x8xbf16>, vector<2x8x8xf32> -> vector<2x8x8xf32>
    "tpu.trace_stop"() : () -> ()
    %110 = vector.shape_cast %109 : vector<2x8x8xf32> to vector<16x8xf32>
    %111 = arith.truncf %110 : vector<16x8xf32> to vector<16x8xbf16>
    %112 = vector.extract_strided_slice %29 {offsets = [24, 0], sizes = [8, 32], strides = [1, 1]} : vector<32x32xbf16> to vector<8x32xbf16>
    %cst_42 = arith.constant dense<0.000000e+00> : vector<16x32xf32>
    %113 = tpu.matmul %111, %112, %cst_42 {dimension_numbers = #tpu.dot_dimension_numbers<[1], [0], [0], [1], [0, 0, 1, 1], [], []>} : vector<16x8xbf16>, vector<8x32xbf16>, vector<16x32xf32> -> vector<16x32xf32>
    %114 = arith.addf %93, %113 : vector<16x32xf32>
    %115 = arith.addf %4, %114 : vector<16x32xf32>
    %c0_43 = arith.constant 0 : index
    %c0_44 = arith.constant 0 : index
    %116 = vector.load %arg10[%c0_43, %c0_44] : memref<1x32xf32, #tpu.memory_space<vmem>>, vector<1x32xf32>
    %117 = vector.broadcast %116 : vector<1x32xf32> to vector<16x32xf32>
    %118 = arith.addf %115, %117 : vector<16x32xf32>
    %cst_45 = arith.constant dense<0.000000e+00> : vector<16xf32>
    %119 = vector.multi_reduction <add>, %118, %cst_45 [1] : vector<16x32xf32> to vector<16xf32>
    %120 = vector.shape_cast %119 : vector<16xf32> to vector<16x1xf32>
    %cst_46 = arith.constant 3.200000e+01 : f32
    %121 = vector.broadcast %cst_46 : f32 to vector<16x1xf32>
    %122 = arith.divf %120, %121 : vector<16x1xf32>
    %123 = vector.broadcast %122 : vector<16x1xf32> to vector<16x32xf32>
    %124 = arith.subf %118, %123 : vector<16x32xf32>
    %125 = arith.mulf %124, %124 : vector<16x32xf32>
    %cst_47 = arith.constant dense<0.000000e+00> : vector<16xf32>
    %126 = vector.multi_reduction <add>, %125, %cst_47 [1] : vector<16x32xf32> to vector<16xf32>
    %127 = vector.shape_cast %126 : vector<16xf32> to vector<16x1xf32>
    %cst_48 = arith.constant 3.200000e+01 : f32
    %128 = vector.broadcast %cst_48 : f32 to vector<16x1xf32>
    %129 = arith.divf %127, %128 : vector<16x1xf32>
    %130 = vector.broadcast %122 : vector<16x1xf32> to vector<16x32xf32>
    %131 = arith.subf %118, %130 : vector<16x32xf32>
    %cst_49 = arith.constant 9.99999974E-6 : f32
    %132 = vector.broadcast %cst_49 : f32 to vector<16x1xf32>
    %133 = arith.addf %129, %132 : vector<16x1xf32>
    %134 = math.rsqrt %133 : vector<16x1xf32>
    %135 = vector.broadcast %134 : vector<16x1xf32> to vector<16x32xf32>
    %136 = arith.mulf %131, %135 : vector<16x32xf32>
    %c0_50 = arith.constant 0 : index
    %c0_51 = arith.constant 0 : index
    %137 = vector.load %arg11[%c0_50, %c0_51] : memref<1x32xf32, #tpu.memory_space<vmem>>, vector<1x32xf32>
    %138 = vector.broadcast %137 : vector<1x32xf32> to vector<16x32xf32>
    %139 = arith.mulf %136, %138 : vector<16x32xf32>
    %c0_52 = arith.constant 0 : index
    %c0_53 = arith.constant 0 : index
    %140 = vector.load %arg12[%c0_52, %c0_53] : memref<1x32xf32, #tpu.memory_space<vmem>>, vector<1x32xf32>
    %141 = vector.broadcast %140 : vector<1x32xf32> to vector<16x32xf32>
    %142 = arith.addf %139, %141 : vector<16x32xf32>
    %143 = vector.shape_cast %142 : vector<16x32xf32> to vector<2x8x32xf32>
    %c0_54 = arith.constant 0 : index
    %c0_55 = arith.constant 0 : index
    %c0_56 = arith.constant 0 : index
    %144 = vector.load %arg13[%c0_54, %c0_55, %c0_56] : memref<2x8x32xf32, #tpu.memory_space<vmem>>, vector<2x8x32xf32>
    tpu.vector_store %arg13[%c0_54, %c0_55, %c0_56], %143 {strides = array<i32>} : memref<2x8x32xf32, #tpu.memory_space<vmem>>, vector<2x8x32xf32>,
    return
  }
  func.func @transform_0(%arg0: i32) -> (i32, i32, i32) {
    %c0_i32 = arith.constant 0 : i32
    %c0_i32_0 = arith.constant 0 : i32
    %c0_i32_1 = arith.constant 0 : i32
    return %arg0, %c0_i32, %c0_i32_0 : i32, i32, i32
  }
  func.func @transform_1(%arg0: i32) -> (i32, i32, i32) {
    %c0_i32 = arith.constant 0 : i32
    %c0_i32_0 = arith.constant 0 : i32
    %c0_i32_1 = arith.constant 0 : i32
    return %arg0, %c0_i32, %c0_i32_0 : i32, i32, i32
  }
  func.func @transform_2(%arg0: i32) -> (i32, i32) {
    %c0_i32 = arith.constant 0 : i32
    %c0_i32_0 = arith.constant 0 : i32
    %c0_i32_1 = arith.constant 0 : i32
    return %c0_i32, %c0_i32_0 : i32, i32
  }
  func.func @transform_3(%arg0: i32) -> (i32, i32) {
    %c0_i32 = arith.constant 0 : i32
    %c0_i32_0 = arith.constant 0 : i32
    %c0_i32_1 = arith.constant 0 : i32
    return %c0_i32, %c0_i32_0 : i32, i32
  }
  func.func @transform_4(%arg0: i32) -> (i32, i32) {
    %c0_i32 = arith.constant 0 : i32
    %c0_i32_0 = arith.constant 0 : i32
    %c0_i32_1 = arith.constant 0 : i32
    return %c0_i32, %c0_i32_0 : i32, i32
  }
  func.func @transform_5(%arg0: i32) -> (i32, i32) {
    %c0_i32 = arith.constant 0 : i32
    %c0_i32_0 = arith.constant 0 : i32
    %c0_i32_1 = arith.constant 0 : i32
    return %c0_i32, %c0_i32_0 : i32, i32
  }
  func.func @transform_6(%arg0: i32) -> (i32, i32) {
    %c0_i32 = arith.constant 0 : i32
    %c0_i32_0 = arith.constant 0 : i32
    %c0_i32_1 = arith.constant 0 : i32
    return %c0_i32, %c0_i32_0 : i32, i32
  }
  func.func @transform_7(%arg0: i32) -> (i32, i32) {
    %c0_i32 = arith.constant 0 : i32
    %c0_i32_0 = arith.constant 0 : i32
    %c0_i32_1 = arith.constant 0 : i32
    return %c0_i32, %c0_i32_0 : i32, i32
  }
  func.func @transform_8(%arg0: i32) -> (i32, i32) {
    %c0_i32 = arith.constant 0 : i32
    %c0_i32_0 = arith.constant 0 : i32
    %c0_i32_1 = arith.constant 0 : i32
    return %c0_i32, %c0_i32_0 : i32, i32
  }
  func.func @transform_9(%arg0: i32) -> (i32, i32) {
    %c0_i32 = arith.constant 0 : i32
    %c0_i32_0 = arith.constant 0 : i32
    %c0_i32_1 = arith.constant 0 : i32
    return %c0_i32, %c0_i32_0 : i32, i32
  }
  func.func @transform_10(%arg0: i32) -> (i32, i32) {
    %c0_i32 = arith.constant 0 : i32
    %c0_i32_0 = arith.constant 0 : i32
    %c0_i32_1 = arith.constant 0 : i32
    return %c0_i32, %c0_i32_0 : i32, i32
  }
  func.func @transform_11(%arg0: i32) -> (i32, i32) {
    %c0_i32 = arith.constant 0 : i32
    %c0_i32_0 = arith.constant 0 : i32
    %c0_i32_1 = arith.constant 0 : i32
    return %c0_i32, %c0_i32_0 : i32, i32
  }
  func.func @transform_12(%arg0: i32) -> (i32, i32, i32) {
    %c0_i32 = arith.constant 0 : i32
    %c0_i32_0 = arith.constant 0 : i32
    %c0_i32_1 = arith.constant 0 : i32
    return %arg0, %c0_i32, %c0_i32_0 : i32, i32, i32
  }
}

module attributes {stable_mosaic.version = 11 : i64} {
  func.func @_ffn_ln_kernel(%arg0: i32, %arg1: memref<16x32xf32, #tpu.memory_space<vmem>>, %arg2: memref<32x64xbf16, #tpu.memory_space<vmem>>, %arg3: memref<1x64xf32, #tpu.memory_space<vmem>>, %arg4: memref<64x32xbf16, #tpu.memory_space<vmem>>, %arg5: memref<1x32xf32, #tpu.memory_space<vmem>>, %arg6: memref<1x32xf32, #tpu.memory_space<vmem>>, %arg7: memref<1x32xf32, #tpu.memory_space<vmem>>, %arg8: memref<16x32xf32, #tpu.memory_space<vmem>>) attributes {dimension_semantics = [#tpu.dimension_semantics<parallel>], iteration_bounds = array<i64: 1>, scalar_prefetch = 0 : i64, scratch_operands = 0 : i64, tpu.core_type = #tpu.core_type<tc>, window_params = [{transform_indices = @transform_0, window_bounds = array<i64: 16, 32>}, {pipeline_mode = #tpu.pipeline_mode<synchronous>, transform_indices = @transform_1, window_bounds = array<i64: 32, 64>}, {pipeline_mode = #tpu.pipeline_mode<synchronous>, transform_indices = @transform_2, window_bounds = array<i64: 1, 64>}, {pipeline_mode = #tpu.pipeline_mode<synchronous>, transform_indices = @transform_3, window_bounds = array<i64: 64, 32>}, {pipeline_mode = #tpu.pipeline_mode<synchronous>, transform_indices = @transform_4, window_bounds = array<i64: 1, 32>}, {pipeline_mode = #tpu.pipeline_mode<synchronous>, transform_indices = @transform_5, window_bounds = array<i64: 1, 32>}, {pipeline_mode = #tpu.pipeline_mode<synchronous>, transform_indices = @transform_6, window_bounds = array<i64: 1, 32>}, {transform_indices = @transform_7, window_bounds = array<i64: 16, 32>}]} {
    %c0 = arith.constant 0 : index
    %c0_0 = arith.constant 0 : index
    %0 = vector.load %arg1[%c0, %c0_0] : memref<16x32xf32, #tpu.memory_space<vmem>>, vector<16x32xf32>
    %1 = arith.truncf %0 : vector<16x32xf32> to vector<16x32xbf16>
    %c0_1 = arith.constant 0 : index
    %c0_2 = arith.constant 0 : index
    %2 = vector.load %arg2[%c0_1, %c0_2] : memref<32x64xbf16, #tpu.memory_space<vmem>>, vector<32x64xbf16>
    %cst = arith.constant dense<0.000000e+00> : vector<16x64xf32>
    %3 = tpu.matmul %1, %2, %cst {dimension_numbers = #tpu.dot_dimension_numbers<[1], [0], [0], [1], [0, 0, 1, 1], [], []>} : vector<16x32xbf16>, vector<32x64xbf16>, vector<16x64xf32> -> vector<16x64xf32>
    %c0_3 = arith.constant 0 : index
    %c0_4 = arith.constant 0 : index
    %4 = vector.load %arg3[%c0_3, %c0_4] : memref<1x64xf32, #tpu.memory_space<vmem>>, vector<1x64xf32>
    %5 = vector.broadcast %4 : vector<1x64xf32> to vector<16x64xf32>
    %6 = arith.addf %3, %5 : vector<16x64xf32>
    %cst_5 = arith.constant 0.000000e+00 : f32
    %7 = vector.broadcast %cst_5 : f32 to vector<16x64xf32>
    %8 = arith.maximumf %6, %7 : vector<16x64xf32>
    %9 = arith.truncf %8 : vector<16x64xf32> to vector<16x64xbf16>
    %c0_6 = arith.constant 0 : index
    %c0_7 = arith.constant 0 : index
    %10 = vector.load %arg4[%c0_6, %c0_7] : memref<64x32xbf16, #tpu.memory_space<vmem>>, vector<64x32xbf16>
    %cst_8 = arith.constant dense<0.000000e+00> : vector<16x32xf32>
    %11 = tpu.matmul %9, %10, %cst_8 {dimension_numbers = #tpu.dot_dimension_numbers<[1], [0], [0], [1], [0, 0, 1, 1], [], []>} : vector<16x64xbf16>, vector<64x32xbf16>, vector<16x32xf32> -> vector<16x32xf32>
    %c0_9 = arith.constant 0 : index
    %c0_10 = arith.constant 0 : index
    %12 = vector.load %arg5[%c0_9, %c0_10] : memref<1x32xf32, #tpu.memory_space<vmem>>, vector<1x32xf32>
    %13 = vector.broadcast %12 : vector<1x32xf32> to vector<16x32xf32>
    %14 = arith.addf %11, %13 : vector<16x32xf32>
    %15 = arith.addf %0, %14 : vector<16x32xf32>
    %cst_11 = arith.constant dense<0.000000e+00> : vector<16xf32>
    %16 = vector.multi_reduction <add>, %15, %cst_11 [1] : vector<16x32xf32> to vector<16xf32>
    %17 = vector.shape_cast %16 : vector<16xf32> to vector<16x1xf32>
    %cst_12 = arith.constant 3.200000e+01 : f32
    %18 = vector.broadcast %cst_12 : f32 to vector<16x1xf32>
    %19 = arith.divf %17, %18 : vector<16x1xf32>
    %20 = vector.broadcast %19 : vector<16x1xf32> to vector<16x32xf32>
    %21 = arith.subf %15, %20 : vector<16x32xf32>
    %22 = arith.mulf %21, %21 : vector<16x32xf32>
    %cst_13 = arith.constant dense<0.000000e+00> : vector<16xf32>
    %23 = vector.multi_reduction <add>, %22, %cst_13 [1] : vector<16x32xf32> to vector<16xf32>
    %24 = vector.shape_cast %23 : vector<16xf32> to vector<16x1xf32>
    %cst_14 = arith.constant 3.200000e+01 : f32
    %25 = vector.broadcast %cst_14 : f32 to vector<16x1xf32>
    %26 = arith.divf %24, %25 : vector<16x1xf32>
    %27 = vector.broadcast %19 : vector<16x1xf32> to vector<16x32xf32>
    %28 = arith.subf %15, %27 : vector<16x32xf32>
    %cst_15 = arith.constant 9.99999974E-6 : f32
    %29 = vector.broadcast %cst_15 : f32 to vector<16x1xf32>
    %30 = arith.addf %26, %29 : vector<16x1xf32>
    %31 = math.rsqrt %30 : vector<16x1xf32>
    %32 = vector.broadcast %31 : vector<16x1xf32> to vector<16x32xf32>
    %33 = arith.mulf %28, %32 : vector<16x32xf32>
    %c0_16 = arith.constant 0 : index
    %c0_17 = arith.constant 0 : index
    %34 = vector.load %arg6[%c0_16, %c0_17] : memref<1x32xf32, #tpu.memory_space<vmem>>, vector<1x32xf32>
    %35 = vector.broadcast %34 : vector<1x32xf32> to vector<16x32xf32>
    %36 = arith.mulf %33, %35 : vector<16x32xf32>
    %c0_18 = arith.constant 0 : index
    %c0_19 = arith.constant 0 : index
    %37 = vector.load %arg7[%c0_18, %c0_19] : memref<1x32xf32, #tpu.memory_space<vmem>>, vector<1x32xf32>
    %38 = vector.broadcast %37 : vector<1x32xf32> to vector<16x32xf32>
    %39 = arith.addf %36, %38 : vector<16x32xf32>
    %c0_20 = arith.constant 0 : index
    %c0_21 = arith.constant 0 : index
    %40 = vector.load %arg8[%c0_20, %c0_21] : memref<16x32xf32, #tpu.memory_space<vmem>>, vector<16x32xf32>
    tpu.vector_store %arg8[%c0_20, %c0_21], %39 {strides = array<i32>} : memref<16x32xf32, #tpu.memory_space<vmem>>, vector<16x32xf32>,
    return
  }
  func.func @transform_0(%arg0: i32) -> (i32, i32) {
    %c0_i32 = arith.constant 0 : i32
    %c0_i32_0 = arith.constant 0 : i32
    return %arg0, %c0_i32 : i32, i32
  }
  func.func @transform_1(%arg0: i32) -> (i32, i32) {
    %c0_i32 = arith.constant 0 : i32
    %c0_i32_0 = arith.constant 0 : i32
    %c0_i32_1 = arith.constant 0 : i32
    return %c0_i32, %c0_i32_0 : i32, i32
  }
  func.func @transform_2(%arg0: i32) -> (i32, i32) {
    %c0_i32 = arith.constant 0 : i32
    %c0_i32_0 = arith.constant 0 : i32
    %c0_i32_1 = arith.constant 0 : i32
    return %c0_i32, %c0_i32_0 : i32, i32
  }
  func.func @transform_3(%arg0: i32) -> (i32, i32) {
    %c0_i32 = arith.constant 0 : i32
    %c0_i32_0 = arith.constant 0 : i32
    %c0_i32_1 = arith.constant 0 : i32
    return %c0_i32, %c0_i32_0 : i32, i32
  }
  func.func @transform_4(%arg0: i32) -> (i32, i32) {
    %c0_i32 = arith.constant 0 : i32
    %c0_i32_0 = arith.constant 0 : i32
    %c0_i32_1 = arith.constant 0 : i32
    return %c0_i32, %c0_i32_0 : i32, i32
  }
  func.func @transform_5(%arg0: i32) -> (i32, i32) {
    %c0_i32 = arith.constant 0 : i32
    %c0_i32_0 = arith.constant 0 : i32
    %c0_i32_1 = arith.constant 0 : i32
    return %c0_i32, %c0_i32_0 : i32, i32
  }
  func.func @transform_6(%arg0: i32) -> (i32, i32) {
    %c0_i32 = arith.constant 0 : i32
    %c0_i32_0 = arith.constant 0 : i32
    %c0_i32_1 = arith.constant 0 : i32
    return %c0_i32, %c0_i32_0 : i32, i32
  }
  func.func @transform_7(%arg0: i32) -> (i32, i32) {
    %c0_i32 = arith.constant 0 : i32
    %c0_i32_0 = arith.constant 0 : i32
    return %arg0, %c0_i32 : i32, i32
  }
}

module attributes {stable_mosaic.version = 11 : i64} {
  func.func @_linear_softmax_kernel(%arg0: i32, %arg1: memref<16x32xf32, #tpu.memory_space<vmem>>, %arg2: memref<32x32xbf16, #tpu.memory_space<vmem>>, %arg3: memref<1x32xf32, #tpu.memory_space<vmem>>, %arg4: memref<16x32xf32, #tpu.memory_space<vmem>>) attributes {dimension_semantics = [#tpu.dimension_semantics<parallel>], iteration_bounds = array<i64: 1>, scalar_prefetch = 0 : i64, scratch_operands = 0 : i64, tpu.core_type = #tpu.core_type<tc>, window_params = [{transform_indices = @transform_0, window_bounds = array<i64: 16, 32>}, {pipeline_mode = #tpu.pipeline_mode<synchronous>, transform_indices = @transform_1, window_bounds = array<i64: 32, 32>}, {pipeline_mode = #tpu.pipeline_mode<synchronous>, transform_indices = @transform_2, window_bounds = array<i64: 1, 32>}, {transform_indices = @transform_3, window_bounds = array<i64: 16, 32>}]} {
    %c0 = arith.constant 0 : index
    %c0_0 = arith.constant 0 : index
    %0 = vector.load %arg1[%c0, %c0_0] : memref<16x32xf32, #tpu.memory_space<vmem>>, vector<16x32xf32>
    %1 = arith.truncf %0 : vector<16x32xf32> to vector<16x32xbf16>
    %c0_1 = arith.constant 0 : index
    %c0_2 = arith.constant 0 : index
    %2 = vector.load %arg2[%c0_1, %c0_2] : memref<32x32xbf16, #tpu.memory_space<vmem>>, vector<32x32xbf16>
    %cst = arith.constant dense<0.000000e+00> : vector<16x32xf32>
    %3 = tpu.matmul %1, %2, %cst {dimension_numbers = #tpu.dot_dimension_numbers<[1], [0], [0], [1], [0, 0, 1, 1], [], []>} : vector<16x32xbf16>, vector<32x32xbf16>, vector<16x32xf32> -> vector<16x32xf32>
    %c0_3 = arith.constant 0 : index
    %c0_4 = arith.constant 0 : index
    %4 = vector.load %arg3[%c0_3, %c0_4] : memref<1x32xf32, #tpu.memory_space<vmem>>, vector<1x32xf32>
    %5 = vector.broadcast %4 : vector<1x32xf32> to vector<16x32xf32>
    %6 = arith.addf %3, %5 : vector<16x32xf32>
    %cst_5 = arith.constant dense<0xFF800000> : vector<16xf32>
    %7 = vector.multi_reduction <maximumf>, %6, %cst_5 [1] : vector<16x32xf32> to vector<16xf32>
    %8 = vector.shape_cast %7 : vector<16xf32> to vector<16x1xf32>
    %9 = vector.broadcast %8 : vector<16x1xf32> to vector<16x32xf32>
    %10 = arith.subf %6, %9 : vector<16x32xf32>
    %11 = math.exp %10 : vector<16x32xf32>
    %cst_6 = arith.constant dense<0.000000e+00> : vector<16xf32>
    %12 = vector.multi_reduction <add>, %11, %cst_6 [1] : vector<16x32xf32> to vector<16xf32>
    %13 = vector.shape_cast %12 : vector<16xf32> to vector<16x1xf32>
    %14 = tpu.reciprocal %13 {approx = true} : vector<16x1xf32> -> vector<16x1xf32>
    %15 = vector.broadcast %14 : vector<16x1xf32> to vector<16x32xf32>
    %16 = arith.mulf %11, %15 : vector<16x32xf32>
    %c0_7 = arith.constant 0 : index
    %c0_8 = arith.constant 0 : index
    %17 = vector.load %arg4[%c0_7, %c0_8] : memref<16x32xf32, #tpu.memory_space<vmem>>, vector<16x32xf32>
    tpu.vector_store %arg4[%c0_7, %c0_8], %16 {strides = array<i32>} : memref<16x32xf32, #tpu.memory_space<vmem>>, vector<16x32xf32>,
    return
  }
  func.func @transform_0(%arg0: i32) -> (i32, i32) {
    %c0_i32 = arith.constant 0 : i32
    %c0_i32_0 = arith.constant 0 : i32
    return %arg0, %c0_i32 : i32, i32
  }
  func.func @transform_1(%arg0: i32) -> (i32, i32) {
    %c0_i32 = arith.constant 0 : i32
    %c0_i32_0 = arith.constant 0 : i32
    %c0_i32_1 = arith.constant 0 : i32
    return %c0_i32, %c0_i32_0 : i32, i32
  }
  func.func @transform_2(%arg0: i32) -> (i32, i32) {
    %c0_i32 = arith.constant 0 : i32
    %c0_i32_0 = arith.constant 0 : i32
    %c0_i32_1 = arith.constant 0 : i32
    return %c0_i32, %c0_i32_0 : i32, i32
  }
  func.func @transform_3(%arg0: i32) -> (i32, i32) {
    %c0_i32 = arith.constant 0 : i32
    %c0_i32_0 = arith.constant 0 : i32
    return %arg0, %c0_i32 : i32, i32
  }
}

</mosaic_0001>

<llo_original>
// kernel: transformer_forward.21
$region0: #{transformer_forward.21}
  #allocation0 [shape = 'u32[]', space=smem, size = 0x4, offset = 0x4, fixed_abs, tag = 'smem constant byte address 0x4 - core index']
  #allocation1 [shape = 'u32[144,128]{1,0:T(1,128)}', space=vmem, size = 0x12000, scoped, tag = 'internal scratch']
  %s0 = inlined_call_operand.vmem [shape: f32[16,32], index: 0, kind: input, shape index: {}]
  %s1 = inlined_call_operand.vmem [shape: bf16[32,32], index: 1, kind: input, shape index: {}]
  %s2 = inlined_call_operand.vmem [shape: f32[1,32], index: 2, kind: input, shape index: {}]
  %s3 = inlined_call_operand.hbm [shape: f32[16,32], index: 3, kind: output, shape index: {}]
  %s4 = sld [smem:[#allocation0]]
  $region22: #{transformer_forward.21} parent=0
    _
  %s6 = ssub.s32 1, %s4
  %s7 = scalar_select 0, %s6, %s4
  $region1: #{transformer_forward.21} parent=0
    #allocation2 [shape = 'u8[8192]{0}', space=vmem, size = 0x2000, scoped, tag = 'output window, operand 0, single buffered']
    #allocation3 [shape = 's32[1]{0}', space=sflag, size = 0x4, scoped, tag = 'scoped memory for transformer_forward.21']
    %8 = vsyncpa [#allocation3], 0
    // Predicated region
    $region2: #{transformer_forward.21} parent=1 // pred_check
      _
    $region3: #{transformer_forward.21} parent=1 // pred_check_branch
      %10 = sbr.rel (0) target = $region5
    $region4: #{transformer_forward.21} parent=1 // pred_region
      _
    $region5: #{transformer_forward.21} parent=1 // pred_fallthru
      _
    // Predicated region
    $region6: #{transformer_forward.21} parent=1 // pred_check
      _
    $region7: #{transformer_forward.21} parent=1 // pred_check_branch
      %12 = sbr.rel (0) target = $region9
    $region8: #{transformer_forward.21} parent=1 // pred_region
      _
    $region9: #{transformer_forward.21} parent=1 // pred_fallthru
      _
    // Predicated region
    $region10: #{transformer_forward.21} parent=1 // pred_check
      _
    $region11: #{transformer_forward.21} parent=1 // pred_check_branch
      %14 = sbr.rel (0) target = $region13
    $region12: #{transformer_forward.21} parent=1 // pred_region
      _
    $region13: #{transformer_forward.21} parent=1 // pred_fallthru
      _
    %v16 = vld [vmem:[%s0] sm:$0xff]
    %v17 = vld [vmem:[%s0 + $0x8] sm:$0xff]
    %v18 = vpack.c.bf16 %v17, %v16
    %v19 = vld [vmem:[%s1] sm:$0xf]
    %v20 = vld [vmem:[%s1 + $0x4] sm:$0xf]
    %v21 = vld [vmem:[%s1 + $0x8] sm:$0xf]
    %v22 = vld [vmem:[%s1 + $0xc] sm:$0xf]
    %v23 = vld [vmem:[%s2] sm:$0x1]
    %v25 = vlaneseq
    %v26 = vshrl.u32 %v25, 7
    %v27 = vsub.s32 0, %v26
    %v28 = vrot.slane %v23, %v27
    %v34 = vunpack.c.l.b16 %v19
    %v35 = vunpack.c.l.b16 %v20
    %v36 = vunpack.c.l.b16 %v21
    %v37 = vunpack.c.l.b16 %v22
    %v38 = vpack.c.b16 %v35, %v34
    %v39 = vpack.c.b16 %v37, %v36
    %vm42 = vcmask 261120
    %v44 = vsel %vm42, %v18, 0
    %46 = vmatprep.subr.bf16.mxu0 0
    %47 = vmatpush1.bf16.msra.mxu0 0
    %48 = vmatprep.subr.bf16.mxu0 0
    %49 = vmatpush1.bf16.msra.mxu0 0
    %50 = vmatprep.subr.bf16.mxu0 0
    %51 = vmatpush1.bf16.msra.mxu0 0
    %52 = vmatprep.subr.bf16.mxu0 0
    %53 = vmatpush1.bf16.msra.mxu0 0
    %54 = vmatprep.subr.bf16.mxu0 0
    %55 = vmatpush1.bf16.msra.mxu0 0
    %56 = vmatprep.subr.bf16.mxu0 0
    %57 = vmatpush1.bf16.msra.mxu0 0
    %58 = vmatprep.subr.bf16.mxu0 0
    %59 = vmatpush1.bf16.msra.mxu0 %v39
    %60 = vmatprep.subr.bf16.mxu0 0
    %61 = vmatpush1.bf16.msra.mxu0 %v38
    %62 = vmatprep.subr.bf16.mxu0 0
    %63 = vmatpush2.bf16.msra.mxu0 0
    %64 = vmatprep.subr.bf16.mxu0 0
    %65 = vmatpush2.bf16.msra.mxu0 0
    %66 = vmatprep.subr.bf16.mxu0 0
    %67 = vmatpush2.bf16.msra.mxu0 0
    %68 = vmatprep.subr.bf16.mxu0 0
    %69 = vmatpush2.bf16.msra.mxu0 0
    %70 = vmatprep.subr.bf16.mxu0 0
    %71 = vmatpush2.bf16.msra.mxu0 0
    %72 = vmatprep.subr.bf16.mxu0 0
    %73 = vmatpush2.bf16.msra.mxu0 0
    %74 = vmatprep.subr.bf16.mxu0 0
    %75 = vmatpush2.bf16.msra.mxu0 0
    %76 = vmatprep.subr.bf16.mxu0 0
    %77 = vmatpush2.bf16.msra.mxu0 0
    %78 = vmatprep.mubr.bf16.mxu0 0
    %79 = vmatmul.mubr.bf16.gmra.mxu0 %v44
    %v80 = vpop.f32.mrf.mxu0
    %v81 = vadd.f32 %v28, %v80
    %v82 = vpop.f32.mrf.mxu0
    %v83 = vpop.f32.mrf.mxu0
    %v84 = vadd.f32 %v28, %v83
    %v85 = vpop.f32.mrf.mxu0
    %86 = vdwg.mxu0
    %v87 = vsel %vm42, %v81, -inf
    %88 = vmax.xlane.f32.xlu0 %v87
    %v89 = vpop.xlane.xlu0 %88
    %v90 = vsel %vm42, %v84, -inf
    %91 = vmax.xlane.f32.xlu0 %v90
    %v92 = vpop.xlane.xlu0 %91
    %v93 = vsub.f32 %v81, %v89
    %v94 = vsub.f32 %v84, %v92
    %v95 = vmul.f32 %v93, 1.442695
    %v96 = vpow.pop %v95
    %v97 = vmul.f32 %v94, 1.442695
    %v98 = vpow.pop %v97
    %v99 = vsel %vm42, %v96, 0.0
    %100 = vadd.xlane.f32.xlu0 %v99
    %v101 = vpop.xlane.xlu0 %100
    %v102 = vsel %vm42, %v98, 0.0
    %103 = vadd.xlane.f32.xlu0 %v102
    %v104 = vpop.xlane.xlu0 %103
    %v105 = vrcp.pop %v101
    %v106 = vrcp.pop %v104
    %v107 = vmul.f32 %v96, %v105
    %v108 = vmul.f32 %v98, %v106
    %109 = vst.msk [vmem:[#allocation2] sm:$0xff] %vm42, %v107
    %110 = vst.msk [vmem:[#allocation2 + $0x8] sm:$0xff] %vm42, %v108
    // Predicated region
    $region14: #{transformer_forward.21} parent=1 // pred_check
      _
    $region15: #{transformer_forward.21} parent=1 // pred_check_branch
      %112 = sbr.rel (0) target = $region17
    $region16: #{transformer_forward.21} parent=1 // pred_region
      %s114 = ssub.s32 256, 256
      %115 = vsyncadd [#allocation3], %s114
      %s116 = sshll.u32 [#allocation2], 4
      %s117 = int_to_ptr.vmem [resolvable:$true] %s116
      %122 = dma.vmem_to_hbm [thread:$0]  %s117, 256, %s3, [#allocation3], 128, 128, 8
    $region17: #{transformer_forward.21} parent=1 // pred_fallthru
      _
    // Predicated region
    $region18: #{transformer_forward.21} parent=1 // pred_check
      _
    $region19: #{transformer_forward.21} parent=1 // pred_check_branch
      %124 = sbr.rel (0) target = $region21
    $region20: #{transformer_forward.21} parent=1 // pred_region
      %125 = dma.done [#allocation3], 256
    $region21: #{transformer_forward.21} parent=1 // pred_fallthru
      _
    %126 = vsyncpa [#allocation3], 1

// kernel: transformer_forward.12
$region0: #{transformer_forward.12}
  #allocation0 [shape = 'u32[]', space=smem, size = 0x4, offset = 0x4, fixed_abs, tag = 'smem constant byte address 0x4 - core index']
  #allocation1 [shape = 'u32[144,128]{1,0:T(1,128)}', space=vmem, size = 0x12000, scoped, tag = 'internal scratch']
  %s0 = inlined_call_operand.vmem [shape: f32[16,32], index: 0, kind: input, shape index: {}, may-alias: {0,7}]
  %s1 = inlined_call_operand.vmem [shape: bf16[32,64], index: 1, kind: input, shape index: {}]
  %s2 = inlined_call_operand.vmem [shape: f32[1,64], index: 2, kind: input, shape index: {}]
  %s3 = inlined_call_operand.vmem [shape: bf16[64,32], index: 3, kind: input, shape index: {}]
  %s4 = inlined_call_operand.vmem [shape: f32[1,32], index: 4, kind: input, shape index: {}]
  %s5 = inlined_call_operand.vmem [shape: f32[1,32], index: 5, kind: input, shape index: {}]
  %s6 = inlined_call_operand.vmem [shape: f32[1,32], index: 6, kind: input, shape index: {}]
  %s7 = inlined_call_operand.vmem [shape: f32[16,32], index: 7, kind: output, shape index: {}, may-alias: {0,7}]
  %s8 = sld [smem:[#allocation0]]
  $region38: #{transformer_forward.12} parent=0
    _
  %s10 = ssub.s32 1, %s8
  %s11 = scalar_select 0, %s10, %s8
  // Predicated region
  $region2: #{transformer_forward.12} parent=0 // pred_check
    _
  $region3: #{transformer_forward.12} parent=0 // pred_check_branch
    %13 = sbr.rel (0) target = $region5
  $region4: #{transformer_forward.12} parent=0 // pred_region
    _
  $region5: #{transformer_forward.12} parent=0 // pred_fallthru
    _
  // Predicated region
  $region6: #{transformer_forward.12} parent=0 // pred_check
    _
  $region7: #{transformer_forward.12} parent=0 // pred_check_branch
    %15 = sbr.rel (0) target = $region9
  $region8: #{transformer_forward.12} parent=0 // pred_region
    _
  $region9: #{transformer_forward.12} parent=0 // pred_fallthru
    _
  // Predicated region
  $region10: #{transformer_forward.12} parent=0 // pred_check
    _
  $region11: #{transformer_forward.12} parent=0 // pred_check_branch
    %17 = sbr.rel (0) target = $region13
  $region12: #{transformer_forward.12} parent=0 // pred_region
    _
  $region13: #{transformer_forward.12} parent=0 // pred_fallthru
    _
  // Predicated region
  $region14: #{transformer_forward.12} parent=0 // pred_check
    _
  $region15: #{transformer_forward.12} parent=0 // pred_check_branch
    %19 = sbr.rel (0) target = $region17
  $region16: #{transformer_forward.12} parent=0 // pred_region
    _
  $region17: #{transformer_forward.12} parent=0 // pred_fallthru
    _
  // Predicated region
  $region18: #{transformer_forward.12} parent=0 // pred_check
    _
  $region19: #{transformer_forward.12} parent=0 // pred_check_branch
    %21 = sbr.rel (0) target = $region21
  $region20: #{transformer_forward.12} parent=0 // pred_region
    _
  $region21: #{transformer_forward.12} parent=0 // pred_fallthru
    _
  // Predicated region
  $region22: #{transformer_forward.12} parent=0 // pred_check
    _
  $region23: #{transformer_forward.12} parent=0 // pred_check_branch
    %23 = sbr.rel (0) target = $region25
  $region24: #{transformer_forward.12} parent=0 // pred_region
    _
  $region25: #{transformer_forward.12} parent=0 // pred_fallthru
    _
  // Predicated region
  $region26: #{transformer_forward.12} parent=0 // pred_check
    _
  $region27: #{transformer_forward.12} parent=0 // pred_check_branch
    %25 = sbr.rel (0) target = $region29
  $region28: #{transformer_forward.12} parent=0 // pred_region
    _
  $region29: #{transformer_forward.12} parent=0 // pred_fallthru
    _
  %v27 = vld [vmem:[%s0] sm:$0xff]
  %v28 = vld [vmem:[%s0 + $0x8] sm:$0xff]
  %v29 = vpack.c.bf16 %v28, %v27
  %v30 = vld [vmem:[%s1] sm:$0xf]
  %v31 = vld [vmem:[%s1 + $0x4] sm:$0xf]
  %v32 = vld [vmem:[%s1 + $0x8] sm:$0xf]
  %v33 = vld [vmem:[%s1 + $0xc] sm:$0xf]
  %v34 = vld [vmem:[%s2] sm:$0x1]
  %v36 = vlaneseq
  %v37 = vshrl.u32 %v36, 7
  %v38 = vsub.s32 0, %v37
  %v39 = vrot.slane %v34, %v38
  %v45 = vunpack.c.l.b16 %v30
  %v46 = vunpack.c.l.b16 %v31
  %v47 = vunpack.c.l.b16 %v32
  %v48 = vunpack.c.l.b16 %v33
  %v49 = vpack.c.b16 %v46, %v45
  %v50 = vpack.c.b16 %v48, %v47
  %vm53 = vcmask 261120
  %v55 = vsel %vm53, %v29, 0
  %57 = vmatprep.subr.bf16.mxu0 0
  %58 = vmatpush1.bf16.msra.mxu0 0
  %59 = vmatprep.subr.bf16.mxu0 0
  %60 = vmatpush1.bf16.msra.mxu0 0
  %61 = vmatprep.subr.bf16.mxu0 0
  %62 = vmatpush1.bf16.msra.mxu0 0
  %63 = vmatprep.subr.bf16.mxu0 0
  %64 = vmatpush1.bf16.msra.mxu0 0
  %65 = vmatprep.subr.bf16.mxu0 0
  %66 = vmatpush1.bf16.msra.mxu0 0
  %67 = vmatprep.subr.bf16.mxu0 0
  %68 = vmatpush1.bf16.msra.mxu0 0
  %69 = vmatprep.subr.bf16.mxu0 0
  %70 = vmatpush1.bf16.msra.mxu0 %v50
  %71 = vmatprep.subr.bf16.mxu0 0
  %72 = vmatpush1.bf16.msra.mxu0 %v49
  %73 = vmatprep.subr.bf16.mxu0 0
  %74 = vmatpush2.bf16.msra.mxu0 0
  %75 = vmatprep.subr.bf16.mxu0 0
  %76 = vmatpush2.bf16.msra.mxu0 0
  %77 = vmatprep.subr.bf16.mxu0 0
  %78 = vmatpush2.bf16.msra.mxu0 0
  %79 = vmatprep.subr.bf16.mxu0 0
  %80 = vmatpush2.bf16.msra.mxu0 0
  %81 = vmatprep.subr.bf16.mxu0 0
  %82 = vmatpush2.bf16.msra.mxu0 0
  %83 = vmatprep.subr.bf16.mxu0 0
  %84 = vmatpush2.bf16.msra.mxu0 0
  %85 = vmatprep.subr.bf16.mxu0 0
  %86 = vmatpush2.bf16.msra.mxu0 0
  %87 = vmatprep.subr.bf16.mxu0 0
  %88 = vmatpush2.bf16.msra.mxu0 0
  %89 = vmatprep.mubr.bf16.mxu0 0
  %90 = vmatmul.mubr.bf16.gmra.mxu0 %v55
  %v91 = vpop.f32.mrf.mxu0
  %v92 = vadd.f32 %v39, %v91
  %v93 = vpop.f32.mrf.mxu0
  %v94 = vpop.f32.mrf.mxu0
  %v95 = vadd.f32 %v39, %v94
  %v96 = vpop.f32.mrf.mxu0
  %97 = vdwg.mxu0
  %v98 = vmax.f32 %v92, 0.0
  %v99 = vmax.f32 %v95, 0.0
  %v100 = vpack.c.bf16 %v99, %v98
  %v101 = vld [vmem:[%s3] sm:$0xf]
  %v102 = vld [vmem:[%s3 + $0x4] sm:$0xf]
  %v103 = vld [vmem:[%s3 + $0x8] sm:$0xf]
  %v104 = vld [vmem:[%s3 + $0xc] sm:$0xf]
  %v105 = vld [vmem:[%s3 + $0x10] sm:$0xf]
  %v106 = vld [vmem:[%s3 + $0x14] sm:$0xf]
  %v107 = vld [vmem:[%s3 + $0x18] sm:$0xf]
  %v108 = vld [vmem:[%s3 + $0x1c] sm:$0xf]
  %v109 = vld [vmem:[%s4] sm:$0x1]
  %v111 = vlaneseq
  %v112 = vshrl.u32 %v111, 7
  %v113 = vsub.s32 0, %v112
  %v114 = vrot.slane %v109, %v113
  %v124 = vunpack.c.l.b16 %v101
  %v125 = vunpack.c.l.b16 %v102
  %v126 = vunpack.c.l.b16 %v103
  %v127 = vunpack.c.l.b16 %v104
  %v128 = vunpack.c.l.b16 %v105
  %v129 = vunpack.c.l.b16 %v106
  %v130 = vunpack.c.l.b16 %v107
  %v131 = vunpack.c.l.b16 %v108
  %v132 = vpack.c.b16 %v125, %v124
  %v133 = vpack.c.b16 %v127, %v126
  %v134 = vpack.c.b16 %v129, %v128
  %v135 = vpack.c.b16 %v131, %v130
  %vm140 = vcmask 523264
  %v142 = vsel %vm140, %v100, 0
  %144 = vmatprep.subr.bf16.mxu0 0
  %145 = vmatpush1.bf16.msra.mxu0 0
  %146 = vmatprep.subr.bf16.mxu0 0
  %147 = vmatpush1.bf16.msra.mxu0 0
  %148 = vmatprep.subr.bf16.mxu0 0
  %149 = vmatpush1.bf16.msra.mxu0 0
  %150 = vmatprep.subr.bf16.mxu0 0
  %151 = vmatpush1.bf16.msra.mxu0 0
  %152 = vmatprep.subr.bf16.mxu0 0
  %153 = vmatpush1.bf16.msra.mxu0 %v135
  %154 = vmatprep.subr.bf16.mxu0 0
  %155 = vmatpush1.bf16.msra.mxu0 %v134
  %156 = vmatprep.subr.bf16.mxu0 0
  %157 = vmatpush1.bf16.msra.mxu0 %v133
  %158 = vmatprep.subr.bf16.mxu0 0
  %159 = vmatpush1.bf16.msra.mxu0 %v132
  %160 = vmatprep.subr.bf16.mxu0 0
  %161 = vmatpush2.bf16.msra.mxu0 0
  %162 = vmatprep.subr.bf16.mxu0 0
  %163 = vmatpush2.bf16.msra.mxu0 0
  %164 = vmatprep.subr.bf16.mxu0 0
  %165 = vmatpush2.bf16.msra.mxu0 0
  %166 = vmatprep.subr.bf16.mxu0 0
  %167 = vmatpush2.bf16.msra.mxu0 0
  %168 = vmatprep.subr.bf16.mxu0 0
  %169 = vmatpush2.bf16.msra.mxu0 0
  %170 = vmatprep.subr.bf16.mxu0 0
  %171 = vmatpush2.bf16.msra.mxu0 0
  %172 = vmatprep.subr.bf16.mxu0 0
  %173 = vmatpush2.bf16.msra.mxu0 0
  %174 = vmatprep.subr.bf16.mxu0 0
  %175 = vmatpush2.bf16.msra.mxu0 0
  %176 = vmatprep.mubr.bf16.mxu0 0
  %177 = vmatmul.mubr.bf16.gmra.mxu0 %v142
  %v178 = vpop.f32.mrf.mxu0
  %v179 = vadd.f32 %v114, %v178
  %v180 = vpop.f32.mrf.mxu0
  %v181 = vpop.f32.mrf.mxu0
  %v182 = vadd.f32 %v114, %v181
  %v183 = vpop.f32.mrf.mxu0
  %184 = vdwg.mxu0
  %v185 = vadd.f32 %v27, %v179
  %v186 = vadd.f32 %v28, %v182
  %v187 = vsel %vm53, %v185, 0.0
  %188 = vadd.xlane.f32.xlu0 %v187
  %v189 = vpop.xlane.xlu0 %188
  %v190 = vsel %vm53, %v186, 0.0
  %191 = vadd.xlane.f32.xlu0 %v190
  %v192 = vpop.xlane.xlu0 %191
  %v193 = vrcp.pop 32.0
  %v194 = vmul.f32 %v189, %v193
  %v195 = vmul.f32 %v192, %v193
  %v196 = vsub.f32 %v185, %v194
  %v197 = vsub.f32 %v186, %v195
  %v198 = vmul.f32 %v196, %v196
  %v199 = vmul.f32 %v197, %v197
  %v200 = vsel %vm53, %v198, 0.0
  %201 = vadd.xlane.f32.xlu0 %v200
  %v202 = vpop.xlane.xlu0 %201
  %v203 = vsel %vm53, %v199, 0.0
  %204 = vadd.xlane.f32.xlu0 %v203
  %v205 = vpop.xlane.xlu0 %204
  %v206 = vmul.f32 %v202, %v193
  %v207 = vmul.f32 %v205, %v193
  %v208 = vadd.f32 %v206, 1e-05
  %v209 = vadd.f32 %v207, 1e-05
  %v210 = vrsqrt.pop %v208
  %v211 = vrsqrt.pop %v209
  %v212 = vmul.f32 %v196, %v210
  %v213 = vmul.f32 %v197, %v211
  %v214 = vld [vmem:[%s5] sm:$0x1]
  %v216 = vlaneseq
  %v217 = vshrl.u32 %v216, 7
  %v218 = vsub.s32 0, %v217
  %v219 = vrot.slane %v214, %v218
  %v221 = vmul.f32 %v212, %v219
  %v222 = vmul.f32 %v213, %v219
  %v223 = vld [vmem:[%s6] sm:$0x1]
  %v225 = vlaneseq
  %v226 = vshrl.u32 %v225, 7
  %v227 = vsub.s32 0, %v226
  %v228 = vrot.slane %v223, %v227
  %v230 = vadd.f32 %v221, %v228
  %v231 = vadd.f32 %v222, %v228
  %232 = vst.msk [vmem:[%s7] sm:$0xff] %vm53, %v230
  %233 = vst.msk [vmem:[%s7 + $0x8] sm:$0xff] %vm53, %v231
  // Predicated region
  $region30: #{transformer_forward.12} parent=0 // pred_check
    _
  $region31: #{transformer_forward.12} parent=0 // pred_check_branch
    %235 = sbr.rel (0) target = $region33
  $region32: #{transformer_forward.12} parent=0 // pred_region
    _
  $region33: #{transformer_forward.12} parent=0 // pred_fallthru
    _
  // Predicated region
  $region34: #{transformer_forward.12} parent=0 // pred_check
    _
  $region35: #{transformer_forward.12} parent=0 // pred_check_branch
    %237 = sbr.rel (0) target = $region37
  $region36: #{transformer_forward.12} parent=0 // pred_region
    _
  $region37: #{transformer_forward.12} parent=0 // pred_fallthru
    _

// kernel: transformer_forward.16
$region0: #{transformer_forward.16}
  #allocation0 [shape = 'u32[]', space=smem, size = 0x4, offset = 0x4, fixed_abs, tag = 'smem constant byte address 0x4 - core index']
  #allocation1 [shape = 'u32[144,128]{1,0:T(1,128)}', space=vmem, size = 0x12000, scoped, tag = 'internal scratch']
  %s0 = inlined_call_operand.vmem [shape: f32[2,8,32], index: 0, kind: input, shape index: {}]
  %s1 = inlined_call_operand.vmem [shape: f32[2,8,32], index: 1, kind: input, shape index: {}]
  %s2 = inlined_call_operand.vmem [shape: bf16[32,32], index: 2, kind: input, shape index: {}]
  %s3 = inlined_call_operand.vmem [shape: f32[1,32], index: 3, kind: input, shape index: {}]
  %s4 = inlined_call_operand.vmem [shape: bf16[32,32], index: 4, kind: input, shape index: {}]
  %s5 = inlined_call_operand.vmem [shape: f32[1,32], index: 5, kind: input, shape index: {}]
  %s6 = inlined_call_operand.vmem [shape: bf16[32,32], index: 6, kind: input, shape index: {}]
  %s7 = inlined_call_operand.vmem [shape: f32[1,32], index: 7, kind: input, shape index: {}]
  %s8 = inlined_call_operand.vmem [shape: bf16[32,32], index: 8, kind: input, shape index: {}]
  %s9 = inlined_call_operand.vmem [shape: f32[1,32], index: 9, kind: input, shape index: {}]
  %s10 = inlined_call_operand.vmem [shape: f32[1,32], index: 10, kind: input, shape index: {}]
  %s11 = inlined_call_operand.vmem [shape: f32[1,32], index: 11, kind: input, shape index: {}]
  %s12 = inlined_call_operand.vmem [shape: f32[2,8,32], index: 12, kind: output, shape index: {}]
  %s13 = sld [smem:[#allocation0]]
  $region58: #{transformer_forward.16} parent=0
    _
  %s15 = ssub.s32 1, %s13
  %s16 = scalar_select 0, %s15, %s13
  // Predicated region
  $region2: #{transformer_forward.16} parent=0 // pred_check
    _
  $region3: #{transformer_forward.16} parent=0 // pred_check_branch
    %18 = sbr.rel (0) target = $region5
  $region4: #{transformer_forward.16} parent=0 // pred_region
    _
  $region5: #{transformer_forward.16} parent=0 // pred_fallthru
    _
  // Predicated region
  $region6: #{transformer_forward.16} parent=0 // pred_check
    _
  $region7: #{transformer_forward.16} parent=0 // pred_check_branch
    %20 = sbr.rel (0) target = $region9
  $region8: #{transformer_forward.16} parent=0 // pred_region
    _
  $region9: #{transformer_forward.16} parent=0 // pred_fallthru
    _
  // Predicated region
  $region10: #{transformer_forward.16} parent=0 // pred_check
    _
  $region11: #{transformer_forward.16} parent=0 // pred_check_branch
    %22 = sbr.rel (0) target = $region13
  $region12: #{transformer_forward.16} parent=0 // pred_region
    _
  $region13: #{transformer_forward.16} parent=0 // pred_fallthru
    _
  // Predicated region
  $region14: #{transformer_forward.16} parent=0 // pred_check
    _
  $region15: #{transformer_forward.16} parent=0 // pred_check_branch
    %24 = sbr.rel (0) target = $region17
  $region16: #{transformer_forward.16} parent=0 // pred_region
    _
  $region17: #{transformer_forward.16} parent=0 // pred_fallthru
    _
  // Predicated region
  $region18: #{transformer_forward.16} parent=0 // pred_check
    _
  $region19: #{transformer_forward.16} parent=0 // pred_check_branch
    %26 = sbr.rel (0) target = $region21
  $region20: #{transformer_forward.16} parent=0 // pred_region
    _
  $region21: #{transformer_forward.16} parent=0 // pred_fallthru
    _
  // Predicated region
  $region22: #{transformer_forward.16} parent=0 // pred_check
    _
  $region23: #{transformer_forward.16} parent=0 // pred_check_branch
    %28 = sbr.rel (0) target = $region25
  $region24: #{transformer_forward.16} parent=0 // pred_region
    _
  $region25: #{transformer_forward.16} parent=0 // pred_fallthru
    _
  // Predicated region
  $region26: #{transformer_forward.16} parent=0 // pred_check
    _
  $region27: #{transformer_forward.16} parent=0 // pred_check_branch
    %30 = sbr.rel (0) target = $region29
  $region28: #{transformer_forward.16} parent=0 // pred_region
    _
  $region29: #{transformer_forward.16} parent=0 // pred_fallthru
    _
  // Predicated region
  $region30: #{transformer_forward.16} parent=0 // pred_check
    _
  $region31: #{transformer_forward.16} parent=0 // pred_check_branch
    %32 = sbr.rel (0) target = $region33
  $region32: #{transformer_forward.16} parent=0 // pred_region
    _
  $region33: #{transformer_forward.16} parent=0 // pred_fallthru
    _
  // Predicated region
  $region34: #{transformer_forward.16} parent=0 // pred_check
    _
  $region35: #{transformer_forward.16} parent=0 // pred_check_branch
    %34 = sbr.rel (0) target = $region37
  $region36: #{transformer_forward.16} parent=0 // pred_region
    _
  $region37: #{transformer_forward.16} parent=0 // pred_fallthru
    _
  // Predicated region
  $region38: #{transformer_forward.16} parent=0 // pred_check
    _
  $region39: #{transformer_forward.16} parent=0 // pred_check_branch
    %36 = sbr.rel (0) target = $region41
  $region40: #{transformer_forward.16} parent=0 // pred_region
    _
  $region41: #{transformer_forward.16} parent=0 // pred_fallthru
    _
  // Predicated region
  $region42: #{transformer_forward.16} parent=0 // pred_check
    _
  $region43: #{transformer_forward.16} parent=0 // pred_check_branch
    %38 = sbr.rel (0) target = $region45
  $region44: #{transformer_forward.16} parent=0 // pred_region
    _
  $region45: #{transformer_forward.16} parent=0 // pred_fallthru
    _
  // Predicated region
  $region46: #{transformer_forward.16} parent=0 // pred_check
    _
  $region47: #{transformer_forward.16} parent=0 // pred_check_branch
    %40 = sbr.rel (0) target = $region49
  $region48: #{transformer_forward.16} parent=0 // pred_region
    _
  $region49: #{transformer_forward.16} parent=0 // pred_fallthru
    _
  %v42 = vld [vmem:[%s0] sm:$0xff]
  %v43 = vld [vmem:[%s0 + $0x8] sm:$0xff]
  %v44 = vld [vmem:[%s1] sm:$0xff]
  %v45 = vld [vmem:[%s1 + $0x8] sm:$0xff]
  %v46 = vpack.c.bf16 %v43, %v42
  %v47 = vpack.c.bf16 %v45, %v44
  %v48 = vld [vmem:[%s2] sm:$0xf]
  %v49 = vld [vmem:[%s2 + $0x4] sm:$0xf]
  %v50 = vld [vmem:[%s2 + $0x8] sm:$0xf]
  %v51 = vld [vmem:[%s2 + $0xc] sm:$0xf]
  %v52 = vld [vmem:[%s3] sm:$0x1]
  %v54 = vlaneseq
  %v55 = vshrl.u32 %v54, 7
  %v56 = vsub.s32 0, %v55
  %v57 = vrot.slane %v52, %v56
  %v63 = vunpack.c.l.b16 %v48
  %v64 = vunpack.c.l.b16 %v49
  %v65 = vunpack.c.l.b16 %v50
  %v66 = vunpack.c.l.b16 %v51
  %v67 = vpack.c.b16 %v64, %v63
  %v68 = vpack.c.b16 %v66, %v65
  %vm71 = vcmask 261120
  %v73 = vsel %vm71, %v46, 0
  %75 = vmatprep.subr.bf16.mxu0 0
  %76 = vmatpush1.bf16.msra.mxu0 0
  %77 = vmatprep.subr.bf16.mxu0 0
  %78 = vmatpush1.bf16.msra.mxu0 0
  %79 = vmatprep.subr.bf16.mxu0 0
  %80 = vmatpush1.bf16.msra.mxu0 0
  %81 = vmatprep.subr.bf16.mxu0 0
  %82 = vmatpush1.bf16.msra.mxu0 0
  %83 = vmatprep.subr.bf16.mxu0 0
  %84 = vmatpush1.bf16.msra.mxu0 0
  %85 = vmatprep.subr.bf16.mxu0 0
  %86 = vmatpush1.bf16.msra.mxu0 0
  %87 = vmatprep.subr.bf16.mxu0 0
  %88 = vmatpush1.bf16.msra.mxu0 %v68
  %89 = vmatprep.subr.bf16.mxu0 0
  %90 = vmatpush1.bf16.msra.mxu0 %v67
  %91 = vmatprep.subr.bf16.mxu0 0
  %92 = vmatpush2.bf16.msra.mxu0 0
  %93 = vmatprep.subr.bf16.mxu0 0
  %94 = vmatpush2.bf16.msra.mxu0 0
  %95 = vmatprep.subr.bf16.mxu0 0
  %96 = vmatpush2.bf16.msra.mxu0 0
  %97 = vmatprep.subr.bf16.mxu0 0
  %98 = vmatpush2.bf16.msra.mxu0 0
  %99 = vmatprep.subr.bf16.mxu0 0
  %100 = vmatpush2.bf16.msra.mxu0 0
  %101 = vmatprep.subr.bf16.mxu0 0
  %102 = vmatpush2.bf16.msra.mxu0 0
  %103 = vmatprep.subr.bf16.mxu0 0
  %104 = vmatpush2.bf16.msra.mxu0 0
  %105 = vmatprep.subr.bf16.mxu0 0
  %106 = vmatpush2.bf16.msra.mxu0 0
  %107 = vmatprep.mubr.bf16.mxu0 0
  %108 = vmatmul.mubr.bf16.gmra.mxu0 %v73
  %v109 = vpop.f32.mrf.mxu0
  %v110 = vadd.f32 %v57, %v109
  %v111 = vpop.f32.mrf.mxu0
  %v112 = vpop.f32.mrf.mxu0
  %v113 = vadd.f32 %v57, %v112
  %v114 = vpop.f32.mrf.mxu0
  %115 = vdwg.mxu0
  %v116 = vmul.f32 %v110, 0.35355338
  %v117 = vmul.f32 %v113, 0.35355338
  %v118 = vld [vmem:[%s4] sm:$0xf]
  %v119 = vld [vmem:[%s4 + $0x4] sm:$0xf]
  %v120 = vld [vmem:[%s4 + $0x8] sm:$0xf]
  %v121 = vld [vmem:[%s4 + $0xc] sm:$0xf]
  %v122 = vld [vmem:[%s5] sm:$0x1]
  %v124 = vlaneseq
  %v125 = vshrl.u32 %v124, 7
  %v126 = vsub.s32 0, %v125
  %v127 = vrot.slane %v122, %v126
  %v133 = vunpack.c.l.b16 %v118
  %v134 = vunpack.c.l.b16 %v119
  %v135 = vunpack.c.l.b16 %v120
  %v136 = vunpack.c.l.b16 %v121
  %v137 = vpack.c.b16 %v134, %v133
  %v138 = vpack.c.b16 %v136, %v135
  %141 = vmatprep.subr.bf16.mxu0 0
  %142 = vmatpush1.bf16.msra.mxu0 0
  %143 = vmatprep.subr.bf16.mxu0 0
  %144 = vmatpush1.bf16.msra.mxu0 0
  %145 = vmatprep.subr.bf16.mxu0 0
  %146 = vmatpush1.bf16.msra.mxu0 0
  %147 = vmatprep.subr.bf16.mxu0 0
  %148 = vmatpush1.bf16.msra.mxu0 0
  %149 = vmatprep.subr.bf16.mxu0 0
  %150 = vmatpush1.bf16.msra.mxu0 0
  %151 = vmatprep.subr.bf16.mxu0 0
  %152 = vmatpush1.bf16.msra.mxu0 0
  %153 = vmatprep.subr.bf16.mxu0 0
  %154 = vmatpush1.bf16.msra.mxu0 %v138
  %155 = vmatprep.subr.bf16.mxu0 0
  %156 = vmatpush1.bf16.msra.mxu0 %v137
  %157 = vmatprep.subr.bf16.mxu0 0
  %158 = vmatpush2.bf16.msra.mxu0 0
  %159 = vmatprep.subr.bf16.mxu0 0
  %160 = vmatpush2.bf16.msra.mxu0 0
  %161 = vmatprep.subr.bf16.mxu0 0
  %162 = vmatpush2.bf16.msra.mxu0 0
  %163 = vmatprep.subr.bf16.mxu0 0
  %164 = vmatpush2.bf16.msra.mxu0 0
  %165 = vmatprep.subr.bf16.mxu0 0
  %166 = vmatpush2.bf16.msra.mxu0 0
  %167 = vmatprep.subr.bf16.mxu0 0
  %168 = vmatpush2.bf16.msra.mxu0 0
  %169 = vmatprep.subr.bf16.mxu0 0
  %170 = vmatpush2.bf16.msra.mxu0 0
  %171 = vmatprep.subr.bf16.mxu0 0
  %172 = vmatpush2.bf16.msra.mxu0 0
  %173 = vmatprep.mubr.bf16.mxu0 0
  %174 = vmatmul.mubr.bf16.gmra.mxu0 %v73
  %v175 = vpop.f32.mrf.mxu0
  %v176 = vadd.f32 %v127, %v175
  %v177 = vpop.f32.mrf.mxu0
  %v178 = vpop.f32.mrf.mxu0
  %v179 = vadd.f32 %v127, %v178
  %v180 = vpop.f32.mrf.mxu0
  %181 = vdwg.mxu0
  %v182 = vld [vmem:[%s6] sm:$0xf]
  %v183 = vld [vmem:[%s6 + $0x4] sm:$0xf]
  %v184 = vld [vmem:[%s6 + $0x8] sm:$0xf]
  %v185 = vld [vmem:[%s6 + $0xc] sm:$0xf]
  %v186 = vld [vmem:[%s7] sm:$0x1]
  %v188 = vlaneseq
  %v189 = vshrl.u32 %v188, 7
  %v190 = vsub.s32 0, %v189
  %v191 = vrot.slane %v186, %v190
  %v197 = vunpack.c.l.b16 %v182
  %v198 = vunpack.c.l.b16 %v183
  %v199 = vunpack.c.l.b16 %v184
  %v200 = vunpack.c.l.b16 %v185
  %v201 = vpack.c.b16 %v198, %v197
  %v202 = vpack.c.b16 %v200, %v199
  %v206 = vsel %vm71, %v47, 0
  %208 = vmatprep.subr.bf16.mxu0 0
  %209 = vmatpush1.bf16.msra.mxu0 0
  %210 = vmatprep.subr.bf16.mxu0 0
  %211 = vmatpush1.bf16.msra.mxu0 0
  %212 = vmatprep.subr.bf16.mxu0 0
  %213 = vmatpush1.bf16.msra.mxu0 0
  %214 = vmatprep.subr.bf16.mxu0 0
  %215 = vmatpush1.bf16.msra.mxu0 0
  %216 = vmatprep.subr.bf16.mxu0 0
  %217 = vmatpush1.bf16.msra.mxu0 0
  %218 = vmatprep.subr.bf16.mxu0 0
  %219 = vmatpush1.bf16.msra.mxu0 0
  %220 = vmatprep.subr.bf16.mxu0 0
  %221 = vmatpush1.bf16.msra.mxu0 %v202
  %222 = vmatprep.subr.bf16.mxu0 0
  %223 = vmatpush1.bf16.msra.mxu0 %v201
  %224 = vmatprep.subr.bf16.mxu0 0
  %225 = vmatpush2.bf16.msra.mxu0 0
  %226 = vmatprep.subr.bf16.mxu0 0
  %227 = vmatpush2.bf16.msra.mxu0 0
  %228 = vmatprep.subr.bf16.mxu0 0
  %229 = vmatpush2.bf16.msra.mxu0 0
  %230 = vmatprep.subr.bf16.mxu0 0
  %231 = vmatpush2.bf16.msra.mxu0 0
  %232 = vmatprep.subr.bf16.mxu0 0
  %233 = vmatpush2.bf16.msra.mxu0 0
  %234 = vmatprep.subr.bf16.mxu0 0
  %235 = vmatpush2.bf16.msra.mxu0 0
  %236 = vmatprep.subr.bf16.mxu0 0
  %237 = vmatpush2.bf16.msra.mxu0 0
  %238 = vmatprep.subr.bf16.mxu0 0
  %239 = vmatpush2.bf16.msra.mxu0 0
  %240 = vmatprep.mubr.bf16.mxu0 0
  %241 = vmatmul.mubr.bf16.gmra.mxu0 %v206
  %v242 = vpop.f32.mrf.mxu0
  %v243 = vadd.f32 %v191, %v242
  %v244 = vpop.f32.mrf.mxu0
  %v245 = vpop.f32.mrf.mxu0
  %v246 = vadd.f32 %v191, %v245
  %v247 = vpop.f32.mrf.mxu0
  %248 = vdwg.mxu0
  %v249 = vpack.c.bf16 %v116, %v116
  %v250 = vpack.c.bf16 %v117, %v117
  %v251 = vpack.c.bf16 %v176, %v176
  %v252 = vpack.c.bf16 %v179, %v179
  %v253 = vpack.c.bf16 %v243, %v243
  %v254 = vpack.c.bf16 %v246, %v246
  %v255 = vld [vmem:[%s8] sm:$0xf]
  %v256 = vld [vmem:[%s8 + $0x4] sm:$0xf]
  %v257 = vld [vmem:[%s8 + $0x8] sm:$0xf]
  %v258 = vld [vmem:[%s8 + $0xc] sm:$0xf]
  %vm259 = vcmask 64512
  %v261 = vsel %vm259, %v249, 0
  %v264 = vsel %vm259, %v251, 0
  %266 = vmatprep.subr.bf16.mxu0 0
  %267 = vmatpush1.bf16.xpose.msra.mxu0 0
  %268 = vmatprep.subr.bf16.mxu0 0
  %269 = vmatpush1.bf16.xpose.msra.mxu0 0
  %270 = vmatprep.subr.bf16.mxu0 0
  %271 = vmatpush1.bf16.xpose.msra.mxu0 0
  %272 = vmatprep.subr.bf16.mxu0 0
  %273 = vmatpush1.bf16.xpose.msra.mxu0 0
  %274 = vmatprep.subr.bf16.mxu0 0
  %275 = vmatpush1.bf16.xpose.msra.mxu0 0
  %276 = vmatprep.subr.bf16.mxu0 0
  %277 = vmatpush1.bf16.xpose.msra.mxu0 0
  %278 = vmatprep.subr.bf16.mxu0 0
  %279 = vmatpush1.bf16.xpose.msra.mxu0 0
  %280 = vmatprep.subr.bf16.mxu0 0
  %281 = vmatpush1.bf16.xpose.msra.mxu0 %v264
  %282 = vmatprep.subr.bf16.mxu0 0
  %283 = vmatpush2.bf16.xpose.msra.mxu0 0
  %284 = vmatprep.subr.bf16.mxu0 0
  %285 = vmatpush2.bf16.xpose.msra.mxu0 0
  %286 = vmatprep.subr.bf16.mxu0 0
  %287 = vmatpush2.bf16.xpose.msra.mxu0 0
  %288 = vmatprep.subr.bf16.mxu0 0
  %289 = vmatpush2.bf16.xpose.msra.mxu0 0
  %290 = vmatprep.subr.bf16.mxu0 0
  %291 = vmatpush2.bf16.xpose.msra.mxu0 0
  %292 = vmatprep.subr.bf16.mxu0 0
  %293 = vmatpush2.bf16.xpose.msra.mxu0 0
  %294 = vmatprep.subr.bf16.mxu0 0
  %295 = vmatpush2.bf16.xpose.msra.mxu0 0
  %296 = vmatprep.subr.bf16.mxu0 0
  %297 = vmatpush2.bf16.xpose.msra.mxu0 0
  %298 = vmatprep.mubr.bf16.mxu0 0
  %299 = vmatmul.mubr.bf16.gmra.mxu0 %v261
  %v300 = vpop.f32.mrf.mxu0
  %v301 = vadd.f32 0.0, %v300
  %v302 = vpop.f32.mrf.mxu0
  %v303 = vpop.f32.mrf.mxu0
  %v304 = vpop.f32.mrf.mxu0
  %305 = vdwg.mxu0
  %v307 = vsel %vm259, %v250, 0
  %v310 = vsel %vm259, %v252, 0
  %312 = vmatprep.subr.bf16.mxu0 0
  %313 = vmatpush1.bf16.xpose.msra.mxu0 0
  %314 = vmatprep.subr.bf16.mxu0 0
  %315 = vmatpush1.bf16.xpose.msra.mxu0 0
  %316 = vmatprep.subr.bf16.mxu0 0
  %317 = vmatpush1.bf16.xpose.msra.mxu0 0
  %318 = vmatprep.subr.bf16.mxu0 0
  %319 = vmatpush1.bf16.xpose.msra.mxu0 0
  %320 = vmatprep.subr.bf16.mxu0 0
  %321 = vmatpush1.bf16.xpose.msra.mxu0 0
  %322 = vmatprep.subr.bf16.mxu0 0
  %323 = vmatpush1.bf16.xpose.msra.mxu0 0
  %324 = vmatprep.subr.bf16.mxu0 0
  %325 = vmatpush1.bf16.xpose.msra.mxu0 0
  %326 = vmatprep.subr.bf16.mxu0 0
  %327 = vmatpush1.bf16.xpose.msra.mxu0 %v310
  %328 = vmatprep.subr.bf16.mxu0 0
  %329 = vmatpush2.bf16.xpose.msra.mxu0 0
  %330 = vmatprep.subr.bf16.mxu0 0
  %331 = vmatpush2.bf16.xpose.msra.mxu0 0
  %332 = vmatprep.subr.bf16.mxu0 0
  %333 = vmatpush2.bf16.xpose.msra.mxu0 0
  %334 = vmatprep.subr.bf16.mxu0 0
  %335 = vmatpush2.bf16.xpose.msra.mxu0 0
  %336 = vmatprep.subr.bf16.mxu0 0
  %337 = vmatpush2.bf16.xpose.msra.mxu0 0
  %338 = vmatprep.subr.bf16.mxu0 0
  %339 = vmatpush2.bf16.xpose.msra.mxu0 0
  %340 = vmatprep.subr.bf16.mxu0 0
  %341 = vmatpush2.bf16.xpose.msra.mxu0 0
  %342 = vmatprep.subr.bf16.mxu0 0
  %343 = vmatpush2.bf16.xpose.msra.mxu0 0
  %344 = vmatprep.mubr.bf16.mxu0 0
  %345 = vmatmul.mubr.bf16.gmra.mxu0 %v307
  %v346 = vpop.f32.mrf.mxu0
  %v347 = vadd.f32 0.0, %v346
  %v348 = vpop.f32.mrf.mxu0
  %v349 = vpop.f32.mrf.mxu0
  %v350 = vpop.f32.mrf.mxu0
  %351 = vdwg.mxu0
  %v352 = vsel %vm259, %v301, -inf
  %353 = vmax.xlane.f32.xlu0 %v352
  %v354 = vpop.xlane.xlu0 %353
  %v355 = vsel %vm259, %v347, -inf
  %356 = vmax.xlane.f32.xlu0 %v355
  %v357 = vpop.xlane.xlu0 %356
  %v358 = vsub.f32 %v301, %v354
  %v359 = vsub.f32 %v347, %v357
  %v360 = vmul.f32 %v358, 1.442695
  %v361 = vpow.pop %v360
  %v362 = vmul.f32 %v359, 1.442695
  %v363 = vpow.pop %v362
  %v364 = vsel %vm259, %v361, 0.0
  %365 = vadd.xlane.f32.xlu0 %v364
  %v366 = vpop.xlane.xlu0 %365
  %v367 = vsel %vm259, %v363, 0.0
  %368 = vadd.xlane.f32.xlu0 %v367
  %v369 = vpop.xlane.xlu0 %368
  %v370 = vrcp.pop %v366
  %v371 = vrcp.pop %v369
  %v372 = vmul.f32 %v361, %v370
  %v373 = vmul.f32 %v363, %v371
  %v374 = vpack.c.bf16 %v372, %v372
  %v375 = vpack.c.bf16 %v373, %v373
  %v377 = vsel %vm259, %v374, 0
  %vm379 = vcmask 1043456
  %v381 = vsel %vm379, %v253, 0
  %383 = vmatprep.subr.bf16.mxu0 0
  %384 = vmatpush1.bf16.msra.mxu0 0
  %385 = vmatprep.subr.bf16.mxu0 0
  %386 = vmatpush1.bf16.msra.mxu0 0
  %387 = vmatprep.subr.bf16.mxu0 0
  %388 = vmatpush1.bf16.msra.mxu0 0
  %389 = vmatprep.subr.bf16.mxu0 0
  %390 = vmatpush1.bf16.msra.mxu0 0
  %391 = vmatprep.subr.bf16.mxu0 0
  %392 = vmatpush1.bf16.msra.mxu0 0
  %393 = vmatprep.subr.bf16.mxu0 0
  %394 = vmatpush1.bf16.msra.mxu0 0
  %395 = vmatprep.subr.bf16.mxu0 0
  %396 = vmatpush1.bf16.msra.mxu0 0
  %397 = vmatprep.subr.bf16.mxu0 0
  %398 = vmatpush1.bf16.msra.mxu0 %v381
  %399 = vmatprep.subr.bf16.mxu0 0
  %400 = vmatpush2.bf16.msra.mxu0 0
  %401 = vmatprep.subr.bf16.mxu0 0
  %402 = vmatpush2.bf16.msra.mxu0 0
  %403 = vmatprep.subr.bf16.mxu0 0
  %404 = vmatpush2.bf16.msra.mxu0 0
  %405 = vmatprep.subr.bf16.mxu0 0
  %406 = vmatpush2.bf16.msra.mxu0 0
  %407 = vmatprep.subr.bf16.mxu0 0
  %408 = vmatpush2.bf16.msra.mxu0 0
  %409 = vmatprep.subr.bf16.mxu0 0
  %410 = vmatpush2.bf16.msra.mxu0 0
  %411 = vmatprep.subr.bf16.mxu0 0
  %412 = vmatpush2.bf16.msra.mxu0 0
  %413 = vmatprep.subr.bf16.mxu0 0
  %414 = vmatpush2.bf16.msra.mxu0 0
  %415 = vmatprep.mubr.bf16.mxu0 0
  %416 = vmatmul.mubr.bf16.gmra.mxu0 %v377
  %v417 = vpop.f32.mrf.mxu0
  %v418 = vadd.f32 0.0, %v417
  %v419 = vpop.f32.mrf.mxu0
  %v420 = vpop.f32.mrf.mxu0
  %v421 = vpop.f32.mrf.mxu0
  %422 = vdwg.mxu0
  %v424 = vsel %vm259, %v375, 0
  %v427 = vsel %vm379, %v254, 0
  %429 = vmatprep.subr.bf16.mxu0 0
  %430 = vmatpush1.bf16.msra.mxu0 0
  %431 = vmatprep.subr.bf16.mxu0 0
  %432 = vmatpush1.bf16.msra.mxu0 0
  %433 = vmatprep.subr.bf16.mxu0 0
  %434 = vmatpush1.bf16.msra.mxu0 0
  %435 = vmatprep.subr.bf16.mxu0 0
  %436 = vmatpush1.bf16.msra.mxu0 0
  %437 = vmatprep.subr.bf16.mxu0 0
  %438 = vmatpush1.bf16.msra.mxu0 0
  %439 = vmatprep.subr.bf16.mxu0 0
  %440 = vmatpush1.bf16.msra.mxu0 0
  %441 = vmatprep.subr.bf16.mxu0 0
  %442 = vmatpush1.bf16.msra.mxu0 0
  %443 = vmatprep.subr.bf16.mxu0 0
  %444 = vmatpush1.bf16.msra.mxu0 %v427
  %445 = vmatprep.subr.bf16.mxu0 0
  %446 = vmatpush2.bf16.msra.mxu0 0
  %447 = vmatprep.subr.bf16.mxu0 0
  %448 = vmatpush2.bf16.msra.mxu0 0
  %449 = vmatprep.subr.bf16.mxu0 0
  %450 = vmatpush2.bf16.msra.mxu0 0
  %451 = vmatprep.subr.bf16.mxu0 0
  %452 = vmatpush2.bf16.msra.mxu0 0
  %453 = vmatprep.subr.bf16.mxu0 0
  %454 = vmatpush2.bf16.msra.mxu0 0
  %455 = vmatprep.subr.bf16.mxu0 0
  %456 = vmatpush2.bf16.msra.mxu0 0
  %457 = vmatprep.subr.bf16.mxu0 0
  %458 = vmatpush2.bf16.msra.mxu0 0
  %459 = vmatprep.subr.bf16.mxu0 0
  %460 = vmatpush2.bf16.msra.mxu0 0
  %461 = vmatprep.mubr.bf16.mxu0 0
  %462 = vmatmul.mubr.bf16.gmra.mxu0 %v424
  %v463 = vpop.f32.mrf.mxu0
  %v464 = vadd.f32 0.0, %v463
  %v465 = vpop.f32.mrf.mxu0
  %v466 = vpop.f32.mrf.mxu0
  %v467 = vpop.f32.mrf.mxu0
  %468 = vdwg.mxu0
  %v469 = vpack.c.bf16 %v464, %v418
  %471 = vrot.lane.b32.xlu0 %v249, 120
  %v472 = vpop.permute.xlu0 %471
  %474 = vrot.lane.b32.xlu0 %v251, 120
  %v475 = vpop.permute.xlu0 %474
  %v477 = vsel %vm259, %v472, 0
  %v480 = vsel %vm259, %v475, 0
  %482 = vmatprep.subr.bf16.mxu0 0
  %483 = vmatpush1.bf16.xpose.msra.mxu0 0
  %484 = vmatprep.subr.bf16.mxu0 0
  %485 = vmatpush1.bf16.xpose.msra.mxu0 0
  %486 = vmatprep.subr.bf16.mxu0 0
  %487 = vmatpush1.bf16.xpose.msra.mxu0 0
  %488 = vmatprep.subr.bf16.mxu0 0
  %489 = vmatpush1.bf16.xpose.msra.mxu0 0
  %490 = vmatprep.subr.bf16.mxu0 0
  %491 = vmatpush1.bf16.xpose.msra.mxu0 0
  %492 = vmatprep.subr.bf16.mxu0 0
  %493 = vmatpush1.bf16.xpose.msra.mxu0 0
  %494 = vmatprep.subr.bf16.mxu0 0
  %495 = vmatpush1.bf16.xpose.msra.mxu0 0
  %496 = vmatprep.subr.bf16.mxu0 0
  %497 = vmatpush1.bf16.xpose.msra.mxu0 %v480
  %498 = vmatprep.subr.bf16.mxu0 0
  %499 = vmatpush2.bf16.xpose.msra.mxu0 0
  %500 = vmatprep.subr.bf16.mxu0 0
  %501 = vmatpush2.bf16.xpose.msra.mxu0 0
  %502 = vmatprep.subr.bf16.mxu0 0
  %503 = vmatpush2.bf16.xpose.msra.mxu0 0
  %504 = vmatprep.subr.bf16.mxu0 0
  %505 = vmatpush2.bf16.xpose.msra.mxu0 0
  %506 = vmatprep.subr.bf16.mxu0 0
  %507 = vmatpush2.bf16.xpose.msra.mxu0 0
  %508 = vmatprep.subr.bf16.mxu0 0
  %509 = vmatpush2.bf16.xpose.msra.mxu0 0
  %510 = vmatprep.subr.bf16.mxu0 0
  %511 = vmatpush2.bf16.xpose.msra.mxu0 0
  %512 = vmatprep.subr.bf16.mxu0 0
  %513 = vmatpush2.bf16.xpose.msra.mxu0 0
  %514 = vmatprep.mubr.bf16.mxu0 0
  %515 = vmatmul.mubr.bf16.gmra.mxu0 %v477
  %v516 = vpop.f32.mrf.mxu0
  %v517 = vadd.f32 0.0, %v516
  %v518 = vpop.f32.mrf.mxu0
  %v519 = vpop.f32.mrf.mxu0
  %v520 = vpop.f32.mrf.mxu0
  %521 = vdwg.mxu0
  %523 = vrot.lane.b32.xlu0 %v250, 120
  %v524 = vpop.permute.xlu0 %523
  %526 = vrot.lane.b32.xlu0 %v252, 120
  %v527 = vpop.permute.xlu0 %526
  %v529 = vsel %vm259, %v524, 0
  %v532 = vsel %vm259, %v527, 0
  %534 = vmatprep.subr.bf16.mxu0 0
  %535 = vmatpush1.bf16.xpose.msra.mxu0 0
  %536 = vmatprep.subr.bf16.mxu0 0
  %537 = vmatpush1.bf16.xpose.msra.mxu0 0
  %538 = vmatprep.subr.bf16.mxu0 0
  %539 = vmatpush1.bf16.xpose.msra.mxu0 0
  %540 = vmatprep.subr.bf16.mxu0 0
  %541 = vmatpush1.bf16.xpose.msra.mxu0 0
  %542 = vmatprep.subr.bf16.mxu0 0
  %543 = vmatpush1.bf16.xpose.msra.mxu0 0
  %544 = vmatprep.subr.bf16.mxu0 0
  %545 = vmatpush1.bf16.xpose.msra.mxu0 0
  %546 = vmatprep.subr.bf16.mxu0 0
  %547 = vmatpush1.bf16.xpose.msra.mxu0 0
  %548 = vmatprep.subr.bf16.mxu0 0
  %549 = vmatpush1.bf16.xpose.msra.mxu0 %v532
  %550 = vmatprep.subr.bf16.mxu0 0
  %551 = vmatpush2.bf16.xpose.msra.mxu0 0
  %552 = vmatprep.subr.bf16.mxu0 0
  %553 = vmatpush2.bf16.xpose.msra.mxu0 0
  %554 = vmatprep.subr.bf16.mxu0 0
  %555 = vmatpush2.bf16.xpose.msra.mxu0 0
  %556 = vmatprep.subr.bf16.mxu0 0
  %557 = vmatpush2.bf16.xpose.msra.mxu0 0
  %558 = vmatprep.subr.bf16.mxu0 0
  %559 = vmatpush2.bf16.xpose.msra.mxu0 0
  %560 = vmatprep.subr.bf16.mxu0 0
  %561 = vmatpush2.bf16.xpose.msra.mxu0 0
  %562 = vmatprep.subr.bf16.mxu0 0
  %563 = vmatpush2.bf16.xpose.msra.mxu0 0
  %564 = vmatprep.subr.bf16.mxu0 0
  %565 = vmatpush2.bf16.xpose.msra.mxu0 0
  %566 = vmatprep.mubr.bf16.mxu0 0
  %567 = vmatmul.mubr.bf16.gmra.mxu0 %v529
  %v568 = vpop.f32.mrf.mxu0
  %v569 = vadd.f32 0.0, %v568
  %v570 = vpop.f32.mrf.mxu0
  %v571 = vpop.f32.mrf.mxu0
  %v572 = vpop.f32.mrf.mxu0
  %573 = vdwg.mxu0
  %v574 = vsel %vm259, %v517, -inf
  %575 = vmax.xlane.f32.xlu0 %v574
  %v576 = vpop.xlane.xlu0 %575
  %v577 = vsel %vm259, %v569, -inf
  %578 = vmax.xlane.f32.xlu0 %v577
  %v579 = vpop.xlane.xlu0 %578
  %v580 = vsub.f32 %v517, %v576
  %v581 = vsub.f32 %v569, %v579
  %v582 = vmul.f32 %v580, 1.442695
  %v583 = vpow.pop %v582
  %v584 = vmul.f32 %v581, 1.442695
  %v585 = vpow.pop %v584
  %v586 = vsel %vm259, %v583, 0.0
  %587 = vadd.xlane.f32.xlu0 %v586
  %v588 = vpop.xlane.xlu0 %587
  %v589 = vsel %vm259, %v585, 0.0
  %590 = vadd.xlane.f32.xlu0 %v589
  %v591 = vpop.xlane.xlu0 %590
  %v592 = vrcp.pop %v588
  %v593 = vrcp.pop %v591
  %v594 = vmul.f32 %v583, %v592
  %v595 = vmul.f32 %v585, %v593
  %v596 = vpack.c.bf16 %v594, %v594
  %v597 = vpack.c.bf16 %v595, %v595
  %599 = vrot.lane.b32.xlu0 %v253, 120
  %v600 = vpop.permute.xlu0 %599
  %v602 = vsel %vm259, %v596, 0
  %v605 = vsel %vm379, %v600, 0
  %607 = vmatprep.subr.bf16.mxu0 0
  %608 = vmatpush1.bf16.msra.mxu0 0
  %609 = vmatprep.subr.bf16.mxu0 0
  %610 = vmatpush1.bf16.msra.mxu0 0
  %611 = vmatprep.subr.bf16.mxu0 0
  %612 = vmatpush1.bf16.msra.mxu0 0
  %613 = vmatprep.subr.bf16.mxu0 0
  %614 = vmatpush1.bf16.msra.mxu0 0
  %615 = vmatprep.subr.bf16.mxu0 0
  %616 = vmatpush1.bf16.msra.mxu0 0
  %617 = vmatprep.subr.bf16.mxu0 0
  %618 = vmatpush1.bf16.msra.mxu0 0
  %619 = vmatprep.subr.bf16.mxu0 0
  %620 = vmatpush1.bf16.msra.mxu0 0
  %621 = vmatprep.subr.bf16.mxu0 0
  %622 = vmatpush1.bf16.msra.mxu0 %v605
  %623 = vmatprep.subr.bf16.mxu0 0
  %624 = vmatpush2.bf16.msra.mxu0 0
  %625 = vmatprep.subr.bf16.mxu0 0
  %626 = vmatpush2.bf16.msra.mxu0 0
  %627 = vmatprep.subr.bf16.mxu0 0
  %628 = vmatpush2.bf16.msra.mxu0 0
  %629 = vmatprep.subr.bf16.mxu0 0
  %630 = vmatpush2.bf16.msra.mxu0 0
  %631 = vmatprep.subr.bf16.mxu0 0
  %632 = vmatpush2.bf16.msra.mxu0 0
  %633 = vmatprep.subr.bf16.mxu0 0
  %634 = vmatpush2.bf16.msra.mxu0 0
  %635 = vmatprep.subr.bf16.mxu0 0
  %636 = vmatpush2.bf16.msra.mxu0 0
  %637 = vmatprep.subr.bf16.mxu0 0
  %638 = vmatpush2.bf16.msra.mxu0 0
  %639 = vmatprep.mubr.bf16.mxu0 0
  %640 = vmatmul.mubr.bf16.gmra.mxu0 %v602
  %v641 = vpop.f32.mrf.mxu0
  %v642 = vadd.f32 0.0, %v641
  %v643 = vpop.f32.mrf.mxu0
  %v644 = vpop.f32.mrf.mxu0
  %v645 = vpop.f32.mrf.mxu0
  %646 = vdwg.mxu0
  %648 = vrot.lane.b32.xlu0 %v254, 120
  %v649 = vpop.permute.xlu0 %648
  %v651 = vsel %vm259, %v597, 0
  %v654 = vsel %vm379, %v649, 0
  %656 = vmatprep.subr.bf16.mxu0 0
  %657 = vmatpush1.bf16.msra.mxu0 0
  %658 = vmatprep.subr.bf16.mxu0 0
  %659 = vmatpush1.bf16.msra.mxu0 0
  %660 = vmatprep.subr.bf16.mxu0 0
  %661 = vmatpush1.bf16.msra.mxu0 0
  %662 = vmatprep.subr.bf16.mxu0 0
  %663 = vmatpush1.bf16.msra.mxu0 0
  %664 = vmatprep.subr.bf16.mxu0 0
  %665 = vmatpush1.bf16.msra.mxu0 0
  %666 = vmatprep.subr.bf16.mxu0 0
  %667 = vmatpush1.bf16.msra.mxu0 0
  %668 = vmatprep.subr.bf16.mxu0 0
  %669 = vmatpush1.bf16.msra.mxu0 0
  %670 = vmatprep.subr.bf16.mxu0 0
  %671 = vmatpush1.bf16.msra.mxu0 %v654
  %672 = vmatprep.subr.bf16.mxu0 0
  %673 = vmatpush2.bf16.msra.mxu0 0
  %674 = vmatprep.subr.bf16.mxu0 0
  %675 = vmatpush2.bf16.msra.mxu0 0
  %676 = vmatprep.subr.bf16.mxu0 0
  %677 = vmatpush2.bf16.msra.mxu0 0
  %678 = vmatprep.subr.bf16.mxu0 0
  %679 = vmatpush2.bf16.msra.mxu0 0
  %680 = vmatprep.subr.bf16.mxu0 0
  %681 = vmatpush2.bf16.msra.mxu0 0
  %682 = vmatprep.subr.bf16.mxu0 0
  %683 = vmatpush2.bf16.msra.mxu0 0
  %684 = vmatprep.subr.bf16.mxu0 0
  %685 = vmatpush2.bf16.msra.mxu0 0
  %686 = vmatprep.subr.bf16.mxu0 0
  %687 = vmatpush2.bf16.msra.mxu0 0
  %688 = vmatprep.mubr.bf16.mxu0 0
  %689 = vmatmul.mubr.bf16.gmra.mxu0 %v651
  %v690 = vpop.f32.mrf.mxu0
  %v691 = vadd.f32 0.0, %v690
  %v692 = vpop.f32.mrf.mxu0
  %v693 = vpop.f32.mrf.mxu0
  %v694 = vpop.f32.mrf.mxu0
  %695 = vdwg.mxu0
  %v696 = vpack.c.bf16 %v691, %v642
  %v698 = vsel %vm259, %v696, 0
  %v701 = vsel %vm379, %v256, 0
  %703 = vmatprep.subr.bf16.mxu0 0
  %704 = vmatpush1.bf16.msra.mxu0 0
  %705 = vmatprep.subr.bf16.mxu0 0
  %706 = vmatpush1.bf16.msra.mxu0 0
  %707 = vmatprep.subr.bf16.mxu0 0
  %708 = vmatpush1.bf16.msra.mxu0 0
  %709 = vmatprep.subr.bf16.mxu0 0
  %710 = vmatpush1.bf16.msra.mxu0 0
  %711 = vmatprep.subr.bf16.mxu0 0
  %712 = vmatpush1.bf16.msra.mxu0 0
  %713 = vmatprep.subr.bf16.mxu0 0
  %714 = vmatpush1.bf16.msra.mxu0 0
  %715 = vmatprep.subr.bf16.mxu0 0
  %716 = vmatpush1.bf16.msra.mxu0 0
  %717 = vmatprep.subr.bf16.mxu0 0
  %718 = vmatpush1.bf16.msra.mxu0 %v701
  %719 = vmatprep.subr.bf16.mxu0 0
  %720 = vmatpush2.bf16.msra.mxu0 0
  %721 = vmatprep.subr.bf16.mxu0 0
  %722 = vmatpush2.bf16.msra.mxu0 0
  %723 = vmatprep.subr.bf16.mxu0 0
  %724 = vmatpush2.bf16.msra.mxu0 0
  %725 = vmatprep.subr.bf16.mxu0 0
  %726 = vmatpush2.bf16.msra.mxu0 0
  %727 = vmatprep.subr.bf16.mxu0 0
  %728 = vmatpush2.bf16.msra.mxu0 0
  %729 = vmatprep.subr.bf16.mxu0 0
  %730 = vmatpush2.bf16.msra.mxu0 0
  %731 = vmatprep.subr.bf16.mxu0 0
  %732 = vmatpush2.bf16.msra.mxu0 0
  %733 = vmatprep.subr.bf16.mxu0 0
  %734 = vmatpush2.bf16.msra.mxu0 0
  %735 = vmatprep.mubr.bf16.mxu0 0
  %736 = vmatmul.mubr.bf16.gmra.mxu0 %v698
  %v737 = vpop.f32.mrf.mxu0
  %v738 = vadd.f32 0.0, %v737
  %v739 = vpop.f32.mrf.mxu0
  %v740 = vpop.f32.mrf.mxu0
  %v741 = vadd.f32 0.0, %v740
  %v742 = vpop.f32.mrf.mxu0
  %743 = vdwg.mxu0
  %v745 = vsel %vm259, %v469, 0
  %v748 = vsel %vm379, %v255, 0
  %750 = vmatprep.subr.bf16.mxu0 0
  %751 = vmatpush1.bf16.msra.mxu0 0
  %752 = vmatprep.subr.bf16.mxu0 0
  %753 = vmatpush1.bf16.msra.mxu0 0
  %754 = vmatprep.subr.bf16.mxu0 0
  %755 = vmatpush1.bf16.msra.mxu0 0
  %756 = vmatprep.subr.bf16.mxu0 0
  %757 = vmatpush1.bf16.msra.mxu0 0
  %758 = vmatprep.subr.bf16.mxu0 0
  %759 = vmatpush1.bf16.msra.mxu0 0
  %760 = vmatprep.subr.bf16.mxu0 0
  %761 = vmatpush1.bf16.msra.mxu0 0
  %762 = vmatprep.subr.bf16.mxu0 0
  %763 = vmatpush1.bf16.msra.mxu0 0
  %764 = vmatprep.subr.bf16.mxu0 0
  %765 = vmatpush1.bf16.msra.mxu0 %v748
  %766 = vmatprep.subr.bf16.mxu0 0
  %767 = vmatpush2.bf16.msra.mxu0 0
  %768 = vmatprep.subr.bf16.mxu0 0
  %769 = vmatpush2.bf16.msra.mxu0 0
  %770 = vmatprep.subr.bf16.mxu0 0
  %771 = vmatpush2.bf16.msra.mxu0 0
  %772 = vmatprep.subr.bf16.mxu0 0
  %773 = vmatpush2.bf16.msra.mxu0 0
  %774 = vmatprep.subr.bf16.mxu0 0
  %775 = vmatpush2.bf16.msra.mxu0 0
  %776 = vmatprep.subr.bf16.mxu0 0
  %777 = vmatpush2.bf16.msra.mxu0 0
  %778 = vmatprep.subr.bf16.mxu0 0
  %779 = vmatpush2.bf16.msra.mxu0 0
  %780 = vmatprep.subr.bf16.mxu0 0
  %781 = vmatpush2.bf16.msra.mxu0 0
  %782 = vmatprep.mubr.bf16.mxu0 0
  %783 = vmatmul.mubr.bf16.gmra.mxu0 %v745
  %v784 = vpop.f32.mrf.mxu0
  %v785 = vadd.f32 %v738, %v784
  %v786 = vpop.f32.mrf.mxu0
  %v787 = vpop.f32.mrf.mxu0
  %v788 = vadd.f32 %v741, %v787
  %v789 = vpop.f32.mrf.mxu0
  %790 = vdwg.mxu0
  %791 = vrot.lane.b32.xlu0 %v249, 112
  %v792 = vpop.permute.xlu0 %791
  %793 = vrot.lane.b32.xlu0 %v251, 112
  %v794 = vpop.permute.xlu0 %793
  %v796 = vsel %vm259, %v792, 0
  %v799 = vsel %vm259, %v794, 0
  %801 = vmatprep.subr.bf16.mxu0 0
  %802 = vmatpush1.bf16.xpose.msra.mxu0 0
  %803 = vmatprep.subr.bf16.mxu0 0
  %804 = vmatpush1.bf16.xpose.msra.mxu0 0
  %805 = vmatprep.subr.bf16.mxu0 0
  %806 = vmatpush1.bf16.xpose.msra.mxu0 0
  %807 = vmatprep.subr.bf16.mxu0 0
  %808 = vmatpush1.bf16.xpose.msra.mxu0 0
  %809 = vmatprep.subr.bf16.mxu0 0
  %810 = vmatpush1.bf16.xpose.msra.mxu0 0
  %811 = vmatprep.subr.bf16.mxu0 0
  %812 = vmatpush1.bf16.xpose.msra.mxu0 0
  %813 = vmatprep.subr.bf16.mxu0 0
  %814 = vmatpush1.bf16.xpose.msra.mxu0 0
  %815 = vmatprep.subr.bf16.mxu0 0
  %816 = vmatpush1.bf16.xpose.msra.mxu0 %v799
  %817 = vmatprep.subr.bf16.mxu0 0
  %818 = vmatpush2.bf16.xpose.msra.mxu0 0
  %819 = vmatprep.subr.bf16.mxu0 0
  %820 = vmatpush2.bf16.xpose.msra.mxu0 0
  %821 = vmatprep.subr.bf16.mxu0 0
  %822 = vmatpush2.bf16.xpose.msra.mxu0 0
  %823 = vmatprep.subr.bf16.mxu0 0
  %824 = vmatpush2.bf16.xpose.msra.mxu0 0
  %825 = vmatprep.subr.bf16.mxu0 0
  %826 = vmatpush2.bf16.xpose.msra.mxu0 0
  %827 = vmatprep.subr.bf16.mxu0 0
  %828 = vmatpush2.bf16.xpose.msra.mxu0 0
  %829 = vmatprep.subr.bf16.mxu0 0
  %830 = vmatpush2.bf16.xpose.msra.mxu0 0
  %831 = vmatprep.subr.bf16.mxu0 0
  %832 = vmatpush2.bf16.xpose.msra.mxu0 0
  %833 = vmatprep.mubr.bf16.mxu0 0
  %834 = vmatmul.mubr.bf16.gmra.mxu0 %v796
  %v835 = vpop.f32.mrf.mxu0
  %v836 = vadd.f32 0.0, %v835
  %v837 = vpop.f32.mrf.mxu0
  %v838 = vpop.f32.mrf.mxu0
  %v839 = vpop.f32.mrf.mxu0
  %840 = vdwg.mxu0
  %841 = vrot.lane.b32.xlu0 %v250, 112
  %v842 = vpop.permute.xlu0 %841
  %843 = vrot.lane.b32.xlu0 %v252, 112
  %v844 = vpop.permute.xlu0 %843
  %v846 = vsel %vm259, %v842, 0
  %v849 = vsel %vm259, %v844, 0
  %851 = vmatprep.subr.bf16.mxu0 0
  %852 = vmatpush1.bf16.xpose.msra.mxu0 0
  %853 = vmatprep.subr.bf16.mxu0 0
  %854 = vmatpush1.bf16.xpose.msra.mxu0 0
  %855 = vmatprep.subr.bf16.mxu0 0
  %856 = vmatpush1.bf16.xpose.msra.mxu0 0
  %857 = vmatprep.subr.bf16.mxu0 0
  %858 = vmatpush1.bf16.xpose.msra.mxu0 0
  %859 = vmatprep.subr.bf16.mxu0 0
  %860 = vmatpush1.bf16.xpose.msra.mxu0 0
  %861 = vmatprep.subr.bf16.mxu0 0
  %862 = vmatpush1.bf16.xpose.msra.mxu0 0
  %863 = vmatprep.subr.bf16.mxu0 0
  %864 = vmatpush1.bf16.xpose.msra.mxu0 0
  %865 = vmatprep.subr.bf16.mxu0 0
  %866 = vmatpush1.bf16.xpose.msra.mxu0 %v849
  %867 = vmatprep.subr.bf16.mxu0 0
  %868 = vmatpush2.bf16.xpose.msra.mxu0 0
  %869 = vmatprep.subr.bf16.mxu0 0
  %870 = vmatpush2.bf16.xpose.msra.mxu0 0
  %871 = vmatprep.subr.bf16.mxu0 0
  %872 = vmatpush2.bf16.xpose.msra.mxu0 0
  %873 = vmatprep.subr.bf16.mxu0 0
  %874 = vmatpush2.bf16.xpose.msra.mxu0 0
  %875 = vmatprep.subr.bf16.mxu0 0
  %876 = vmatpush2.bf16.xpose.msra.mxu0 0
  %877 = vmatprep.subr.bf16.mxu0 0
  %878 = vmatpush2.bf16.xpose.msra.mxu0 0
  %879 = vmatprep.subr.bf16.mxu0 0
  %880 = vmatpush2.bf16.xpose.msra.mxu0 0
  %881 = vmatprep.subr.bf16.mxu0 0
  %882 = vmatpush2.bf16.xpose.msra.mxu0 0
  %883 = vmatprep.mubr.bf16.mxu0 0
  %884 = vmatmul.mubr.bf16.gmra.mxu0 %v846
  %v885 = vpop.f32.mrf.mxu0
  %v886 = vadd.f32 0.0, %v885
  %v887 = vpop.f32.mrf.mxu0
  %v888 = vpop.f32.mrf.mxu0
  %v889 = vpop.f32.mrf.mxu0
  %890 = vdwg.mxu0
  %v891 = vsel %vm259, %v836, -inf
  %892 = vmax.xlane.f32.xlu0 %v891
  %v893 = vpop.xlane.xlu0 %892
  %v894 = vsel %vm259, %v886, -inf
  %895 = vmax.xlane.f32.xlu0 %v894
  %v896 = vpop.xlane.xlu0 %895
  %v897 = vsub.f32 %v836, %v893
  %v898 = vsub.f32 %v886, %v896
  %v899 = vmul.f32 %v897, 1.442695
  %v900 = vpow.pop %v899
  %v901 = vmul.f32 %v898, 1.442695
  %v902 = vpow.pop %v901
  %v903 = vsel %vm259, %v900, 0.0
  %904 = vadd.xlane.f32.xlu0 %v903
  %v905 = vpop.xlane.xlu0 %904
  %v906 = vsel %vm259, %v902, 0.0
  %907 = vadd.xlane.f32.xlu0 %v906
  %v908 = vpop.xlane.xlu0 %907
  %v909 = vrcp.pop %v905
  %v910 = vrcp.pop %v908
  %v911 = vmul.f32 %v900, %v909
  %v912 = vmul.f32 %v902, %v910
  %v913 = vpack.c.bf16 %v911, %v911
  %v914 = vpack.c.bf16 %v912, %v912
  %915 = vrot.lane.b32.xlu0 %v253, 112
  %v916 = vpop.permute.xlu0 %915
  %v918 = vsel %vm259, %v913, 0
  %v921 = vsel %vm379, %v916, 0
  %923 = vmatprep.subr.bf16.mxu0 0
  %924 = vmatpush1.bf16.msra.mxu0 0
  %925 = vmatprep.subr.bf16.mxu0 0
  %926 = vmatpush1.bf16.msra.mxu0 0
  %927 = vmatprep.subr.bf16.mxu0 0
  %928 = vmatpush1.bf16.msra.mxu0 0
  %929 = vmatprep.subr.bf16.mxu0 0
  %930 = vmatpush1.bf16.msra.mxu0 0
  %931 = vmatprep.subr.bf16.mxu0 0
  %932 = vmatpush1.bf16.msra.mxu0 0
  %933 = vmatprep.subr.bf16.mxu0 0
  %934 = vmatpush1.bf16.msra.mxu0 0
  %935 = vmatprep.subr.bf16.mxu0 0
  %936 = vmatpush1.bf16.msra.mxu0 0
  %937 = vmatprep.subr.bf16.mxu0 0
  %938 = vmatpush1.bf16.msra.mxu0 %v921
  %939 = vmatprep.subr.bf16.mxu0 0
  %940 = vmatpush2.bf16.msra.mxu0 0
  %941 = vmatprep.subr.bf16.mxu0 0
  %942 = vmatpush2.bf16.msra.mxu0 0
  %943 = vmatprep.subr.bf16.mxu0 0
  %944 = vmatpush2.bf16.msra.mxu0 0
  %945 = vmatprep.subr.bf16.mxu0 0
  %946 = vmatpush2.bf16.msra.mxu0 0
  %947 = vmatprep.subr.bf16.mxu0 0
  %948 = vmatpush2.bf16.msra.mxu0 0
  %949 = vmatprep.subr.bf16.mxu0 0
  %950 = vmatpush2.bf16.msra.mxu0 0
  %951 = vmatprep.subr.bf16.mxu0 0
  %952 = vmatpush2.bf16.msra.mxu0 0
  %953 = vmatprep.subr.bf16.mxu0 0
  %954 = vmatpush2.bf16.msra.mxu0 0
  %955 = vmatprep.mubr.bf16.mxu0 0
  %956 = vmatmul.mubr.bf16.gmra.mxu0 %v918
  %v957 = vpop.f32.mrf.mxu0
  %v958 = vadd.f32 0.0, %v957
  %v959 = vpop.f32.mrf.mxu0
  %v960 = vpop.f32.mrf.mxu0
  %v961 = vpop.f32.mrf.mxu0
  %962 = vdwg.mxu0
  %963 = vrot.lane.b32.xlu0 %v254, 112
  %v964 = vpop.permute.xlu0 %963
  %v966 = vsel %vm259, %v914, 0
  %v969 = vsel %vm379, %v964, 0
  %971 = vmatprep.subr.bf16.mxu0 0
  %972 = vmatpush1.bf16.msra.mxu0 0
  %973 = vmatprep.subr.bf16.mxu0 0
  %974 = vmatpush1.bf16.msra.mxu0 0
  %975 = vmatprep.subr.bf16.mxu0 0
  %976 = vmatpush1.bf16.msra.mxu0 0
  %977 = vmatprep.subr.bf16.mxu0 0
  %978 = vmatpush1.bf16.msra.mxu0 0
  %979 = vmatprep.subr.bf16.mxu0 0
  %980 = vmatpush1.bf16.msra.mxu0 0
  %981 = vmatprep.subr.bf16.mxu0 0
  %982 = vmatpush1.bf16.msra.mxu0 0
  %983 = vmatprep.subr.bf16.mxu0 0
  %984 = vmatpush1.bf16.msra.mxu0 0
  %985 = vmatprep.subr.bf16.mxu0 0
  %986 = vmatpush1.bf16.msra.mxu0 %v969
  %987 = vmatprep.subr.bf16.mxu0 0
  %988 = vmatpush2.bf16.msra.mxu0 0
  %989 = vmatprep.subr.bf16.mxu0 0
  %990 = vmatpush2.bf16.msra.mxu0 0
  %991 = vmatprep.subr.bf16.mxu0 0
  %992 = vmatpush2.bf16.msra.mxu0 0
  %993 = vmatprep.subr.bf16.mxu0 0
  %994 = vmatpush2.bf16.msra.mxu0 0
  %995 = vmatprep.subr.bf16.mxu0 0
  %996 = vmatpush2.bf16.msra.mxu0 0
  %997 = vmatprep.subr.bf16.mxu0 0
  %998 = vmatpush2.bf16.msra.mxu0 0
  %999 = vmatprep.subr.bf16.mxu0 0
  %1000 = vmatpush2.bf16.msra.mxu0 0
  %1001 = vmatprep.subr.bf16.mxu0 0
  %1002 = vmatpush2.bf16.msra.mxu0 0
  %1003 = vmatprep.mubr.bf16.mxu0 0
  %1004 = vmatmul.mubr.bf16.gmra.mxu0 %v966
  %v1005 = vpop.f32.mrf.mxu0
  %v1006 = vadd.f32 0.0, %v1005
  %v1007 = vpop.f32.mrf.mxu0
  %v1008 = vpop.f32.mrf.mxu0
  %v1009 = vpop.f32.mrf.mxu0
  %1010 = vdwg.mxu0
  %v1011 = vpack.c.bf16 %v1006, %v958
  %v1013 = vsel %vm259, %v1011, 0
  %v1016 = vsel %vm379, %v257, 0
  %1018 = vmatprep.subr.bf16.mxu0 0
  %1019 = vmatpush1.bf16.msra.mxu0 0
  %1020 = vmatprep.subr.bf16.mxu0 0
  %1021 = vmatpush1.bf16.msra.mxu0 0
  %1022 = vmatprep.subr.bf16.mxu0 0
  %1023 = vmatpush1.bf16.msra.mxu0 0
  %1024 = vmatprep.subr.bf16.mxu0 0
  %1025 = vmatpush1.bf16.msra.mxu0 0
  %1026 = vmatprep.subr.bf16.mxu0 0
  %1027 = vmatpush1.bf16.msra.mxu0 0
  %1028 = vmatprep.subr.bf16.mxu0 0
  %1029 = vmatpush1.bf16.msra.mxu0 0
  %1030 = vmatprep.subr.bf16.mxu0 0
  %1031 = vmatpush1.bf16.msra.mxu0 0
  %1032 = vmatprep.subr.bf16.mxu0 0
  %1033 = vmatpush1.bf16.msra.mxu0 %v1016
  %1034 = vmatprep.subr.bf16.mxu0 0
  %1035 = vmatpush2.bf16.msra.mxu0 0
  %1036 = vmatprep.subr.bf16.mxu0 0
  %1037 = vmatpush2.bf16.msra.mxu0 0
  %1038 = vmatprep.subr.bf16.mxu0 0
  %1039 = vmatpush2.bf16.msra.mxu0 0
  %1040 = vmatprep.subr.bf16.mxu0 0
  %1041 = vmatpush2.bf16.msra.mxu0 0
  %1042 = vmatprep.subr.bf16.mxu0 0
  %1043 = vmatpush2.bf16.msra.mxu0 0
  %1044 = vmatprep.subr.bf16.mxu0 0
  %1045 = vmatpush2.bf16.msra.mxu0 0
  %1046 = vmatprep.subr.bf16.mxu0 0
  %1047 = vmatpush2.bf16.msra.mxu0 0
  %1048 = vmatprep.subr.bf16.mxu0 0
  %1049 = vmatpush2.bf16.msra.mxu0 0
  %1050 = vmatprep.mubr.bf16.mxu0 0
  %1051 = vmatmul.mubr.bf16.gmra.mxu0 %v1013
  %v1052 = vpop.f32.mrf.mxu0
  %v1053 = vadd.f32 0.0, %v1052
  %v1054 = vpop.f32.mrf.mxu0
  %v1055 = vpop.f32.mrf.mxu0
  %v1056 = vadd.f32 0.0, %v1055
  %v1057 = vpop.f32.mrf.mxu0
  %1058 = vdwg.mxu0
  %v1059 = vadd.f32 %v785, %v1053
  %v1060 = vadd.f32 %v788, %v1056
  %1061 = vrot.lane.b32.xlu0 %v249, 104
  %v1062 = vpop.permute.xlu0 %1061
  %1063 = vrot.lane.b32.xlu0 %v251, 104
  %v1064 = vpop.permute.xlu0 %1063
  %v1066 = vsel %vm259, %v1062, 0
  %v1069 = vsel %vm259, %v1064, 0
  %1071 = vmatprep.subr.bf16.mxu0 0
  %1072 = vmatpush1.bf16.xpose.msra.mxu0 0
  %1073 = vmatprep.subr.bf16.mxu0 0
  %1074 = vmatpush1.bf16.xpose.msra.mxu0 0
  %1075 = vmatprep.subr.bf16.mxu0 0
  %1076 = vmatpush1.bf16.xpose.msra.mxu0 0
  %1077 = vmatprep.subr.bf16.mxu0 0
  %1078 = vmatpush1.bf16.xpose.msra.mxu0 0
  %1079 = vmatprep.subr.bf16.mxu0 0
  %1080 = vmatpush1.bf16.xpose.msra.mxu0 0
  %1081 = vmatprep.subr.bf16.mxu0 0
  %1082 = vmatpush1.bf16.xpose.msra.mxu0 0
  %1083 = vmatprep.subr.bf16.mxu0 0
  %1084 = vmatpush1.bf16.xpose.msra.mxu0 0
  %1085 = vmatprep.subr.bf16.mxu0 0
  %1086 = vmatpush1.bf16.xpose.msra.mxu0 %v1069
  %1087 = vmatprep.subr.bf16.mxu0 0
  %1088 = vmatpush2.bf16.xpose.msra.mxu0 0
  %1089 = vmatprep.subr.bf16.mxu0 0
  %1090 = vmatpush2.bf16.xpose.msra.mxu0 0
  %1091 = vmatprep.subr.bf16.mxu0 0
  %1092 = vmatpush2.bf16.xpose.msra.mxu0 0
  %1093 = vmatprep.subr.bf16.mxu0 0
  %1094 = vmatpush2.bf16.xpose.msra.mxu0 0
  %1095 = vmatprep.subr.bf16.mxu0 0
  %1096 = vmatpush2.bf16.xpose.msra.mxu0 0
  %1097 = vmatprep.subr.bf16.mxu0 0
  %1098 = vmatpush2.bf16.xpose.msra.mxu0 0
  %1099 = vmatprep.subr.bf16.mxu0 0
  %1100 = vmatpush2.bf16.xpose.msra.mxu0 0
  %1101 = vmatprep.subr.bf16.mxu0 0
  %1102 = vmatpush2.bf16.xpose.msra.mxu0 0
  %1103 = vmatprep.mubr.bf16.mxu0 0
  %1104 = vmatmul.mubr.bf16.gmra.mxu0 %v1066
  %v1105 = vpop.f32.mrf.mxu0
  %v1106 = vadd.f32 0.0, %v1105
  %v1107 = vpop.f32.mrf.mxu0
  %v1108 = vpop.f32.mrf.mxu0
  %v1109 = vpop.f32.mrf.mxu0
  %1110 = vdwg.mxu0
  %1111 = vrot.lane.b32.xlu0 %v250, 104
  %v1112 = vpop.permute.xlu0 %1111
  %1113 = vrot.lane.b32.xlu0 %v252, 104
  %v1114 = vpop.permute.xlu0 %1113
  %v1116 = vsel %vm259, %v1112, 0
  %v1119 = vsel %vm259, %v1114, 0
  %1121 = vmatprep.subr.bf16.mxu0 0
  %1122 = vmatpush1.bf16.xpose.msra.mxu0 0
  %1123 = vmatprep.subr.bf16.mxu0 0
  %1124 = vmatpush1.bf16.xpose.msra.mxu0 0
  %1125 = vmatprep.subr.bf16.mxu0 0
  %1126 = vmatpush1.bf16.xpose.msra.mxu0 0
  %1127 = vmatprep.subr.bf16.mxu0 0
  %1128 = vmatpush1.bf16.xpose.msra.mxu0 0
  %1129 = vmatprep.subr.bf16.mxu0 0
  %1130 = vmatpush1.bf16.xpose.msra.mxu0 0
  %1131 = vmatprep.subr.bf16.mxu0 0
  %1132 = vmatpush1.bf16.xpose.msra.mxu0 0
  %1133 = vmatprep.subr.bf16.mxu0 0
  %1134 = vmatpush1.bf16.xpose.msra.mxu0 0
  %1135 = vmatprep.subr.bf16.mxu0 0
  %1136 = vmatpush1.bf16.xpose.msra.mxu0 %v1119
  %1137 = vmatprep.subr.bf16.mxu0 0
  %1138 = vmatpush2.bf16.xpose.msra.mxu0 0
  %1139 = vmatprep.subr.bf16.mxu0 0
  %1140 = vmatpush2.bf16.xpose.msra.mxu0 0
  %1141 = vmatprep.subr.bf16.mxu0 0
  %1142 = vmatpush2.bf16.xpose.msra.mxu0 0
  %1143 = vmatprep.subr.bf16.mxu0 0
  %1144 = vmatpush2.bf16.xpose.msra.mxu0 0
  %1145 = vmatprep.subr.bf16.mxu0 0
  %1146 = vmatpush2.bf16.xpose.msra.mxu0 0
  %1147 = vmatprep.subr.bf16.mxu0 0
  %1148 = vmatpush2.bf16.xpose.msra.mxu0 0
  %1149 = vmatprep.subr.bf16.mxu0 0
  %1150 = vmatpush2.bf16.xpose.msra.mxu0 0
  %1151 = vmatprep.subr.bf16.mxu0 0
  %1152 = vmatpush2.bf16.xpose.msra.mxu0 0
  %1153 = vmatprep.mubr.bf16.mxu0 0
  %1154 = vmatmul.mubr.bf16.gmra.mxu0 %v1116
  %v1155 = vpop.f32.mrf.mxu0
  %v1156 = vadd.f32 0.0, %v1155
  %v1157 = vpop.f32.mrf.mxu0
  %v1158 = vpop.f32.mrf.mxu0
  %v1159 = vpop.f32.mrf.mxu0
  %1160 = vdwg.mxu0
  %v1161 = vsel %vm259, %v1106, -inf
  %1162 = vmax.xlane.f32.xlu0 %v1161
  %v1163 = vpop.xlane.xlu0 %1162
  %v1164 = vsel %vm259, %v1156, -inf
  %1165 = vmax.xlane.f32.xlu0 %v1164
  %v1166 = vpop.xlane.xlu0 %1165
  %v1167 = vsub.f32 %v1106, %v1163
  %v1168 = vsub.f32 %v1156, %v1166
  %v1169 = vmul.f32 %v1167, 1.442695
  %v1170 = vpow.pop %v1169
  %v1171 = vmul.f32 %v1168, 1.442695
  %v1172 = vpow.pop %v1171
  %v1173 = vsel %vm259, %v1170, 0.0
  %1174 = vadd.xlane.f32.xlu0 %v1173
  %v1175 = vpop.xlane.xlu0 %1174
  %v1176 = vsel %vm259, %v1172, 0.0
  %1177 = vadd.xlane.f32.xlu0 %v1176
  %v1178 = vpop.xlane.xlu0 %1177
  %v1179 = vrcp.pop %v1175
  %v1180 = vrcp.pop %v1178
  %v1181 = vmul.f32 %v1170, %v1179
  %v1182 = vmul.f32 %v1172, %v1180
  %v1183 = vpack.c.bf16 %v1181, %v1181
  %v1184 = vpack.c.bf16 %v1182, %v1182
  %1185 = vrot.lane.b32.xlu0 %v253, 104
  %v1186 = vpop.permute.xlu0 %1185
  %v1188 = vsel %vm259, %v1183, 0
  %v1191 = vsel %vm379, %v1186, 0
  %1193 = vmatprep.subr.bf16.mxu0 0
  %1194 = vmatpush1.bf16.msra.mxu0 0
  %1195 = vmatprep.subr.bf16.mxu0 0
  %1196 = vmatpush1.bf16.msra.mxu0 0
  %1197 = vmatprep.subr.bf16.mxu0 0
  %1198 = vmatpush1.bf16.msra.mxu0 0
  %1199 = vmatprep.subr.bf16.mxu0 0
  %1200 = vmatpush1.bf16.msra.mxu0 0
  %1201 = vmatprep.subr.bf16.mxu0 0
  %1202 = vmatpush1.bf16.msra.mxu0 0
  %1203 = vmatprep.subr.bf16.mxu0 0
  %1204 = vmatpush1.bf16.msra.mxu0 0
  %1205 = vmatprep.subr.bf16.mxu0 0
  %1206 = vmatpush1.bf16.msra.mxu0 0
  %1207 = vmatprep.subr.bf16.mxu0 0
  %1208 = vmatpush1.bf16.msra.mxu0 %v1191
  %1209 = vmatprep.subr.bf16.mxu0 0
  %1210 = vmatpush2.bf16.msra.mxu0 0
  %1211 = vmatprep.subr.bf16.mxu0 0
  %1212 = vmatpush2.bf16.msra.mxu0 0
  %1213 = vmatprep.subr.bf16.mxu0 0
  %1214 = vmatpush2.bf16.msra.mxu0 0
  %1215 = vmatprep.subr.bf16.mxu0 0
  %1216 = vmatpush2.bf16.msra.mxu0 0
  %1217 = vmatprep.subr.bf16.mxu0 0
  %1218 = vmatpush2.bf16.msra.mxu0 0
  %1219 = vmatprep.subr.bf16.mxu0 0
  %1220 = vmatpush2.bf16.msra.mxu0 0
  %1221 = vmatprep.subr.bf16.mxu0 0
  %1222 = vmatpush2.bf16.msra.mxu0 0
  %1223 = vmatprep.subr.bf16.mxu0 0
  %1224 = vmatpush2.bf16.msra.mxu0 0
  %1225 = vmatprep.mubr.bf16.mxu0 0
  %1226 = vmatmul.mubr.bf16.gmra.mxu0 %v1188
  %v1227 = vpop.f32.mrf.mxu0
  %v1228 = vadd.f32 0.0, %v1227
  %v1229 = vpop.f32.mrf.mxu0
  %v1230 = vpop.f32.mrf.mxu0
  %v1231 = vpop.f32.mrf.mxu0
  %1232 = vdwg.mxu0
  %1233 = vrot.lane.b32.xlu0 %v254, 104
  %v1234 = vpop.permute.xlu0 %1233
  %v1236 = vsel %vm259, %v1184, 0
  %v1239 = vsel %vm379, %v1234, 0
  %1241 = vmatprep.subr.bf16.mxu0 0
  %1242 = vmatpush1.bf16.msra.mxu0 0
  %1243 = vmatprep.subr.bf16.mxu0 0
  %1244 = vmatpush1.bf16.msra.mxu0 0
  %1245 = vmatprep.subr.bf16.mxu0 0
  %1246 = vmatpush1.bf16.msra.mxu0 0
  %1247 = vmatprep.subr.bf16.mxu0 0
  %1248 = vmatpush1.bf16.msra.mxu0 0
  %1249 = vmatprep.subr.bf16.mxu0 0
  %1250 = vmatpush1.bf16.msra.mxu0 0
  %1251 = vmatprep.subr.bf16.mxu0 0
  %1252 = vmatpush1.bf16.msra.mxu0 0
  %1253 = vmatprep.subr.bf16.mxu0 0
  %1254 = vmatpush1.bf16.msra.mxu0 0
  %1255 = vmatprep.subr.bf16.mxu0 0
  %1256 = vmatpush1.bf16.msra.mxu0 %v1239
  %1257 = vmatprep.subr.bf16.mxu0 0
  %1258 = vmatpush2.bf16.msra.mxu0 0
  %1259 = vmatprep.subr.bf16.mxu0 0
  %1260 = vmatpush2.bf16.msra.mxu0 0
  %1261 = vmatprep.subr.bf16.mxu0 0
  %1262 = vmatpush2.bf16.msra.mxu0 0
  %1263 = vmatprep.subr.bf16.mxu0 0
  %1264 = vmatpush2.bf16.msra.mxu0 0
  %1265 = vmatprep.subr.bf16.mxu0 0
  %1266 = vmatpush2.bf16.msra.mxu0 0
  %1267 = vmatprep.subr.bf16.mxu0 0
  %1268 = vmatpush2.bf16.msra.mxu0 0
  %1269 = vmatprep.subr.bf16.mxu0 0
  %1270 = vmatpush2.bf16.msra.mxu0 0
  %1271 = vmatprep.subr.bf16.mxu0 0
  %1272 = vmatpush2.bf16.msra.mxu0 0
  %1273 = vmatprep.mubr.bf16.mxu0 0
  %1274 = vmatmul.mubr.bf16.gmra.mxu0 %v1236
  %v1275 = vpop.f32.mrf.mxu0
  %v1276 = vadd.f32 0.0, %v1275
  %v1277 = vpop.f32.mrf.mxu0
  %v1278 = vpop.f32.mrf.mxu0
  %v1279 = vpop.f32.mrf.mxu0
  %1280 = vdwg.mxu0
  %v1281 = vpack.c.bf16 %v1276, %v1228
  %v1283 = vsel %vm259, %v1281, 0
  %v1286 = vsel %vm379, %v258, 0
  %1288 = vmatprep.subr.bf16.mxu0 0
  %1289 = vmatpush1.bf16.msra.mxu0 0
  %1290 = vmatprep.subr.bf16.mxu0 0
  %1291 = vmatpush1.bf16.msra.mxu0 0
  %1292 = vmatprep.subr.bf16.mxu0 0
  %1293 = vmatpush1.bf16.msra.mxu0 0
  %1294 = vmatprep.subr.bf16.mxu0 0
  %1295 = vmatpush1.bf16.msra.mxu0 0
  %1296 = vmatprep.subr.bf16.mxu0 0
  %1297 = vmatpush1.bf16.msra.mxu0 0
  %1298 = vmatprep.subr.bf16.mxu0 0
  %1299 = vmatpush1.bf16.msra.mxu0 0
  %1300 = vmatprep.subr.bf16.mxu0 0
  %1301 = vmatpush1.bf16.msra.mxu0 0
  %1302 = vmatprep.subr.bf16.mxu0 0
  %1303 = vmatpush1.bf16.msra.mxu0 %v1286
  %1304 = vmatprep.subr.bf16.mxu0 0
  %1305 = vmatpush2.bf16.msra.mxu0 0
  %1306 = vmatprep.subr.bf16.mxu0 0
  %1307 = vmatpush2.bf16.msra.mxu0 0
  %1308 = vmatprep.subr.bf16.mxu0 0
  %1309 = vmatpush2.bf16.msra.mxu0 0
  %1310 = vmatprep.subr.bf16.mxu0 0
  %1311 = vmatpush2.bf16.msra.mxu0 0
  %1312 = vmatprep.subr.bf16.mxu0 0
  %1313 = vmatpush2.bf16.msra.mxu0 0
  %1314 = vmatprep.subr.bf16.mxu0 0
  %1315 = vmatpush2.bf16.msra.mxu0 0
  %1316 = vmatprep.subr.bf16.mxu0 0
  %1317 = vmatpush2.bf16.msra.mxu0 0
  %1318 = vmatprep.subr.bf16.mxu0 0
  %1319 = vmatpush2.bf16.msra.mxu0 0
  %1320 = vmatprep.mubr.bf16.mxu0 0
  %1321 = vmatmul.mubr.bf16.gmra.mxu0 %v1283
  %v1322 = vpop.f32.mrf.mxu0
  %v1323 = vadd.f32 0.0, %v1322
  %v1324 = vpop.f32.mrf.mxu0
  %v1325 = vpop.f32.mrf.mxu0
  %v1326 = vadd.f32 0.0, %v1325
  %v1327 = vpop.f32.mrf.mxu0
  %1328 = vdwg.mxu0
  %v1329 = vadd.f32 %v1059, %v1323
  %v1330 = vadd.f32 %v1060, %v1326
  %v1331 = vadd.f32 %v44, %v1329
  %v1332 = vadd.f32 %v45, %v1330
  %v1333 = vld [vmem:[%s9] sm:$0x1]
  %v1335 = vlaneseq
  %v1336 = vshrl.u32 %v1335, 7
  %v1337 = vsub.s32 0, %v1336
  %v1338 = vrot.slane %v1333, %v1337
  %v1340 = vadd.f32 %v1331, %v1338
  %v1341 = vadd.f32 %v1332, %v1338
  %v1342 = vsel %vm71, %v1340, 0.0
  %1343 = vadd.xlane.f32.xlu0 %v1342
  %v1344 = vpop.xlane.xlu0 %1343
  %v1345 = vsel %vm71, %v1341, 0.0
  %1346 = vadd.xlane.f32.xlu0 %v1345
  %v1347 = vpop.xlane.xlu0 %1346
  %v1348 = vrcp.pop 32.0
  %v1349 = vmul.f32 %v1344, %v1348
  %v1350 = vmul.f32 %v1347, %v1348
  %v1351 = vsub.f32 %v1340, %v1349
  %v1352 = vsub.f32 %v1341, %v1350
  %v1353 = vmul.f32 %v1351, %v1351
  %v1354 = vmul.f32 %v1352, %v1352
  %v1355 = vsel %vm71, %v1353, 0.0
  %1356 = vadd.xlane.f32.xlu0 %v1355
  %v1357 = vpop.xlane.xlu0 %1356
  %v1358 = vsel %vm71, %v1354, 0.0
  %1359 = vadd.xlane.f32.xlu0 %v1358
  %v1360 = vpop.xlane.xlu0 %1359
  %v1361 = vmul.f32 %v1357, %v1348
  %v1362 = vmul.f32 %v1360, %v1348
  %v1363 = vadd.f32 %v1361, 1e-05
  %v1364 = vadd.f32 %v1362, 1e-05
  %v1365 = vrsqrt.pop %v1363
  %v1366 = vrsqrt.pop %v1364
  %v1367 = vmul.f32 %v1351, %v1365
  %v1368 = vmul.f32 %v1352, %v1366
  %v1369 = vld [vmem:[%s10] sm:$0x1]
  %v1371 = vlaneseq
  %v1372 = vshrl.u32 %v1371, 7
  %v1373 = vsub.s32 0, %v1372
  %v1374 = vrot.slane %v1369, %v1373
  %v1376 = vmul.f32 %v1367, %v1374
  %v1377 = vmul.f32 %v1368, %v1374
  %v1378 = vld [vmem:[%s11] sm:$0x1]
  %v1380 = vlaneseq
  %v1381 = vshrl.u32 %v1380, 7
  %v1382 = vsub.s32 0, %v1381
  %v1383 = vrot.slane %v1378, %v1382
  %v1385 = vadd.f32 %v1376, %v1383
  %v1386 = vadd.f32 %v1377, %v1383
  %1387 = vst.msk [vmem:[%s12] sm:$0xff] %vm71, %v1385
  %1388 = vst.msk [vmem:[%s12 + $0x8] sm:$0xff] %vm71, %v1386
  // Predicated region
  $region50: #{transformer_forward.16} parent=0 // pred_check
    _
  $region51: #{transformer_forward.16} parent=0 // pred_check_branch
    %1390 = sbr.rel (0) target = $region53
  $region52: #{transformer_forward.16} parent=0 // pred_region
    _
  $region53: #{transformer_forward.16} parent=0 // pred_fallthru
    _
  // Predicated region
  $region54: #{transformer_forward.16} parent=0 // pred_check
    _
  $region55: #{transformer_forward.16} parent=0 // pred_check_branch
    %1392 = sbr.rel (0) target = $region57
  $region56: #{transformer_forward.16} parent=0 // pred_region
    _
  $region57: #{transformer_forward.16} parent=0 // pred_fallthru
    _

// kernel: transformer_forward.11
$region0: #{transformer_forward.11}
  #allocation0 [shape = 'u32[]', space=smem, size = 0x4, offset = 0x4, fixed_abs, tag = 'smem constant byte address 0x4 - core index']
  #allocation1 [shape = 'u32[144,128]{1,0:T(1,128)}', space=vmem, size = 0x12000, scoped, tag = 'internal scratch']
  %s0 = inlined_call_operand.vmem [shape: f32[2,8,32], index: 0, kind: input, shape index: {}]
  %s1 = inlined_call_operand.vmem [shape: bf16[32,32], index: 1, kind: input, shape index: {}]
  %s2 = inlined_call_operand.vmem [shape: f32[1,32], index: 2, kind: input, shape index: {}]
  %s3 = inlined_call_operand.vmem [shape: bf16[32,32], index: 3, kind: input, shape index: {}]
  %s4 = inlined_call_operand.vmem [shape: f32[1,32], index: 4, kind: input, shape index: {}]
  %s5 = inlined_call_operand.vmem [shape: bf16[32,32], index: 5, kind: input, shape index: {}]
  %s6 = inlined_call_operand.vmem [shape: f32[1,32], index: 6, kind: input, shape index: {}]
  %s7 = inlined_call_operand.vmem [shape: bf16[32,32], index: 7, kind: input, shape index: {}]
  %s8 = inlined_call_operand.vmem [shape: f32[1,32], index: 8, kind: input, shape index: {}]
  %s9 = inlined_call_operand.vmem [shape: f32[1,32], index: 9, kind: input, shape index: {}]
  %s10 = inlined_call_operand.vmem [shape: f32[1,32], index: 10, kind: input, shape index: {}]
  %s11 = inlined_call_operand.vmem [shape: f32[2,8,32], index: 11, kind: output, shape index: {}]
  %s12 = sld [smem:[#allocation0]]
  $region54: #{transformer_forward.11} parent=0
    _
  %s14 = ssub.s32 1, %s12
  %s15 = scalar_select 0, %s14, %s12
  // Predicated region
  $region2: #{transformer_forward.11} parent=0 // pred_check
    _
  $region3: #{transformer_forward.11} parent=0 // pred_check_branch
    %17 = sbr.rel (0) target = $region5
  $region4: #{transformer_forward.11} parent=0 // pred_region
    _
  $region5: #{transformer_forward.11} parent=0 // pred_fallthru
    _
  // Predicated region
  $region6: #{transformer_forward.11} parent=0 // pred_check
    _
  $region7: #{transformer_forward.11} parent=0 // pred_check_branch
    %19 = sbr.rel (0) target = $region9
  $region8: #{transformer_forward.11} parent=0 // pred_region
    _
  $region9: #{transformer_forward.11} parent=0 // pred_fallthru
    _
  // Predicated region
  $region10: #{transformer_forward.11} parent=0 // pred_check
    _
  $region11: #{transformer_forward.11} parent=0 // pred_check_branch
    %21 = sbr.rel (0) target = $region13
  $region12: #{transformer_forward.11} parent=0 // pred_region
    _
  $region13: #{transformer_forward.11} parent=0 // pred_fallthru
    _
  // Predicated region
  $region14: #{transformer_forward.11} parent=0 // pred_check
    _
  $region15: #{transformer_forward.11} parent=0 // pred_check_branch
    %23 = sbr.rel (0) target = $region17
  $region16: #{transformer_forward.11} parent=0 // pred_region
    _
  $region17: #{transformer_forward.11} parent=0 // pred_fallthru
    _
  // Predicated region
  $region18: #{transformer_forward.11} parent=0 // pred_check
    _
  $region19: #{transformer_forward.11} parent=0 // pred_check_branch
    %25 = sbr.rel (0) target = $region21
  $region20: #{transformer_forward.11} parent=0 // pred_region
    _
  $region21: #{transformer_forward.11} parent=0 // pred_fallthru
    _
  // Predicated region
  $region22: #{transformer_forward.11} parent=0 // pred_check
    _
  $region23: #{transformer_forward.11} parent=0 // pred_check_branch
    %27 = sbr.rel (0) target = $region25
  $region24: #{transformer_forward.11} parent=0 // pred_region
    _
  $region25: #{transformer_forward.11} parent=0 // pred_fallthru
    _
  // Predicated region
  $region26: #{transformer_forward.11} parent=0 // pred_check
    _
  $region27: #{transformer_forward.11} parent=0 // pred_check_branch
    %29 = sbr.rel (0) target = $region29
  $region28: #{transformer_forward.11} parent=0 // pred_region
    _
  $region29: #{transformer_forward.11} parent=0 // pred_fallthru
    _
  // Predicated region
  $region30: #{transformer_forward.11} parent=0 // pred_check
    _
  $region31: #{transformer_forward.11} parent=0 // pred_check_branch
    %31 = sbr.rel (0) target = $region33
  $region32: #{transformer_forward.11} parent=0 // pred_region
    _
  $region33: #{transformer_forward.11} parent=0 // pred_fallthru
    _
  // Predicated region
  $region34: #{transformer_forward.11} parent=0 // pred_check
    _
  $region35: #{transformer_forward.11} parent=0 // pred_check_branch
    %33 = sbr.rel (0) target = $region37
  $region36: #{transformer_forward.11} parent=0 // pred_region
    _
  $region37: #{transformer_forward.11} parent=0 // pred_fallthru
    _
  // Predicated region
  $region38: #{transformer_forward.11} parent=0 // pred_check
    _
  $region39: #{transformer_forward.11} parent=0 // pred_check_branch
    %35 = sbr.rel (0) target = $region41
  $region40: #{transformer_forward.11} parent=0 // pred_region
    _
  $region41: #{transformer_forward.11} parent=0 // pred_fallthru
    _
  // Predicated region
  $region42: #{transformer_forward.11} parent=0 // pred_check
    _
  $region43: #{transformer_forward.11} parent=0 // pred_check_branch
    %37 = sbr.rel (0) target = $region45
  $region44: #{transformer_forward.11} parent=0 // pred_region
    _
  $region45: #{transformer_forward.11} parent=0 // pred_fallthru
    _
  %v39 = vld [vmem:[%s0] sm:$0xff]
  %v40 = vld [vmem:[%s0 + $0x8] sm:$0xff]
  %v41 = vpack.c.bf16 %v40, %v39
  %v42 = vld [vmem:[%s1] sm:$0xf]
  %v43 = vld [vmem:[%s1 + $0x4] sm:$0xf]
  %v44 = vld [vmem:[%s1 + $0x8] sm:$0xf]
  %v45 = vld [vmem:[%s1 + $0xc] sm:$0xf]
  %v46 = vld [vmem:[%s2] sm:$0x1]
  %v48 = vlaneseq
  %v49 = vshrl.u32 %v48, 7
  %v50 = vsub.s32 0, %v49
  %v51 = vrot.slane %v46, %v50
  %v57 = vunpack.c.l.b16 %v42
  %v58 = vunpack.c.l.b16 %v43
  %v59 = vunpack.c.l.b16 %v44
  %v60 = vunpack.c.l.b16 %v45
  %v61 = vpack.c.b16 %v58, %v57
  %v62 = vpack.c.b16 %v60, %v59
  %vm65 = vcmask 261120
  %v67 = vsel %vm65, %v41, 0
  %69 = vmatprep.subr.bf16.mxu0 0
  %70 = vmatpush1.bf16.msra.mxu0 0
  %71 = vmatprep.subr.bf16.mxu0 0
  %72 = vmatpush1.bf16.msra.mxu0 0
  %73 = vmatprep.subr.bf16.mxu0 0
  %74 = vmatpush1.bf16.msra.mxu0 0
  %75 = vmatprep.subr.bf16.mxu0 0
  %76 = vmatpush1.bf16.msra.mxu0 0
  %77 = vmatprep.subr.bf16.mxu0 0
  %78 = vmatpush1.bf16.msra.mxu0 0
  %79 = vmatprep.subr.bf16.mxu0 0
  %80 = vmatpush1.bf16.msra.mxu0 0
  %81 = vmatprep.subr.bf16.mxu0 0
  %82 = vmatpush1.bf16.msra.mxu0 %v62
  %83 = vmatprep.subr.bf16.mxu0 0
  %84 = vmatpush1.bf16.msra.mxu0 %v61
  %85 = vmatprep.subr.bf16.mxu0 0
  %86 = vmatpush2.bf16.msra.mxu0 0
  %87 = vmatprep.subr.bf16.mxu0 0
  %88 = vmatpush2.bf16.msra.mxu0 0
  %89 = vmatprep.subr.bf16.mxu0 0
  %90 = vmatpush2.bf16.msra.mxu0 0
  %91 = vmatprep.subr.bf16.mxu0 0
  %92 = vmatpush2.bf16.msra.mxu0 0
  %93 = vmatprep.subr.bf16.mxu0 0
  %94 = vmatpush2.bf16.msra.mxu0 0
  %95 = vmatprep.subr.bf16.mxu0 0
  %96 = vmatpush2.bf16.msra.mxu0 0
  %97 = vmatprep.subr.bf16.mxu0 0
  %98 = vmatpush2.bf16.msra.mxu0 0
  %99 = vmatprep.subr.bf16.mxu0 0
  %100 = vmatpush2.bf16.msra.mxu0 0
  %101 = vmatprep.mubr.bf16.mxu0 0
  %102 = vmatmul.mubr.bf16.gmra.mxu0 %v67
  %v103 = vpop.f32.mrf.mxu0
  %v104 = vadd.f32 %v51, %v103
  %v105 = vpop.f32.mrf.mxu0
  %v106 = vpop.f32.mrf.mxu0
  %v107 = vadd.f32 %v51, %v106
  %v108 = vpop.f32.mrf.mxu0
  %109 = vdwg.mxu0
  %v110 = vmul.f32 %v104, 0.35355338
  %v111 = vmul.f32 %v107, 0.35355338
  %v112 = vld [vmem:[%s3] sm:$0xf]
  %v113 = vld [vmem:[%s3 + $0x4] sm:$0xf]
  %v114 = vld [vmem:[%s3 + $0x8] sm:$0xf]
  %v115 = vld [vmem:[%s3 + $0xc] sm:$0xf]
  %v116 = vld [vmem:[%s4] sm:$0x1]
  %v118 = vlaneseq
  %v119 = vshrl.u32 %v118, 7
  %v120 = vsub.s32 0, %v119
  %v121 = vrot.slane %v116, %v120
  %v127 = vunpack.c.l.b16 %v112
  %v128 = vunpack.c.l.b16 %v113
  %v129 = vunpack.c.l.b16 %v114
  %v130 = vunpack.c.l.b16 %v115
  %v131 = vpack.c.b16 %v128, %v127
  %v132 = vpack.c.b16 %v130, %v129
  %135 = vmatprep.subr.bf16.mxu0 0
  %136 = vmatpush1.bf16.msra.mxu0 0
  %137 = vmatprep.subr.bf16.mxu0 0
  %138 = vmatpush1.bf16.msra.mxu0 0
  %139 = vmatprep.subr.bf16.mxu0 0
  %140 = vmatpush1.bf16.msra.mxu0 0
  %141 = vmatprep.subr.bf16.mxu0 0
  %142 = vmatpush1.bf16.msra.mxu0 0
  %143 = vmatprep.subr.bf16.mxu0 0
  %144 = vmatpush1.bf16.msra.mxu0 0
  %145 = vmatprep.subr.bf16.mxu0 0
  %146 = vmatpush1.bf16.msra.mxu0 0
  %147 = vmatprep.subr.bf16.mxu0 0
  %148 = vmatpush1.bf16.msra.mxu0 %v132
  %149 = vmatprep.subr.bf16.mxu0 0
  %150 = vmatpush1.bf16.msra.mxu0 %v131
  %151 = vmatprep.subr.bf16.mxu0 0
  %152 = vmatpush2.bf16.msra.mxu0 0
  %153 = vmatprep.subr.bf16.mxu0 0
  %154 = vmatpush2.bf16.msra.mxu0 0
  %155 = vmatprep.subr.bf16.mxu0 0
  %156 = vmatpush2.bf16.msra.mxu0 0
  %157 = vmatprep.subr.bf16.mxu0 0
  %158 = vmatpush2.bf16.msra.mxu0 0
  %159 = vmatprep.subr.bf16.mxu0 0
  %160 = vmatpush2.bf16.msra.mxu0 0
  %161 = vmatprep.subr.bf16.mxu0 0
  %162 = vmatpush2.bf16.msra.mxu0 0
  %163 = vmatprep.subr.bf16.mxu0 0
  %164 = vmatpush2.bf16.msra.mxu0 0
  %165 = vmatprep.subr.bf16.mxu0 0
  %166 = vmatpush2.bf16.msra.mxu0 0
  %167 = vmatprep.mubr.bf16.mxu0 0
  %168 = vmatmul.mubr.bf16.gmra.mxu0 %v67
  %v169 = vpop.f32.mrf.mxu0
  %v170 = vadd.f32 %v121, %v169
  %v171 = vpop.f32.mrf.mxu0
  %v172 = vpop.f32.mrf.mxu0
  %v173 = vadd.f32 %v121, %v172
  %v174 = vpop.f32.mrf.mxu0
  %175 = vdwg.mxu0
  %v176 = vld [vmem:[%s5] sm:$0xf]
  %v177 = vld [vmem:[%s5 + $0x4] sm:$0xf]
  %v178 = vld [vmem:[%s5 + $0x8] sm:$0xf]
  %v179 = vld [vmem:[%s5 + $0xc] sm:$0xf]
  %v180 = vld [vmem:[%s6] sm:$0x1]
  %v182 = vlaneseq
  %v183 = vshrl.u32 %v182, 7
  %v184 = vsub.s32 0, %v183
  %v185 = vrot.slane %v180, %v184
  %v191 = vunpack.c.l.b16 %v176
  %v192 = vunpack.c.l.b16 %v177
  %v193 = vunpack.c.l.b16 %v178
  %v194 = vunpack.c.l.b16 %v179
  %v195 = vpack.c.b16 %v192, %v191
  %v196 = vpack.c.b16 %v194, %v193
  %199 = vmatprep.subr.bf16.mxu0 0
  %200 = vmatpush1.bf16.msra.mxu0 0
  %201 = vmatprep.subr.bf16.mxu0 0
  %202 = vmatpush1.bf16.msra.mxu0 0
  %203 = vmatprep.subr.bf16.mxu0 0
  %204 = vmatpush1.bf16.msra.mxu0 0
  %205 = vmatprep.subr.bf16.mxu0 0
  %206 = vmatpush1.bf16.msra.mxu0 0
  %207 = vmatprep.subr.bf16.mxu0 0
  %208 = vmatpush1.bf16.msra.mxu0 0
  %209 = vmatprep.subr.bf16.mxu0 0
  %210 = vmatpush1.bf16.msra.mxu0 0
  %211 = vmatprep.subr.bf16.mxu0 0
  %212 = vmatpush1.bf16.msra.mxu0 %v196
  %213 = vmatprep.subr.bf16.mxu0 0
  %214 = vmatpush1.bf16.msra.mxu0 %v195
  %215 = vmatprep.subr.bf16.mxu0 0
  %216 = vmatpush2.bf16.msra.mxu0 0
  %217 = vmatprep.subr.bf16.mxu0 0
  %218 = vmatpush2.bf16.msra.mxu0 0
  %219 = vmatprep.subr.bf16.mxu0 0
  %220 = vmatpush2.bf16.msra.mxu0 0
  %221 = vmatprep.subr.bf16.mxu0 0
  %222 = vmatpush2.bf16.msra.mxu0 0
  %223 = vmatprep.subr.bf16.mxu0 0
  %224 = vmatpush2.bf16.msra.mxu0 0
  %225 = vmatprep.subr.bf16.mxu0 0
  %226 = vmatpush2.bf16.msra.mxu0 0
  %227 = vmatprep.subr.bf16.mxu0 0
  %228 = vmatpush2.bf16.msra.mxu0 0
  %229 = vmatprep.subr.bf16.mxu0 0
  %230 = vmatpush2.bf16.msra.mxu0 0
  %231 = vmatprep.mubr.bf16.mxu0 0
  %232 = vmatmul.mubr.bf16.gmra.mxu0 %v67
  %v233 = vpop.f32.mrf.mxu0
  %v234 = vadd.f32 %v185, %v233
  %v235 = vpop.f32.mrf.mxu0
  %v236 = vpop.f32.mrf.mxu0
  %v237 = vadd.f32 %v185, %v236
  %v238 = vpop.f32.mrf.mxu0
  %239 = vdwg.mxu0
  %v240 = vpack.c.bf16 %v110, %v110
  %v241 = vpack.c.bf16 %v111, %v111
  %v242 = vpack.c.bf16 %v170, %v170
  %v243 = vpack.c.bf16 %v173, %v173
  %v244 = vpack.c.bf16 %v234, %v234
  %v245 = vpack.c.bf16 %v237, %v237
  %v246 = vld [vmem:[%s7] sm:$0xf]
  %v247 = vld [vmem:[%s7 + $0x4] sm:$0xf]
  %v248 = vld [vmem:[%s7 + $0x8] sm:$0xf]
  %v249 = vld [vmem:[%s7 + $0xc] sm:$0xf]
  %vm250 = vcmask 64512
  %v252 = vsel %vm250, %v240, 0
  %v255 = vsel %vm250, %v242, 0
  %257 = vmatprep.subr.bf16.mxu0 0
  %258 = vmatpush1.bf16.xpose.msra.mxu0 0
  %259 = vmatprep.subr.bf16.mxu0 0
  %260 = vmatpush1.bf16.xpose.msra.mxu0 0
  %261 = vmatprep.subr.bf16.mxu0 0
  %262 = vmatpush1.bf16.xpose.msra.mxu0 0
  %263 = vmatprep.subr.bf16.mxu0 0
  %264 = vmatpush1.bf16.xpose.msra.mxu0 0
  %265 = vmatprep.subr.bf16.mxu0 0
  %266 = vmatpush1.bf16.xpose.msra.mxu0 0
  %267 = vmatprep.subr.bf16.mxu0 0
  %268 = vmatpush1.bf16.xpose.msra.mxu0 0
  %269 = vmatprep.subr.bf16.mxu0 0
  %270 = vmatpush1.bf16.xpose.msra.mxu0 0
  %271 = vmatprep.subr.bf16.mxu0 0
  %272 = vmatpush1.bf16.xpose.msra.mxu0 %v255
  %273 = vmatprep.subr.bf16.mxu0 0
  %274 = vmatpush2.bf16.xpose.msra.mxu0 0
  %275 = vmatprep.subr.bf16.mxu0 0
  %276 = vmatpush2.bf16.xpose.msra.mxu0 0
  %277 = vmatprep.subr.bf16.mxu0 0
  %278 = vmatpush2.bf16.xpose.msra.mxu0 0
  %279 = vmatprep.subr.bf16.mxu0 0
  %280 = vmatpush2.bf16.xpose.msra.mxu0 0
  %281 = vmatprep.subr.bf16.mxu0 0
  %282 = vmatpush2.bf16.xpose.msra.mxu0 0
  %283 = vmatprep.subr.bf16.mxu0 0
  %284 = vmatpush2.bf16.xpose.msra.mxu0 0
  %285 = vmatprep.subr.bf16.mxu0 0
  %286 = vmatpush2.bf16.xpose.msra.mxu0 0
  %287 = vmatprep.subr.bf16.mxu0 0
  %288 = vmatpush2.bf16.xpose.msra.mxu0 0
  %289 = vmatprep.mubr.bf16.mxu0 0
  %290 = vmatmul.mubr.bf16.gmra.mxu0 %v252
  %v291 = vpop.f32.mrf.mxu0
  %v292 = vadd.f32 0.0, %v291
  %v293 = vpop.f32.mrf.mxu0
  %v294 = vpop.f32.mrf.mxu0
  %v295 = vpop.f32.mrf.mxu0
  %296 = vdwg.mxu0
  %v298 = vsel %vm250, %v241, 0
  %v301 = vsel %vm250, %v243, 0
  %303 = vmatprep.subr.bf16.mxu0 0
  %304 = vmatpush1.bf16.xpose.msra.mxu0 0
  %305 = vmatprep.subr.bf16.mxu0 0
  %306 = vmatpush1.bf16.xpose.msra.mxu0 0
  %307 = vmatprep.subr.bf16.mxu0 0
  %308 = vmatpush1.bf16.xpose.msra.mxu0 0
  %309 = vmatprep.subr.bf16.mxu0 0
  %310 = vmatpush1.bf16.xpose.msra.mxu0 0
  %311 = vmatprep.subr.bf16.mxu0 0
  %312 = vmatpush1.bf16.xpose.msra.mxu0 0
  %313 = vmatprep.subr.bf16.mxu0 0
  %314 = vmatpush1.bf16.xpose.msra.mxu0 0
  %315 = vmatprep.subr.bf16.mxu0 0
  %316 = vmatpush1.bf16.xpose.msra.mxu0 0
  %317 = vmatprep.subr.bf16.mxu0 0
  %318 = vmatpush1.bf16.xpose.msra.mxu0 %v301
  %319 = vmatprep.subr.bf16.mxu0 0
  %320 = vmatpush2.bf16.xpose.msra.mxu0 0
  %321 = vmatprep.subr.bf16.mxu0 0
  %322 = vmatpush2.bf16.xpose.msra.mxu0 0
  %323 = vmatprep.subr.bf16.mxu0 0
  %324 = vmatpush2.bf16.xpose.msra.mxu0 0
  %325 = vmatprep.subr.bf16.mxu0 0
  %326 = vmatpush2.bf16.xpose.msra.mxu0 0
  %327 = vmatprep.subr.bf16.mxu0 0
  %328 = vmatpush2.bf16.xpose.msra.mxu0 0
  %329 = vmatprep.subr.bf16.mxu0 0
  %330 = vmatpush2.bf16.xpose.msra.mxu0 0
  %331 = vmatprep.subr.bf16.mxu0 0
  %332 = vmatpush2.bf16.xpose.msra.mxu0 0
  %333 = vmatprep.subr.bf16.mxu0 0
  %334 = vmatpush2.bf16.xpose.msra.mxu0 0
  %335 = vmatprep.mubr.bf16.mxu0 0
  %336 = vmatmul.mubr.bf16.gmra.mxu0 %v298
  %v337 = vpop.f32.mrf.mxu0
  %v338 = vadd.f32 0.0, %v337
  %v339 = vpop.f32.mrf.mxu0
  %v340 = vpop.f32.mrf.mxu0
  %v341 = vpop.f32.mrf.mxu0
  %342 = vdwg.mxu0
  %v343 = vsel %vm250, %v292, -inf
  %344 = vmax.xlane.f32.xlu0 %v343
  %v345 = vpop.xlane.xlu0 %344
  %v346 = vsel %vm250, %v338, -inf
  %347 = vmax.xlane.f32.xlu0 %v346
  %v348 = vpop.xlane.xlu0 %347
  %v349 = vsub.f32 %v292, %v345
  %v350 = vsub.f32 %v338, %v348
  %v351 = vmul.f32 %v349, 1.442695
  %v352 = vpow.pop %v351
  %v353 = vmul.f32 %v350, 1.442695
  %v354 = vpow.pop %v353
  %v355 = vsel %vm250, %v352, 0.0
  %356 = vadd.xlane.f32.xlu0 %v355
  %v357 = vpop.xlane.xlu0 %356
  %v358 = vsel %vm250, %v354, 0.0
  %359 = vadd.xlane.f32.xlu0 %v358
  %v360 = vpop.xlane.xlu0 %359
  %v361 = vrcp.pop %v357
  %v362 = vrcp.pop %v360
  %v363 = vmul.f32 %v352, %v361
  %v364 = vmul.f32 %v354, %v362
  %v365 = vpack.c.bf16 %v363, %v363
  %v366 = vpack.c.bf16 %v364, %v364
  %v368 = vsel %vm250, %v365, 0
  %vm370 = vcmask 1043456
  %v372 = vsel %vm370, %v244, 0
  %374 = vmatprep.subr.bf16.mxu0 0
  %375 = vmatpush1.bf16.msra.mxu0 0
  %376 = vmatprep.subr.bf16.mxu0 0
  %377 = vmatpush1.bf16.msra.mxu0 0
  %378 = vmatprep.subr.bf16.mxu0 0
  %379 = vmatpush1.bf16.msra.mxu0 0
  %380 = vmatprep.subr.bf16.mxu0 0
  %381 = vmatpush1.bf16.msra.mxu0 0
  %382 = vmatprep.subr.bf16.mxu0 0
  %383 = vmatpush1.bf16.msra.mxu0 0
  %384 = vmatprep.subr.bf16.mxu0 0
  %385 = vmatpush1.bf16.msra.mxu0 0
  %386 = vmatprep.subr.bf16.mxu0 0
  %387 = vmatpush1.bf16.msra.mxu0 0
  %388 = vmatprep.subr.bf16.mxu0 0
  %389 = vmatpush1.bf16.msra.mxu0 %v372
  %390 = vmatprep.subr.bf16.mxu0 0
  %391 = vmatpush2.bf16.msra.mxu0 0
  %392 = vmatprep.subr.bf16.mxu0 0
  %393 = vmatpush2.bf16.msra.mxu0 0
  %394 = vmatprep.subr.bf16.mxu0 0
  %395 = vmatpush2.bf16.msra.mxu0 0
  %396 = vmatprep.subr.bf16.mxu0 0
  %397 = vmatpush2.bf16.msra.mxu0 0
  %398 = vmatprep.subr.bf16.mxu0 0
  %399 = vmatpush2.bf16.msra.mxu0 0
  %400 = vmatprep.subr.bf16.mxu0 0
  %401 = vmatpush2.bf16.msra.mxu0 0
  %402 = vmatprep.subr.bf16.mxu0 0
  %403 = vmatpush2.bf16.msra.mxu0 0
  %404 = vmatprep.subr.bf16.mxu0 0
  %405 = vmatpush2.bf16.msra.mxu0 0
  %406 = vmatprep.mubr.bf16.mxu0 0
  %407 = vmatmul.mubr.bf16.gmra.mxu0 %v368
  %v408 = vpop.f32.mrf.mxu0
  %v409 = vadd.f32 0.0, %v408
  %v410 = vpop.f32.mrf.mxu0
  %v411 = vpop.f32.mrf.mxu0
  %v412 = vpop.f32.mrf.mxu0
  %413 = vdwg.mxu0
  %v415 = vsel %vm250, %v366, 0
  %v418 = vsel %vm370, %v245, 0
  %420 = vmatprep.subr.bf16.mxu0 0
  %421 = vmatpush1.bf16.msra.mxu0 0
  %422 = vmatprep.subr.bf16.mxu0 0
  %423 = vmatpush1.bf16.msra.mxu0 0
  %424 = vmatprep.subr.bf16.mxu0 0
  %425 = vmatpush1.bf16.msra.mxu0 0
  %426 = vmatprep.subr.bf16.mxu0 0
  %427 = vmatpush1.bf16.msra.mxu0 0
  %428 = vmatprep.subr.bf16.mxu0 0
  %429 = vmatpush1.bf16.msra.mxu0 0
  %430 = vmatprep.subr.bf16.mxu0 0
  %431 = vmatpush1.bf16.msra.mxu0 0
  %432 = vmatprep.subr.bf16.mxu0 0
  %433 = vmatpush1.bf16.msra.mxu0 0
  %434 = vmatprep.subr.bf16.mxu0 0
  %435 = vmatpush1.bf16.msra.mxu0 %v418
  %436 = vmatprep.subr.bf16.mxu0 0
  %437 = vmatpush2.bf16.msra.mxu0 0
  %438 = vmatprep.subr.bf16.mxu0 0
  %439 = vmatpush2.bf16.msra.mxu0 0
  %440 = vmatprep.subr.bf16.mxu0 0
  %441 = vmatpush2.bf16.msra.mxu0 0
  %442 = vmatprep.subr.bf16.mxu0 0
  %443 = vmatpush2.bf16.msra.mxu0 0
  %444 = vmatprep.subr.bf16.mxu0 0
  %445 = vmatpush2.bf16.msra.mxu0 0
  %446 = vmatprep.subr.bf16.mxu0 0
  %447 = vmatpush2.bf16.msra.mxu0 0
  %448 = vmatprep.subr.bf16.mxu0 0
  %449 = vmatpush2.bf16.msra.mxu0 0
  %450 = vmatprep.subr.bf16.mxu0 0
  %451 = vmatpush2.bf16.msra.mxu0 0
  %452 = vmatprep.mubr.bf16.mxu0 0
  %453 = vmatmul.mubr.bf16.gmra.mxu0 %v415
  %v454 = vpop.f32.mrf.mxu0
  %v455 = vadd.f32 0.0, %v454
  %v456 = vpop.f32.mrf.mxu0
  %v457 = vpop.f32.mrf.mxu0
  %v458 = vpop.f32.mrf.mxu0
  %459 = vdwg.mxu0
  %v460 = vpack.c.bf16 %v455, %v409
  %462 = vrot.lane.b32.xlu0 %v240, 120
  %v463 = vpop.permute.xlu0 %462
  %465 = vrot.lane.b32.xlu0 %v242, 120
  %v466 = vpop.permute.xlu0 %465
  %v468 = vsel %vm250, %v463, 0
  %v471 = vsel %vm250, %v466, 0
  %473 = vmatprep.subr.bf16.mxu0 0
  %474 = vmatpush1.bf16.xpose.msra.mxu0 0
  %475 = vmatprep.subr.bf16.mxu0 0
  %476 = vmatpush1.bf16.xpose.msra.mxu0 0
  %477 = vmatprep.subr.bf16.mxu0 0
  %478 = vmatpush1.bf16.xpose.msra.mxu0 0
  %479 = vmatprep.subr.bf16.mxu0 0
  %480 = vmatpush1.bf16.xpose.msra.mxu0 0
  %481 = vmatprep.subr.bf16.mxu0 0
  %482 = vmatpush1.bf16.xpose.msra.mxu0 0
  %483 = vmatprep.subr.bf16.mxu0 0
  %484 = vmatpush1.bf16.xpose.msra.mxu0 0
  %485 = vmatprep.subr.bf16.mxu0 0
  %486 = vmatpush1.bf16.xpose.msra.mxu0 0
  %487 = vmatprep.subr.bf16.mxu0 0
  %488 = vmatpush1.bf16.xpose.msra.mxu0 %v471
  %489 = vmatprep.subr.bf16.mxu0 0
  %490 = vmatpush2.bf16.xpose.msra.mxu0 0
  %491 = vmatprep.subr.bf16.mxu0 0
  %492 = vmatpush2.bf16.xpose.msra.mxu0 0
  %493 = vmatprep.subr.bf16.mxu0 0
  %494 = vmatpush2.bf16.xpose.msra.mxu0 0
  %495 = vmatprep.subr.bf16.mxu0 0
  %496 = vmatpush2.bf16.xpose.msra.mxu0 0
  %497 = vmatprep.subr.bf16.mxu0 0
  %498 = vmatpush2.bf16.xpose.msra.mxu0 0
  %499 = vmatprep.subr.bf16.mxu0 0
  %500 = vmatpush2.bf16.xpose.msra.mxu0 0
  %501 = vmatprep.subr.bf16.mxu0 0
  %502 = vmatpush2.bf16.xpose.msra.mxu0 0
  %503 = vmatprep.subr.bf16.mxu0 0
  %504 = vmatpush2.bf16.xpose.msra.mxu0 0
  %505 = vmatprep.mubr.bf16.mxu0 0
  %506 = vmatmul.mubr.bf16.gmra.mxu0 %v468
  %v507 = vpop.f32.mrf.mxu0
  %v508 = vadd.f32 0.0, %v507
  %v509 = vpop.f32.mrf.mxu0
  %v510 = vpop.f32.mrf.mxu0
  %v511 = vpop.f32.mrf.mxu0
  %512 = vdwg.mxu0
  %514 = vrot.lane.b32.xlu0 %v241, 120
  %v515 = vpop.permute.xlu0 %514
  %517 = vrot.lane.b32.xlu0 %v243, 120
  %v518 = vpop.permute.xlu0 %517
  %v520 = vsel %vm250, %v515, 0
  %v523 = vsel %vm250, %v518, 0
  %525 = vmatprep.subr.bf16.mxu0 0
  %526 = vmatpush1.bf16.xpose.msra.mxu0 0
  %527 = vmatprep.subr.bf16.mxu0 0
  %528 = vmatpush1.bf16.xpose.msra.mxu0 0
  %529 = vmatprep.subr.bf16.mxu0 0
  %530 = vmatpush1.bf16.xpose.msra.mxu0 0
  %531 = vmatprep.subr.bf16.mxu0 0
  %532 = vmatpush1.bf16.xpose.msra.mxu0 0
  %533 = vmatprep.subr.bf16.mxu0 0
  %534 = vmatpush1.bf16.xpose.msra.mxu0 0
  %535 = vmatprep.subr.bf16.mxu0 0
  %536 = vmatpush1.bf16.xpose.msra.mxu0 0
  %537 = vmatprep.subr.bf16.mxu0 0
  %538 = vmatpush1.bf16.xpose.msra.mxu0 0
  %539 = vmatprep.subr.bf16.mxu0 0
  %540 = vmatpush1.bf16.xpose.msra.mxu0 %v523
  %541 = vmatprep.subr.bf16.mxu0 0
  %542 = vmatpush2.bf16.xpose.msra.mxu0 0
  %543 = vmatprep.subr.bf16.mxu0 0
  %544 = vmatpush2.bf16.xpose.msra.mxu0 0
  %545 = vmatprep.subr.bf16.mxu0 0
  %546 = vmatpush2.bf16.xpose.msra.mxu0 0
  %547 = vmatprep.subr.bf16.mxu0 0
  %548 = vmatpush2.bf16.xpose.msra.mxu0 0
  %549 = vmatprep.subr.bf16.mxu0 0
  %550 = vmatpush2.bf16.xpose.msra.mxu0 0
  %551 = vmatprep.subr.bf16.mxu0 0
  %552 = vmatpush2.bf16.xpose.msra.mxu0 0
  %553 = vmatprep.subr.bf16.mxu0 0
  %554 = vmatpush2.bf16.xpose.msra.mxu0 0
  %555 = vmatprep.subr.bf16.mxu0 0
  %556 = vmatpush2.bf16.xpose.msra.mxu0 0
  %557 = vmatprep.mubr.bf16.mxu0 0
  %558 = vmatmul.mubr.bf16.gmra.mxu0 %v520
  %v559 = vpop.f32.mrf.mxu0
  %v560 = vadd.f32 0.0, %v559
  %v561 = vpop.f32.mrf.mxu0
  %v562 = vpop.f32.mrf.mxu0
  %v563 = vpop.f32.mrf.mxu0
  %564 = vdwg.mxu0
  %v565 = vsel %vm250, %v508, -inf
  %566 = vmax.xlane.f32.xlu0 %v565
  %v567 = vpop.xlane.xlu0 %566
  %v568 = vsel %vm250, %v560, -inf
  %569 = vmax.xlane.f32.xlu0 %v568
  %v570 = vpop.xlane.xlu0 %569
  %v571 = vsub.f32 %v508, %v567
  %v572 = vsub.f32 %v560, %v570
  %v573 = vmul.f32 %v571, 1.442695
  %v574 = vpow.pop %v573
  %v575 = vmul.f32 %v572, 1.442695
  %v576 = vpow.pop %v575
  %v577 = vsel %vm250, %v574, 0.0
  %578 = vadd.xlane.f32.xlu0 %v577
  %v579 = vpop.xlane.xlu0 %578
  %v580 = vsel %vm250, %v576, 0.0
  %581 = vadd.xlane.f32.xlu0 %v580
  %v582 = vpop.xlane.xlu0 %581
  %v583 = vrcp.pop %v579
  %v584 = vrcp.pop %v582
  %v585 = vmul.f32 %v574, %v583
  %v586 = vmul.f32 %v576, %v584
  %v587 = vpack.c.bf16 %v585, %v585
  %v588 = vpack.c.bf16 %v586, %v586
  %590 = vrot.lane.b32.xlu0 %v244, 120
  %v591 = vpop.permute.xlu0 %590
  %v593 = vsel %vm250, %v587, 0
  %v596 = vsel %vm370, %v591, 0
  %598 = vmatprep.subr.bf16.mxu0 0
  %599 = vmatpush1.bf16.msra.mxu0 0
  %600 = vmatprep.subr.bf16.mxu0 0
  %601 = vmatpush1.bf16.msra.mxu0 0
  %602 = vmatprep.subr.bf16.mxu0 0
  %603 = vmatpush1.bf16.msra.mxu0 0
  %604 = vmatprep.subr.bf16.mxu0 0
  %605 = vmatpush1.bf16.msra.mxu0 0
  %606 = vmatprep.subr.bf16.mxu0 0
  %607 = vmatpush1.bf16.msra.mxu0 0
  %608 = vmatprep.subr.bf16.mxu0 0
  %609 = vmatpush1.bf16.msra.mxu0 0
  %610 = vmatprep.subr.bf16.mxu0 0
  %611 = vmatpush1.bf16.msra.mxu0 0
  %612 = vmatprep.subr.bf16.mxu0 0
  %613 = vmatpush1.bf16.msra.mxu0 %v596
  %614 = vmatprep.subr.bf16.mxu0 0
  %615 = vmatpush2.bf16.msra.mxu0 0
  %616 = vmatprep.subr.bf16.mxu0 0
  %617 = vmatpush2.bf16.msra.mxu0 0
  %618 = vmatprep.subr.bf16.mxu0 0
  %619 = vmatpush2.bf16.msra.mxu0 0
  %620 = vmatprep.subr.bf16.mxu0 0
  %621 = vmatpush2.bf16.msra.mxu0 0
  %622 = vmatprep.subr.bf16.mxu0 0
  %623 = vmatpush2.bf16.msra.mxu0 0
  %624 = vmatprep.subr.bf16.mxu0 0
  %625 = vmatpush2.bf16.msra.mxu0 0
  %626 = vmatprep.subr.bf16.mxu0 0
  %627 = vmatpush2.bf16.msra.mxu0 0
  %628 = vmatprep.subr.bf16.mxu0 0
  %629 = vmatpush2.bf16.msra.mxu0 0
  %630 = vmatprep.mubr.bf16.mxu0 0
  %631 = vmatmul.mubr.bf16.gmra.mxu0 %v593
  %v632 = vpop.f32.mrf.mxu0
  %v633 = vadd.f32 0.0, %v632
  %v634 = vpop.f32.mrf.mxu0
  %v635 = vpop.f32.mrf.mxu0
  %v636 = vpop.f32.mrf.mxu0
  %637 = vdwg.mxu0
  %639 = vrot.lane.b32.xlu0 %v245, 120
  %v640 = vpop.permute.xlu0 %639
  %v642 = vsel %vm250, %v588, 0
  %v645 = vsel %vm370, %v640, 0
  %647 = vmatprep.subr.bf16.mxu0 0
  %648 = vmatpush1.bf16.msra.mxu0 0
  %649 = vmatprep.subr.bf16.mxu0 0
  %650 = vmatpush1.bf16.msra.mxu0 0
  %651 = vmatprep.subr.bf16.mxu0 0
  %652 = vmatpush1.bf16.msra.mxu0 0
  %653 = vmatprep.subr.bf16.mxu0 0
  %654 = vmatpush1.bf16.msra.mxu0 0
  %655 = vmatprep.subr.bf16.mxu0 0
  %656 = vmatpush1.bf16.msra.mxu0 0
  %657 = vmatprep.subr.bf16.mxu0 0
  %658 = vmatpush1.bf16.msra.mxu0 0
  %659 = vmatprep.subr.bf16.mxu0 0
  %660 = vmatpush1.bf16.msra.mxu0 0
  %661 = vmatprep.subr.bf16.mxu0 0
  %662 = vmatpush1.bf16.msra.mxu0 %v645
  %663 = vmatprep.subr.bf16.mxu0 0
  %664 = vmatpush2.bf16.msra.mxu0 0
  %665 = vmatprep.subr.bf16.mxu0 0
  %666 = vmatpush2.bf16.msra.mxu0 0
  %667 = vmatprep.subr.bf16.mxu0 0
  %668 = vmatpush2.bf16.msra.mxu0 0
  %669 = vmatprep.subr.bf16.mxu0 0
  %670 = vmatpush2.bf16.msra.mxu0 0
  %671 = vmatprep.subr.bf16.mxu0 0
  %672 = vmatpush2.bf16.msra.mxu0 0
  %673 = vmatprep.subr.bf16.mxu0 0
  %674 = vmatpush2.bf16.msra.mxu0 0
  %675 = vmatprep.subr.bf16.mxu0 0
  %676 = vmatpush2.bf16.msra.mxu0 0
  %677 = vmatprep.subr.bf16.mxu0 0
  %678 = vmatpush2.bf16.msra.mxu0 0
  %679 = vmatprep.mubr.bf16.mxu0 0
  %680 = vmatmul.mubr.bf16.gmra.mxu0 %v642
  %v681 = vpop.f32.mrf.mxu0
  %v682 = vadd.f32 0.0, %v681
  %v683 = vpop.f32.mrf.mxu0
  %v684 = vpop.f32.mrf.mxu0
  %v685 = vpop.f32.mrf.mxu0
  %686 = vdwg.mxu0
  %v687 = vpack.c.bf16 %v682, %v633
  %v689 = vsel %vm250, %v687, 0
  %v692 = vsel %vm370, %v247, 0
  %694 = vmatprep.subr.bf16.mxu0 0
  %695 = vmatpush1.bf16.msra.mxu0 0
  %696 = vmatprep.subr.bf16.mxu0 0
  %697 = vmatpush1.bf16.msra.mxu0 0
  %698 = vmatprep.subr.bf16.mxu0 0
  %699 = vmatpush1.bf16.msra.mxu0 0
  %700 = vmatprep.subr.bf16.mxu0 0
  %701 = vmatpush1.bf16.msra.mxu0 0
  %702 = vmatprep.subr.bf16.mxu0 0
  %703 = vmatpush1.bf16.msra.mxu0 0
  %704 = vmatprep.subr.bf16.mxu0 0
  %705 = vmatpush1.bf16.msra.mxu0 0
  %706 = vmatprep.subr.bf16.mxu0 0
  %707 = vmatpush1.bf16.msra.mxu0 0
  %708 = vmatprep.subr.bf16.mxu0 0
  %709 = vmatpush1.bf16.msra.mxu0 %v692
  %710 = vmatprep.subr.bf16.mxu0 0
  %711 = vmatpush2.bf16.msra.mxu0 0
  %712 = vmatprep.subr.bf16.mxu0 0
  %713 = vmatpush2.bf16.msra.mxu0 0
  %714 = vmatprep.subr.bf16.mxu0 0
  %715 = vmatpush2.bf16.msra.mxu0 0
  %716 = vmatprep.subr.bf16.mxu0 0
  %717 = vmatpush2.bf16.msra.mxu0 0
  %718 = vmatprep.subr.bf16.mxu0 0
  %719 = vmatpush2.bf16.msra.mxu0 0
  %720 = vmatprep.subr.bf16.mxu0 0
  %721 = vmatpush2.bf16.msra.mxu0 0
  %722 = vmatprep.subr.bf16.mxu0 0
  %723 = vmatpush2.bf16.msra.mxu0 0
  %724 = vmatprep.subr.bf16.mxu0 0
  %725 = vmatpush2.bf16.msra.mxu0 0
  %726 = vmatprep.mubr.bf16.mxu0 0
  %727 = vmatmul.mubr.bf16.gmra.mxu0 %v689
  %v728 = vpop.f32.mrf.mxu0
  %v729 = vadd.f32 0.0, %v728
  %v730 = vpop.f32.mrf.mxu0
  %v731 = vpop.f32.mrf.mxu0
  %v732 = vadd.f32 0.0, %v731
  %v733 = vpop.f32.mrf.mxu0
  %734 = vdwg.mxu0
  %v736 = vsel %vm250, %v460, 0
  %v739 = vsel %vm370, %v246, 0
  %741 = vmatprep.subr.bf16.mxu0 0
  %742 = vmatpush1.bf16.msra.mxu0 0
  %743 = vmatprep.subr.bf16.mxu0 0
  %744 = vmatpush1.bf16.msra.mxu0 0
  %745 = vmatprep.subr.bf16.mxu0 0
  %746 = vmatpush1.bf16.msra.mxu0 0
  %747 = vmatprep.subr.bf16.mxu0 0
  %748 = vmatpush1.bf16.msra.mxu0 0
  %749 = vmatprep.subr.bf16.mxu0 0
  %750 = vmatpush1.bf16.msra.mxu0 0
  %751 = vmatprep.subr.bf16.mxu0 0
  %752 = vmatpush1.bf16.msra.mxu0 0
  %753 = vmatprep.subr.bf16.mxu0 0
  %754 = vmatpush1.bf16.msra.mxu0 0
  %755 = vmatprep.subr.bf16.mxu0 0
  %756 = vmatpush1.bf16.msra.mxu0 %v739
  %757 = vmatprep.subr.bf16.mxu0 0
  %758 = vmatpush2.bf16.msra.mxu0 0
  %759 = vmatprep.subr.bf16.mxu0 0
  %760 = vmatpush2.bf16.msra.mxu0 0
  %761 = vmatprep.subr.bf16.mxu0 0
  %762 = vmatpush2.bf16.msra.mxu0 0
  %763 = vmatprep.subr.bf16.mxu0 0
  %764 = vmatpush2.bf16.msra.mxu0 0
  %765 = vmatprep.subr.bf16.mxu0 0
  %766 = vmatpush2.bf16.msra.mxu0 0
  %767 = vmatprep.subr.bf16.mxu0 0
  %768 = vmatpush2.bf16.msra.mxu0 0
  %769 = vmatprep.subr.bf16.mxu0 0
  %770 = vmatpush2.bf16.msra.mxu0 0
  %771 = vmatprep.subr.bf16.mxu0 0
  %772 = vmatpush2.bf16.msra.mxu0 0
  %773 = vmatprep.mubr.bf16.mxu0 0
  %774 = vmatmul.mubr.bf16.gmra.mxu0 %v736
  %v775 = vpop.f32.mrf.mxu0
  %v776 = vadd.f32 %v729, %v775
  %v777 = vpop.f32.mrf.mxu0
  %v778 = vpop.f32.mrf.mxu0
  %v779 = vadd.f32 %v732, %v778
  %v780 = vpop.f32.mrf.mxu0
  %781 = vdwg.mxu0
  %782 = vrot.lane.b32.xlu0 %v240, 112
  %v783 = vpop.permute.xlu0 %782
  %784 = vrot.lane.b32.xlu0 %v242, 112
  %v785 = vpop.permute.xlu0 %784
  %v787 = vsel %vm250, %v783, 0
  %v790 = vsel %vm250, %v785, 0
  %792 = vmatprep.subr.bf16.mxu0 0
  %793 = vmatpush1.bf16.xpose.msra.mxu0 0
  %794 = vmatprep.subr.bf16.mxu0 0
  %795 = vmatpush1.bf16.xpose.msra.mxu0 0
  %796 = vmatprep.subr.bf16.mxu0 0
  %797 = vmatpush1.bf16.xpose.msra.mxu0 0
  %798 = vmatprep.subr.bf16.mxu0 0
  %799 = vmatpush1.bf16.xpose.msra.mxu0 0
  %800 = vmatprep.subr.bf16.mxu0 0
  %801 = vmatpush1.bf16.xpose.msra.mxu0 0
  %802 = vmatprep.subr.bf16.mxu0 0
  %803 = vmatpush1.bf16.xpose.msra.mxu0 0
  %804 = vmatprep.subr.bf16.mxu0 0
  %805 = vmatpush1.bf16.xpose.msra.mxu0 0
  %806 = vmatprep.subr.bf16.mxu0 0
  %807 = vmatpush1.bf16.xpose.msra.mxu0 %v790
  %808 = vmatprep.subr.bf16.mxu0 0
  %809 = vmatpush2.bf16.xpose.msra.mxu0 0
  %810 = vmatprep.subr.bf16.mxu0 0
  %811 = vmatpush2.bf16.xpose.msra.mxu0 0
  %812 = vmatprep.subr.bf16.mxu0 0
  %813 = vmatpush2.bf16.xpose.msra.mxu0 0
  %814 = vmatprep.subr.bf16.mxu0 0
  %815 = vmatpush2.bf16.xpose.msra.mxu0 0
  %816 = vmatprep.subr.bf16.mxu0 0
  %817 = vmatpush2.bf16.xpose.msra.mxu0 0
  %818 = vmatprep.subr.bf16.mxu0 0
  %819 = vmatpush2.bf16.xpose.msra.mxu0 0
  %820 = vmatprep.subr.bf16.mxu0 0
  %821 = vmatpush2.bf16.xpose.msra.mxu0 0
  %822 = vmatprep.subr.bf16.mxu0 0
  %823 = vmatpush2.bf16.xpose.msra.mxu0 0
  %824 = vmatprep.mubr.bf16.mxu0 0
  %825 = vmatmul.mubr.bf16.gmra.mxu0 %v787
  %v826 = vpop.f32.mrf.mxu0
  %v827 = vadd.f32 0.0, %v826
  %v828 = vpop.f32.mrf.mxu0
  %v829 = vpop.f32.mrf.mxu0
  %v830 = vpop.f32.mrf.mxu0
  %831 = vdwg.mxu0
  %832 = vrot.lane.b32.xlu0 %v241, 112
  %v833 = vpop.permute.xlu0 %832
  %834 = vrot.lane.b32.xlu0 %v243, 112
  %v835 = vpop.permute.xlu0 %834
  %v837 = vsel %vm250, %v833, 0
  %v840 = vsel %vm250, %v835, 0
  %842 = vmatprep.subr.bf16.mxu0 0
  %843 = vmatpush1.bf16.xpose.msra.mxu0 0
  %844 = vmatprep.subr.bf16.mxu0 0
  %845 = vmatpush1.bf16.xpose.msra.mxu0 0
  %846 = vmatprep.subr.bf16.mxu0 0
  %847 = vmatpush1.bf16.xpose.msra.mxu0 0
  %848 = vmatprep.subr.bf16.mxu0 0
  %849 = vmatpush1.bf16.xpose.msra.mxu0 0
  %850 = vmatprep.subr.bf16.mxu0 0
  %851 = vmatpush1.bf16.xpose.msra.mxu0 0
  %852 = vmatprep.subr.bf16.mxu0 0
  %853 = vmatpush1.bf16.xpose.msra.mxu0 0
  %854 = vmatprep.subr.bf16.mxu0 0
  %855 = vmatpush1.bf16.xpose.msra.mxu0 0
  %856 = vmatprep.subr.bf16.mxu0 0
  %857 = vmatpush1.bf16.xpose.msra.mxu0 %v840
  %858 = vmatprep.subr.bf16.mxu0 0
  %859 = vmatpush2.bf16.xpose.msra.mxu0 0
  %860 = vmatprep.subr.bf16.mxu0 0
  %861 = vmatpush2.bf16.xpose.msra.mxu0 0
  %862 = vmatprep.subr.bf16.mxu0 0
  %863 = vmatpush2.bf16.xpose.msra.mxu0 0
  %864 = vmatprep.subr.bf16.mxu0 0
  %865 = vmatpush2.bf16.xpose.msra.mxu0 0
  %866 = vmatprep.subr.bf16.mxu0 0
  %867 = vmatpush2.bf16.xpose.msra.mxu0 0
  %868 = vmatprep.subr.bf16.mxu0 0
  %869 = vmatpush2.bf16.xpose.msra.mxu0 0
  %870 = vmatprep.subr.bf16.mxu0 0
  %871 = vmatpush2.bf16.xpose.msra.mxu0 0
  %872 = vmatprep.subr.bf16.mxu0 0
  %873 = vmatpush2.bf16.xpose.msra.mxu0 0
  %874 = vmatprep.mubr.bf16.mxu0 0
  %875 = vmatmul.mubr.bf16.gmra.mxu0 %v837
  %v876 = vpop.f32.mrf.mxu0
  %v877 = vadd.f32 0.0, %v876
  %v878 = vpop.f32.mrf.mxu0
  %v879 = vpop.f32.mrf.mxu0
  %v880 = vpop.f32.mrf.mxu0
  %881 = vdwg.mxu0
  %v882 = vsel %vm250, %v827, -inf
  %883 = vmax.xlane.f32.xlu0 %v882
  %v884 = vpop.xlane.xlu0 %883
  %v885 = vsel %vm250, %v877, -inf
  %886 = vmax.xlane.f32.xlu0 %v885
  %v887 = vpop.xlane.xlu0 %886
  %v888 = vsub.f32 %v827, %v884
  %v889 = vsub.f32 %v877, %v887
  %v890 = vmul.f32 %v888, 1.442695
  %v891 = vpow.pop %v890
  %v892 = vmul.f32 %v889, 1.442695
  %v893 = vpow.pop %v892
  %v894 = vsel %vm250, %v891, 0.0
  %895 = vadd.xlane.f32.xlu0 %v894
  %v896 = vpop.xlane.xlu0 %895
  %v897 = vsel %vm250, %v893, 0.0
  %898 = vadd.xlane.f32.xlu0 %v897
  %v899 = vpop.xlane.xlu0 %898
  %v900 = vrcp.pop %v896
  %v901 = vrcp.pop %v899
  %v902 = vmul.f32 %v891, %v900
  %v903 = vmul.f32 %v893, %v901
  %v904 = vpack.c.bf16 %v902, %v902
  %v905 = vpack.c.bf16 %v903, %v903
  %906 = vrot.lane.b32.xlu0 %v244, 112
  %v907 = vpop.permute.xlu0 %906
  %v909 = vsel %vm250, %v904, 0
  %v912 = vsel %vm370, %v907, 0
  %914 = vmatprep.subr.bf16.mxu0 0
  %915 = vmatpush1.bf16.msra.mxu0 0
  %916 = vmatprep.subr.bf16.mxu0 0
  %917 = vmatpush1.bf16.msra.mxu0 0
  %918 = vmatprep.subr.bf16.mxu0 0
  %919 = vmatpush1.bf16.msra.mxu0 0
  %920 = vmatprep.subr.bf16.mxu0 0
  %921 = vmatpush1.bf16.msra.mxu0 0
  %922 = vmatprep.subr.bf16.mxu0 0
  %923 = vmatpush1.bf16.msra.mxu0 0
  %924 = vmatprep.subr.bf16.mxu0 0
  %925 = vmatpush1.bf16.msra.mxu0 0
  %926 = vmatprep.subr.bf16.mxu0 0
  %927 = vmatpush1.bf16.msra.mxu0 0
  %928 = vmatprep.subr.bf16.mxu0 0
  %929 = vmatpush1.bf16.msra.mxu0 %v912
  %930 = vmatprep.subr.bf16.mxu0 0
  %931 = vmatpush2.bf16.msra.mxu0 0
  %932 = vmatprep.subr.bf16.mxu0 0
  %933 = vmatpush2.bf16.msra.mxu0 0
  %934 = vmatprep.subr.bf16.mxu0 0
  %935 = vmatpush2.bf16.msra.mxu0 0
  %936 = vmatprep.subr.bf16.mxu0 0
  %937 = vmatpush2.bf16.msra.mxu0 0
  %938 = vmatprep.subr.bf16.mxu0 0
  %939 = vmatpush2.bf16.msra.mxu0 0
  %940 = vmatprep.subr.bf16.mxu0 0
  %941 = vmatpush2.bf16.msra.mxu0 0
  %942 = vmatprep.subr.bf16.mxu0 0
  %943 = vmatpush2.bf16.msra.mxu0 0
  %944 = vmatprep.subr.bf16.mxu0 0
  %945 = vmatpush2.bf16.msra.mxu0 0
  %946 = vmatprep.mubr.bf16.mxu0 0
  %947 = vmatmul.mubr.bf16.gmra.mxu0 %v909
  %v948 = vpop.f32.mrf.mxu0
  %v949 = vadd.f32 0.0, %v948
  %v950 = vpop.f32.mrf.mxu0
  %v951 = vpop.f32.mrf.mxu0
  %v952 = vpop.f32.mrf.mxu0
  %953 = vdwg.mxu0
  %954 = vrot.lane.b32.xlu0 %v245, 112
  %v955 = vpop.permute.xlu0 %954
  %v957 = vsel %vm250, %v905, 0
  %v960 = vsel %vm370, %v955, 0
  %962 = vmatprep.subr.bf16.mxu0 0
  %963 = vmatpush1.bf16.msra.mxu0 0
  %964 = vmatprep.subr.bf16.mxu0 0
  %965 = vmatpush1.bf16.msra.mxu0 0
  %966 = vmatprep.subr.bf16.mxu0 0
  %967 = vmatpush1.bf16.msra.mxu0 0
  %968 = vmatprep.subr.bf16.mxu0 0
  %969 = vmatpush1.bf16.msra.mxu0 0
  %970 = vmatprep.subr.bf16.mxu0 0
  %971 = vmatpush1.bf16.msra.mxu0 0
  %972 = vmatprep.subr.bf16.mxu0 0
  %973 = vmatpush1.bf16.msra.mxu0 0
  %974 = vmatprep.subr.bf16.mxu0 0
  %975 = vmatpush1.bf16.msra.mxu0 0
  %976 = vmatprep.subr.bf16.mxu0 0
  %977 = vmatpush1.bf16.msra.mxu0 %v960
  %978 = vmatprep.subr.bf16.mxu0 0
  %979 = vmatpush2.bf16.msra.mxu0 0
  %980 = vmatprep.subr.bf16.mxu0 0
  %981 = vmatpush2.bf16.msra.mxu0 0
  %982 = vmatprep.subr.bf16.mxu0 0
  %983 = vmatpush2.bf16.msra.mxu0 0
  %984 = vmatprep.subr.bf16.mxu0 0
  %985 = vmatpush2.bf16.msra.mxu0 0
  %986 = vmatprep.subr.bf16.mxu0 0
  %987 = vmatpush2.bf16.msra.mxu0 0
  %988 = vmatprep.subr.bf16.mxu0 0
  %989 = vmatpush2.bf16.msra.mxu0 0
  %990 = vmatprep.subr.bf16.mxu0 0
  %991 = vmatpush2.bf16.msra.mxu0 0
  %992 = vmatprep.subr.bf16.mxu0 0
  %993 = vmatpush2.bf16.msra.mxu0 0
  %994 = vmatprep.mubr.bf16.mxu0 0
  %995 = vmatmul.mubr.bf16.gmra.mxu0 %v957
  %v996 = vpop.f32.mrf.mxu0
  %v997 = vadd.f32 0.0, %v996
  %v998 = vpop.f32.mrf.mxu0
  %v999 = vpop.f32.mrf.mxu0
  %v1000 = vpop.f32.mrf.mxu0
  %1001 = vdwg.mxu0
  %v1002 = vpack.c.bf16 %v997, %v949
  %v1004 = vsel %vm250, %v1002, 0
  %v1007 = vsel %vm370, %v248, 0
  %1009 = vmatprep.subr.bf16.mxu0 0
  %1010 = vmatpush1.bf16.msra.mxu0 0
  %1011 = vmatprep.subr.bf16.mxu0 0
  %1012 = vmatpush1.bf16.msra.mxu0 0
  %1013 = vmatprep.subr.bf16.mxu0 0
  %1014 = vmatpush1.bf16.msra.mxu0 0
  %1015 = vmatprep.subr.bf16.mxu0 0
  %1016 = vmatpush1.bf16.msra.mxu0 0
  %1017 = vmatprep.subr.bf16.mxu0 0
  %1018 = vmatpush1.bf16.msra.mxu0 0
  %1019 = vmatprep.subr.bf16.mxu0 0
  %1020 = vmatpush1.bf16.msra.mxu0 0
  %1021 = vmatprep.subr.bf16.mxu0 0
  %1022 = vmatpush1.bf16.msra.mxu0 0
  %1023 = vmatprep.subr.bf16.mxu0 0
  %1024 = vmatpush1.bf16.msra.mxu0 %v1007
  %1025 = vmatprep.subr.bf16.mxu0 0
  %1026 = vmatpush2.bf16.msra.mxu0 0
  %1027 = vmatprep.subr.bf16.mxu0 0
  %1028 = vmatpush2.bf16.msra.mxu0 0
  %1029 = vmatprep.subr.bf16.mxu0 0
  %1030 = vmatpush2.bf16.msra.mxu0 0
  %1031 = vmatprep.subr.bf16.mxu0 0
  %1032 = vmatpush2.bf16.msra.mxu0 0
  %1033 = vmatprep.subr.bf16.mxu0 0
  %1034 = vmatpush2.bf16.msra.mxu0 0
  %1035 = vmatprep.subr.bf16.mxu0 0
  %1036 = vmatpush2.bf16.msra.mxu0 0
  %1037 = vmatprep.subr.bf16.mxu0 0
  %1038 = vmatpush2.bf16.msra.mxu0 0
  %1039 = vmatprep.subr.bf16.mxu0 0
  %1040 = vmatpush2.bf16.msra.mxu0 0
  %1041 = vmatprep.mubr.bf16.mxu0 0
  %1042 = vmatmul.mubr.bf16.gmra.mxu0 %v1004
  %v1043 = vpop.f32.mrf.mxu0
  %v1044 = vadd.f32 0.0, %v1043
  %v1045 = vpop.f32.mrf.mxu0
  %v1046 = vpop.f32.mrf.mxu0
  %v1047 = vadd.f32 0.0, %v1046
  %v1048 = vpop.f32.mrf.mxu0
  %1049 = vdwg.mxu0
  %v1050 = vadd.f32 %v776, %v1044
  %v1051 = vadd.f32 %v779, %v1047
  %1052 = vrot.lane.b32.xlu0 %v240, 104
  %v1053 = vpop.permute.xlu0 %1052
  %1054 = vrot.lane.b32.xlu0 %v242, 104
  %v1055 = vpop.permute.xlu0 %1054
  %v1057 = vsel %vm250, %v1053, 0
  %v1060 = vsel %vm250, %v1055, 0
  %1062 = vmatprep.subr.bf16.mxu0 0
  %1063 = vmatpush1.bf16.xpose.msra.mxu0 0
  %1064 = vmatprep.subr.bf16.mxu0 0
  %1065 = vmatpush1.bf16.xpose.msra.mxu0 0
  %1066 = vmatprep.subr.bf16.mxu0 0
  %1067 = vmatpush1.bf16.xpose.msra.mxu0 0
  %1068 = vmatprep.subr.bf16.mxu0 0
  %1069 = vmatpush1.bf16.xpose.msra.mxu0 0
  %1070 = vmatprep.subr.bf16.mxu0 0
  %1071 = vmatpush1.bf16.xpose.msra.mxu0 0
  %1072 = vmatprep.subr.bf16.mxu0 0
  %1073 = vmatpush1.bf16.xpose.msra.mxu0 0
  %1074 = vmatprep.subr.bf16.mxu0 0
  %1075 = vmatpush1.bf16.xpose.msra.mxu0 0
  %1076 = vmatprep.subr.bf16.mxu0 0
  %1077 = vmatpush1.bf16.xpose.msra.mxu0 %v1060
  %1078 = vmatprep.subr.bf16.mxu0 0
  %1079 = vmatpush2.bf16.xpose.msra.mxu0 0
  %1080 = vmatprep.subr.bf16.mxu0 0
  %1081 = vmatpush2.bf16.xpose.msra.mxu0 0
  %1082 = vmatprep.subr.bf16.mxu0 0
  %1083 = vmatpush2.bf16.xpose.msra.mxu0 0
  %1084 = vmatprep.subr.bf16.mxu0 0
  %1085 = vmatpush2.bf16.xpose.msra.mxu0 0
  %1086 = vmatprep.subr.bf16.mxu0 0
  %1087 = vmatpush2.bf16.xpose.msra.mxu0 0
  %1088 = vmatprep.subr.bf16.mxu0 0
  %1089 = vmatpush2.bf16.xpose.msra.mxu0 0
  %1090 = vmatprep.subr.bf16.mxu0 0
  %1091 = vmatpush2.bf16.xpose.msra.mxu0 0
  %1092 = vmatprep.subr.bf16.mxu0 0
  %1093 = vmatpush2.bf16.xpose.msra.mxu0 0
  %1094 = vmatprep.mubr.bf16.mxu0 0
  %1095 = vmatmul.mubr.bf16.gmra.mxu0 %v1057
  %v1096 = vpop.f32.mrf.mxu0
  %v1097 = vadd.f32 0.0, %v1096
  %v1098 = vpop.f32.mrf.mxu0
  %v1099 = vpop.f32.mrf.mxu0
  %v1100 = vpop.f32.mrf.mxu0
  %1101 = vdwg.mxu0
  %1102 = vrot.lane.b32.xlu0 %v241, 104
  %v1103 = vpop.permute.xlu0 %1102
  %1104 = vrot.lane.b32.xlu0 %v243, 104
  %v1105 = vpop.permute.xlu0 %1104
  %v1107 = vsel %vm250, %v1103, 0
  %v1110 = vsel %vm250, %v1105, 0
  %1112 = vmatprep.subr.bf16.mxu0 0
  %1113 = vmatpush1.bf16.xpose.msra.mxu0 0
  %1114 = vmatprep.subr.bf16.mxu0 0
  %1115 = vmatpush1.bf16.xpose.msra.mxu0 0
  %1116 = vmatprep.subr.bf16.mxu0 0
  %1117 = vmatpush1.bf16.xpose.msra.mxu0 0
  %1118 = vmatprep.subr.bf16.mxu0 0
  %1119 = vmatpush1.bf16.xpose.msra.mxu0 0
  %1120 = vmatprep.subr.bf16.mxu0 0
  %1121 = vmatpush1.bf16.xpose.msra.mxu0 0
  %1122 = vmatprep.subr.bf16.mxu0 0
  %1123 = vmatpush1.bf16.xpose.msra.mxu0 0
  %1124 = vmatprep.subr.bf16.mxu0 0
  %1125 = vmatpush1.bf16.xpose.msra.mxu0 0
  %1126 = vmatprep.subr.bf16.mxu0 0
  %1127 = vmatpush1.bf16.xpose.msra.mxu0 %v1110
  %1128 = vmatprep.subr.bf16.mxu0 0
  %1129 = vmatpush2.bf16.xpose.msra.mxu0 0
  %1130 = vmatprep.subr.bf16.mxu0 0
  %1131 = vmatpush2.bf16.xpose.msra.mxu0 0
  %1132 = vmatprep.subr.bf16.mxu0 0
  %1133 = vmatpush2.bf16.xpose.msra.mxu0 0
  %1134 = vmatprep.subr.bf16.mxu0 0
  %1135 = vmatpush2.bf16.xpose.msra.mxu0 0
  %1136 = vmatprep.subr.bf16.mxu0 0
  %1137 = vmatpush2.bf16.xpose.msra.mxu0 0
  %1138 = vmatprep.subr.bf16.mxu0 0
  %1139 = vmatpush2.bf16.xpose.msra.mxu0 0
  %1140 = vmatprep.subr.bf16.mxu0 0
  %1141 = vmatpush2.bf16.xpose.msra.mxu0 0
  %1142 = vmatprep.subr.bf16.mxu0 0
  %1143 = vmatpush2.bf16.xpose.msra.mxu0 0
  %1144 = vmatprep.mubr.bf16.mxu0 0
  %1145 = vmatmul.mubr.bf16.gmra.mxu0 %v1107
  %v1146 = vpop.f32.mrf.mxu0
  %v1147 = vadd.f32 0.0, %v1146
  %v1148 = vpop.f32.mrf.mxu0
  %v1149 = vpop.f32.mrf.mxu0
  %v1150 = vpop.f32.mrf.mxu0
  %1151 = vdwg.mxu0
  %v1152 = vsel %vm250, %v1097, -inf
  %1153 = vmax.xlane.f32.xlu0 %v1152
  %v1154 = vpop.xlane.xlu0 %1153
  %v1155 = vsel %vm250, %v1147, -inf
  %1156 = vmax.xlane.f32.xlu0 %v1155
  %v1157 = vpop.xlane.xlu0 %1156
  %v1158 = vsub.f32 %v1097, %v1154
  %v1159 = vsub.f32 %v1147, %v1157
  %v1160 = vmul.f32 %v1158, 1.442695
  %v1161 = vpow.pop %v1160
  %v1162 = vmul.f32 %v1159, 1.442695
  %v1163 = vpow.pop %v1162
  %v1164 = vsel %vm250, %v1161, 0.0
  %1165 = vadd.xlane.f32.xlu0 %v1164
  %v1166 = vpop.xlane.xlu0 %1165
  %v1167 = vsel %vm250, %v1163, 0.0
  %1168 = vadd.xlane.f32.xlu0 %v1167
  %v1169 = vpop.xlane.xlu0 %1168
  %v1170 = vrcp.pop %v1166
  %v1171 = vrcp.pop %v1169
  %v1172 = vmul.f32 %v1161, %v1170
  %v1173 = vmul.f32 %v1163, %v1171
  %v1174 = vpack.c.bf16 %v1172, %v1172
  %v1175 = vpack.c.bf16 %v1173, %v1173
  %1176 = vrot.lane.b32.xlu0 %v244, 104
  %v1177 = vpop.permute.xlu0 %1176
  %v1179 = vsel %vm250, %v1174, 0
  %v1182 = vsel %vm370, %v1177, 0
  %1184 = vmatprep.subr.bf16.mxu0 0
  %1185 = vmatpush1.bf16.msra.mxu0 0
  %1186 = vmatprep.subr.bf16.mxu0 0
  %1187 = vmatpush1.bf16.msra.mxu0 0
  %1188 = vmatprep.subr.bf16.mxu0 0
  %1189 = vmatpush1.bf16.msra.mxu0 0
  %1190 = vmatprep.subr.bf16.mxu0 0
  %1191 = vmatpush1.bf16.msra.mxu0 0
  %1192 = vmatprep.subr.bf16.mxu0 0
  %1193 = vmatpush1.bf16.msra.mxu0 0
  %1194 = vmatprep.subr.bf16.mxu0 0
  %1195 = vmatpush1.bf16.msra.mxu0 0
  %1196 = vmatprep.subr.bf16.mxu0 0
  %1197 = vmatpush1.bf16.msra.mxu0 0
  %1198 = vmatprep.subr.bf16.mxu0 0
  %1199 = vmatpush1.bf16.msra.mxu0 %v1182
  %1200 = vmatprep.subr.bf16.mxu0 0
  %1201 = vmatpush2.bf16.msra.mxu0 0
  %1202 = vmatprep.subr.bf16.mxu0 0
  %1203 = vmatpush2.bf16.msra.mxu0 0
  %1204 = vmatprep.subr.bf16.mxu0 0
  %1205 = vmatpush2.bf16.msra.mxu0 0
  %1206 = vmatprep.subr.bf16.mxu0 0
  %1207 = vmatpush2.bf16.msra.mxu0 0
  %1208 = vmatprep.subr.bf16.mxu0 0
  %1209 = vmatpush2.bf16.msra.mxu0 0
  %1210 = vmatprep.subr.bf16.mxu0 0
  %1211 = vmatpush2.bf16.msra.mxu0 0
  %1212 = vmatprep.subr.bf16.mxu0 0
  %1213 = vmatpush2.bf16.msra.mxu0 0
  %1214 = vmatprep.subr.bf16.mxu0 0
  %1215 = vmatpush2.bf16.msra.mxu0 0
  %1216 = vmatprep.mubr.bf16.mxu0 0
  %1217 = vmatmul.mubr.bf16.gmra.mxu0 %v1179
  %v1218 = vpop.f32.mrf.mxu0
  %v1219 = vadd.f32 0.0, %v1218
  %v1220 = vpop.f32.mrf.mxu0
  %v1221 = vpop.f32.mrf.mxu0
  %v1222 = vpop.f32.mrf.mxu0
  %1223 = vdwg.mxu0
  %1224 = vrot.lane.b32.xlu0 %v245, 104
  %v1225 = vpop.permute.xlu0 %1224
  %v1227 = vsel %vm250, %v1175, 0
  %v1230 = vsel %vm370, %v1225, 0
  %1232 = vmatprep.subr.bf16.mxu0 0
  %1233 = vmatpush1.bf16.msra.mxu0 0
  %1234 = vmatprep.subr.bf16.mxu0 0
  %1235 = vmatpush1.bf16.msra.mxu0 0
  %1236 = vmatprep.subr.bf16.mxu0 0
  %1237 = vmatpush1.bf16.msra.mxu0 0
  %1238 = vmatprep.subr.bf16.mxu0 0
  %1239 = vmatpush1.bf16.msra.mxu0 0
  %1240 = vmatprep.subr.bf16.mxu0 0
  %1241 = vmatpush1.bf16.msra.mxu0 0
  %1242 = vmatprep.subr.bf16.mxu0 0
  %1243 = vmatpush1.bf16.msra.mxu0 0
  %1244 = vmatprep.subr.bf16.mxu0 0
  %1245 = vmatpush1.bf16.msra.mxu0 0
  %1246 = vmatprep.subr.bf16.mxu0 0
  %1247 = vmatpush1.bf16.msra.mxu0 %v1230
  %1248 = vmatprep.subr.bf16.mxu0 0
  %1249 = vmatpush2.bf16.msra.mxu0 0
  %1250 = vmatprep.subr.bf16.mxu0 0
  %1251 = vmatpush2.bf16.msra.mxu0 0
  %1252 = vmatprep.subr.bf16.mxu0 0
  %1253 = vmatpush2.bf16.msra.mxu0 0
  %1254 = vmatprep.subr.bf16.mxu0 0
  %1255 = vmatpush2.bf16.msra.mxu0 0
  %1256 = vmatprep.subr.bf16.mxu0 0
  %1257 = vmatpush2.bf16.msra.mxu0 0
  %1258 = vmatprep.subr.bf16.mxu0 0
  %1259 = vmatpush2.bf16.msra.mxu0 0
  %1260 = vmatprep.subr.bf16.mxu0 0
  %1261 = vmatpush2.bf16.msra.mxu0 0
  %1262 = vmatprep.subr.bf16.mxu0 0
  %1263 = vmatpush2.bf16.msra.mxu0 0
  %1264 = vmatprep.mubr.bf16.mxu0 0
  %1265 = vmatmul.mubr.bf16.gmra.mxu0 %v1227
  %v1266 = vpop.f32.mrf.mxu0
  %v1267 = vadd.f32 0.0, %v1266
  %v1268 = vpop.f32.mrf.mxu0
  %v1269 = vpop.f32.mrf.mxu0
  %v1270 = vpop.f32.mrf.mxu0
  %1271 = vdwg.mxu0
  %v1272 = vpack.c.bf16 %v1267, %v1219
  %v1274 = vsel %vm250, %v1272, 0
  %v1277 = vsel %vm370, %v249, 0
  %1279 = vmatprep.subr.bf16.mxu0 0
  %1280 = vmatpush1.bf16.msra.mxu0 0
  %1281 = vmatprep.subr.bf16.mxu0 0
  %1282 = vmatpush1.bf16.msra.mxu0 0
  %1283 = vmatprep.subr.bf16.mxu0 0
  %1284 = vmatpush1.bf16.msra.mxu0 0
  %1285 = vmatprep.subr.bf16.mxu0 0
  %1286 = vmatpush1.bf16.msra.mxu0 0
  %1287 = vmatprep.subr.bf16.mxu0 0
  %1288 = vmatpush1.bf16.msra.mxu0 0
  %1289 = vmatprep.subr.bf16.mxu0 0
  %1290 = vmatpush1.bf16.msra.mxu0 0
  %1291 = vmatprep.subr.bf16.mxu0 0
  %1292 = vmatpush1.bf16.msra.mxu0 0
  %1293 = vmatprep.subr.bf16.mxu0 0
  %1294 = vmatpush1.bf16.msra.mxu0 %v1277
  %1295 = vmatprep.subr.bf16.mxu0 0
  %1296 = vmatpush2.bf16.msra.mxu0 0
  %1297 = vmatprep.subr.bf16.mxu0 0
  %1298 = vmatpush2.bf16.msra.mxu0 0
  %1299 = vmatprep.subr.bf16.mxu0 0
  %1300 = vmatpush2.bf16.msra.mxu0 0
  %1301 = vmatprep.subr.bf16.mxu0 0
  %1302 = vmatpush2.bf16.msra.mxu0 0
  %1303 = vmatprep.subr.bf16.mxu0 0
  %1304 = vmatpush2.bf16.msra.mxu0 0
  %1305 = vmatprep.subr.bf16.mxu0 0
  %1306 = vmatpush2.bf16.msra.mxu0 0
  %1307 = vmatprep.subr.bf16.mxu0 0
  %1308 = vmatpush2.bf16.msra.mxu0 0
  %1309 = vmatprep.subr.bf16.mxu0 0
  %1310 = vmatpush2.bf16.msra.mxu0 0
  %1311 = vmatprep.mubr.bf16.mxu0 0
  %1312 = vmatmul.mubr.bf16.gmra.mxu0 %v1274
  %v1313 = vpop.f32.mrf.mxu0
  %v1314 = vadd.f32 0.0, %v1313
  %v1315 = vpop.f32.mrf.mxu0
  %v1316 = vpop.f32.mrf.mxu0
  %v1317 = vadd.f32 0.0, %v1316
  %v1318 = vpop.f32.mrf.mxu0
  %1319 = vdwg.mxu0
  %v1320 = vadd.f32 %v1050, %v1314
  %v1321 = vadd.f32 %v1051, %v1317
  %v1322 = vadd.f32 %v39, %v1320
  %v1323 = vadd.f32 %v40, %v1321
  %v1324 = vld [vmem:[%s8] sm:$0x1]
  %v1326 = vlaneseq
  %v1327 = vshrl.u32 %v1326, 7
  %v1328 = vsub.s32 0, %v1327
  %v1329 = vrot.slane %v1324, %v1328
  %v1331 = vadd.f32 %v1322, %v1329
  %v1332 = vadd.f32 %v1323, %v1329
  %v1333 = vsel %vm65, %v1331, 0.0
  %1334 = vadd.xlane.f32.xlu0 %v1333
  %v1335 = vpop.xlane.xlu0 %1334
  %v1336 = vsel %vm65, %v1332, 0.0
  %1337 = vadd.xlane.f32.xlu0 %v1336
  %v1338 = vpop.xlane.xlu0 %1337
  %v1339 = vrcp.pop 32.0
  %v1340 = vmul.f32 %v1335, %v1339
  %v1341 = vmul.f32 %v1338, %v1339
  %v1342 = vsub.f32 %v1331, %v1340
  %v1343 = vsub.f32 %v1332, %v1341
  %v1344 = vmul.f32 %v1342, %v1342
  %v1345 = vmul.f32 %v1343, %v1343
  %v1346 = vsel %vm65, %v1344, 0.0
  %1347 = vadd.xlane.f32.xlu0 %v1346
  %v1348 = vpop.xlane.xlu0 %1347
  %v1349 = vsel %vm65, %v1345, 0.0
  %1350 = vadd.xlane.f32.xlu0 %v1349
  %v1351 = vpop.xlane.xlu0 %1350
  %v1352 = vmul.f32 %v1348, %v1339
  %v1353 = vmul.f32 %v1351, %v1339
  %v1354 = vadd.f32 %v1352, 1e-05
  %v1355 = vadd.f32 %v1353, 1e-05
  %v1356 = vrsqrt.pop %v1354
  %v1357 = vrsqrt.pop %v1355
  %v1358 = vmul.f32 %v1342, %v1356
  %v1359 = vmul.f32 %v1343, %v1357
  %v1360 = vld [vmem:[%s9] sm:$0x1]
  %v1362 = vlaneseq
  %v1363 = vshrl.u32 %v1362, 7
  %v1364 = vsub.s32 0, %v1363
  %v1365 = vrot.slane %v1360, %v1364
  %v1367 = vmul.f32 %v1358, %v1365
  %v1368 = vmul.f32 %v1359, %v1365
  %v1369 = vld [vmem:[%s10] sm:$0x1]
  %v1371 = vlaneseq
  %v1372 = vshrl.u32 %v1371, 7
  %v1373 = vsub.s32 0, %v1372
  %v1374 = vrot.slane %v1369, %v1373
  %v1376 = vadd.f32 %v1367, %v1374
  %v1377 = vadd.f32 %v1368, %v1374
  %1378 = vst.msk [vmem:[%s11] sm:$0xff] %vm65, %v1376
  %1379 = vst.msk [vmem:[%s11 + $0x8] sm:$0xff] %vm65, %v1377
  // Predicated region
  $region46: #{transformer_forward.11} parent=0 // pred_check
    _
  $region47: #{transformer_forward.11} parent=0 // pred_check_branch
    %1381 = sbr.rel (0) target = $region49
  $region48: #{transformer_forward.11} parent=0 // pred_region
    _
  $region49: #{transformer_forward.11} parent=0 // pred_fallthru
    _
  // Predicated region
  $region50: #{transformer_forward.11} parent=0 // pred_check
    _
  $region51: #{transformer_forward.11} parent=0 // pred_check_branch
    %1383 = sbr.rel (0) target = $region53
  $region52: #{transformer_forward.11} parent=0 // pred_region
    _
  $region53: #{transformer_forward.11} parent=0 // pred_fallthru
    _

</llo_original>
